<compile_context>
chip_gen: v6e
topology: v6e:2x2x1
jax: 0.10.0
libtpu: 0.0.40
codegen_flags: <defaults>
</compile_context>

<pallas_src>
import functools

import jax
import jax.numpy as jnp
from jax.experimental import pallas as pl
from jax.experimental.pallas import tpu as pltpu

# ---- configuration matching the PyTorch module constructor ----
ATOM_TYPES = 10        # atom_types
EMBED_DIM = 32         # embed_dim (== hidden since embed_dim=None)
HIDDEN = 32            # hidden
NUM_LAYERS = 2         # num_layers
OUT_SIZE = 4           # out_size
FINAL_MULT = 2         # final_hidden_multiplier
BN_EPS = 1e-5          # torch.nn.BatchNorm1d default eps
GIN_EPS = 0.0          # eps buffer (args.train_eps=False) -> folded at trace time
# args.layer_drop = 0 and args.drop_rate = 0 -> both dropouts are identity

LANE = 128
SUBLANE = 8
DP = LANE              # embed/hidden feature width padded to one full lane group
FP = LANE              # final_hidden_multiplier*hidden padded to 128 lanes
OP = LANE              # out_size padded to 128 lanes (lane-dense final store)


def _vmem():
    return pl.BlockSpec(memory_space=pltpu.MemorySpace.VMEM)


# ---------------------------------------------------------------------------
# Single fused Pallas kernel: all GCNConv layers + readout + MLP head.
#   per layer:  agg = adj @ x            (sum aggregation, bf16 MXU, f32 acc)
#               h   = agg + (1+eps)*x    (eps == 0 folded at trace time)
#               h   = ReLU(BN(h @ W1 + b1)); h = ReLU(BN(h @ W2 + b2))
#   readout  :  pooled = pool @ x        (per-graph sum pooling)
#               out    = ReLU(pooled @ L1 + c1) @ L2 + c2
# BatchNorm1d uses batch statistics (training-mode forward of the default-
# constructed torch module), computed in ONE pass (sum + sum-of-squares).
# Pad lanes carry gamma=0 / beta=0 / zero weights so they stay exactly zero.
# ---------------------------------------------------------------------------
def gcn_fused_kernel(adj_ref, pool_ref, x0_ref,
                     w1s_ref, b1s_ref, g1s_ref, be1s_ref,
                     w2s_ref, b2s_ref, g2s_ref, be2s_ref,
                     lw1_ref, lb1_ref, lw2_ref, lb2_ref,
                     out_ref):
    adj = adj_ref[...]                    # (N, N) bf16, resident in VMEM
    x = x0_ref[...]                       # (N, DP) f32
    inv_n = 1.0 / x0_ref.shape[0]         # true node count (no node padding)

    def bn_relu(h, gamma, beta):
        # one-pass batch statistics: sum & sum-of-squares (halves sublane sweeps)
        s = jnp.sum(h, axis=0, keepdims=True)
        s2 = jnp.sum(h * h, axis=0, keepdims=True)
        mean = s * inv_n
        var = s2 * inv_n - mean * mean
        h = (h - mean) * jax.lax.rsqrt(var + BN_EPS) * gamma + beta
        return jnp.maximum(h, 0.0)

    # All conv layers fused; x never leaves VMEM between layers.
    for l in range(NUM_LAYERS):           # static unroll (NUM_LAYERS is tiny)
        agg = jnp.dot(adj, x.astype(jnp.bfloat16),
                      preferred_element_type=jnp.float32)
        # self-contribution kept in f32 (not folded into adj) for precision.
        h = agg + x if GIN_EPS == 0.0 else agg + (1.0 + GIN_EPS) * x
        h = jnp.dot(h.astype(jnp.bfloat16), w1s_ref[l],
                    preferred_element_type=jnp.float32) + b1s_ref[l]
        h = bn_relu(h, g1s_ref[l], be1s_ref[l])
        h = jnp.dot(h.astype(jnp.bfloat16), w2s_ref[l],
                    preferred_element_type=jnp.float32) + b2s_ref[l]
        h = bn_relu(h, g2s_ref[l], be2s_ref[l])
        x = h

    # readout: per-graph sum pool + 2-layer MLP head (lane-dense padded output)
    pooled = jnp.dot(pool_ref[...], x.astype(jnp.bfloat16),
                     preferred_element_type=jnp.float32)
    h = jnp.dot(pooled.astype(jnp.bfloat16), lw1_ref[...],
                preferred_element_type=jnp.float32) + lb1_ref[...]
    h = jnp.maximum(h, 0.0)                # self.act = relu; final_drop identity
    out_ref[...] = jnp.dot(h.astype(jnp.bfloat16), lw2_ref[...],
                           preferred_element_type=jnp.float32) + lb2_ref[...]


# ---------------------------------------------------------------------------
# Full GCN forward (glue: embedding gather, adjacency / pooling matrix build)
# ---------------------------------------------------------------------------
@functools.partial(jax.jit, static_argnames=("num_graphs",))
def gcn_forward(params, node_x, edge_index, batch, num_graphs):
    n_nodes = node_x.shape[0]
    g_pad = max(SUBLANE, -(-num_graphs // SUBLANE) * SUBLANE)  # sublane-aligned

    # v_embed_init = Sequential(PreEmbed(), Embedding(atom_types, embed_dim))
    # Embedding table is lane-padded, so gathered features are already (N, 128).
    idx = node_x.squeeze(-1).astype(jnp.int32)
    x0 = params["emb"][idx]

    # TODO(synk): create_mp_weight is not defined in the reference; we assume the
    #             standard sum aggregation of x_j onto target nodes.
    # Dense adjacency built ONCE, directly in bf16 (small integer edge counts
    # are exact in bf16), reused across all layers inside the fused kernel.
    # TODO(synk): for large sparse graphs replace the dense O(N^2) adjacency with
    #             a scalar-prefetched edge list + in-kernel segment-sum, or a
    #             tiled grid-pipelined aggregation (adj BlockSpec w/ Buffered(3)).
    src, tgt = edge_index[0], edge_index[1]
    adj = jnp.zeros((n_nodes, n_nodes), jnp.bfloat16).at[tgt, src].add(1.0)

    # TODO(synk): create_ro_weight is not defined in the reference; we assume a
    #             global per-graph sum-pool readout (ref features unused).
    pool = (batch[None, :] == jnp.arange(g_pad, dtype=batch.dtype)[:, None])
    pool = pool.astype(jnp.bfloat16)

    # explicit scoped-VMEM limit with headroom (v5e default 16 MiB, v7x 32 MiB)
    param_bytes = sum(int(v.size) * v.dtype.itemsize for k, v in params.items()
                      if k != "emb")
    est = (adj.size * adj.dtype.itemsize + pool.size * pool.dtype.itemsize
           + x0.size * x0.dtype.itemsize + g_pad * OP * 4 + param_bytes)
    vmem_limit = int(min(100 << 20, max(32 << 20, 4 * est)))

    out = pl.pallas_call(
        gcn_fused_kernel,
        out_shape=jax.ShapeDtypeStruct((g_pad, OP), jnp.float32),
        in_specs=[_vmem()] * 15,
        out_specs=_vmem(),
        compiler_params=pltpu.CompilerParams(vmem_limit_bytes=vmem_limit),
    )(adj, pool, x0,
      params["w1s"], params["b1s"], params["g1s"], params["be1s"],
      params["w2s"], params["b2s"], params["g2s"], params["be2s"],
      params["lin1_w"], params["lin1_b"], params["lin2_w"], params["lin2_b"])

    return out[:num_graphs, :OUT_SIZE]


# ---------------------------------------------------------------------------
# Deterministic parameter initialization (PyTorch-style init, lane-padded).
# Weights stored in bf16 (MXU-native); biases / BN affine params stay f32.
# Pad columns/rows are zero and BN gamma=0 on pad lanes, so padded math stays
# exactly zero on pad lanes through every layer.
# ---------------------------------------------------------------------------
def init_params(key):
    def linear(k, fan_in, fan_out, pad_in, pad_out):
        kw, kb = jax.random.split(k)
        bound = 1.0 / (fan_in ** 0.5)
        w = jax.random.uniform(kw, (fan_in, fan_out), jnp.float32, -bound, bound)
        b = jax.random.uniform(kb, (fan_out,), jnp.float32, -bound, bound)
        wp = jnp.zeros((pad_in, pad_out), jnp.float32).at[:fan_in, :fan_out].set(w)
        bp = jnp.zeros((1, pad_out), jnp.float32).at[0, :fan_out].set(b)
        return wp.astype(jnp.bfloat16), bp

    keys = jax.random.split(key, 2 * NUM_LAYERS + 3)
    params = {}
    # Embedding(atom_types, embed_dim): N(0, 1) init, lane-padded to 128
    emb = jax.random.normal(keys[0], (ATOM_TYPES, EMBED_DIM), jnp.float32)
    params["emb"] = jnp.zeros((ATOM_TYPES, DP), jnp.float32).at[:, :EMBED_DIM].set(emb)

    gamma_pad = jnp.zeros((1, DP), jnp.float32).at[0, :HIDDEN].set(1.0)
    beta_pad = jnp.zeros((1, DP), jnp.float32)

    w1s, b1s, w2s, b2s = [], [], [], []
    for i in range(NUM_LAYERS):
        layer_dim = EMBED_DIM if i == 0 else HIDDEN
        w1, b1 = linear(keys[1 + 2 * i], layer_dim, HIDDEN, DP, DP)
        w2, b2 = linear(keys[2 + 2 * i], HIDDEN, HIDDEN, DP, DP)
        w1s.append(w1); b1s.append(b1); w2s.append(w2); b2s.append(b2)
    params["w1s"] = jnp.stack(w1s); params["b1s"] = jnp.stack(b1s)
    params["w2s"] = jnp.stack(w2s); params["b2s"] = jnp.stack(b2s)
    params["g1s"] = jnp.stack([gamma_pad] * NUM_LAYERS)
    params["be1s"] = jnp.stack([beta_pad] * NUM_LAYERS)
    params["g2s"] = jnp.stack([gamma_pad] * NUM_LAYERS)
    params["be2s"] = jnp.stack([beta_pad] * NUM_LAYERS)

    params["lin1_w"], params["lin1_b"] = linear(
        keys[-2], HIDDEN, FINAL_MULT * HIDDEN, DP, FP)
    params["lin2_w"], params["lin2_b"] = linear(
        keys[-1], FINAL_MULT * HIDDEN, OUT_SIZE, FP, OP)
    return params


if __name__ == "__main__":
    key = jax.random.PRNGKey(0)
    k_param, k_x, k_src, k_tgt = jax.random.split(key, 4)

    # batch many graphs per call so the kernel is not launch/drain dominated;
    # 512 node rows is a multiple of 256 (full MXU tiles on v6e/v7x).
    N_NODES = 512
    N_EDGES = 2048
    NUM_GRAPHS = 8

    params = init_params(k_param)

    # data.x: (N, 1) integer atom types (PreEmbed squeezes last dim + casts to long)
    node_x = jax.random.randint(k_x, (N_NODES, 1), 0, ATOM_TYPES, dtype=jnp.int32)
    # data.edge_index: (2, E)
    src = jax.random.randint(k_src, (N_EDGES,), 0, N_NODES, dtype=jnp.int32)
    tgt = jax.random.randint(k_tgt, (N_EDGES,), 0, N_NODES, dtype=jnp.int32)
    edge_index = jnp.stack([src, tgt], axis=0)
    # data.batch: contiguous blocks of nodes per graph
    nodes_per_graph = N_NODES // NUM_GRAPHS
    batch = jnp.repeat(jnp.arange(NUM_GRAPHS, dtype=jnp.int32), nodes_per_graph)

    out = gcn_forward(params, node_x, edge_index, batch, NUM_GRAPHS)
    out = jax.block_until_ready(out)
    assert out.shape == (NUM_GRAPHS, OUT_SIZE), out.shape
    assert bool(jnp.all(jnp.isfinite(out)))
    print("KERNEL_OK")
</pallas_src>

<mosaic_0001>
module attributes {stable_mosaic.version = 11 : i64} {
  func.func @gcn_fused_kernel(%arg0: memref<512x512xbf16, #tpu.memory_space<vmem>>, %arg1: memref<8x512xbf16, #tpu.memory_space<vmem>>, %arg2: memref<512x128xf32, #tpu.memory_space<vmem>>, %arg3: memref<2x128x128xbf16, #tpu.memory_space<vmem>>, %arg4: memref<2x1x128xf32, #tpu.memory_space<vmem>>, %arg5: memref<2x1x128xf32, #tpu.memory_space<vmem>>, %arg6: memref<2x1x128xf32, #tpu.memory_space<vmem>>, %arg7: memref<2x128x128xbf16, #tpu.memory_space<vmem>>, %arg8: memref<2x1x128xf32, #tpu.memory_space<vmem>>, %arg9: memref<2x1x128xf32, #tpu.memory_space<vmem>>, %arg10: memref<2x1x128xf32, #tpu.memory_space<vmem>>, %arg11: memref<128x128xbf16, #tpu.memory_space<vmem>>, %arg12: memref<1x128xf32, #tpu.memory_space<vmem>>, %arg13: memref<128x128xbf16, #tpu.memory_space<vmem>>, %arg14: memref<1x128xf32, #tpu.memory_space<vmem>>, %arg15: memref<8x128xf32, #tpu.memory_space<vmem>>) attributes {dimension_semantics = [], scalar_prefetch = 0 : i64, scratch_operands = 0 : i64, tpu.core_type = #tpu.core_type<tc>} {
    %c0 = arith.constant 0 : index
    %c0_0 = arith.constant 0 : index
    %0 = vector.load %arg0[%c0, %c0_0] : memref<512x512xbf16, #tpu.memory_space<vmem>>, vector<512x512xbf16>
    %c0_1 = arith.constant 0 : index
    %c0_2 = arith.constant 0 : index
    %1 = vector.load %arg2[%c0_1, %c0_2] : memref<512x128xf32, #tpu.memory_space<vmem>>, vector<512x128xf32>
    %2 = arith.truncf %1 : vector<512x128xf32> to vector<512x128xbf16>
    %cst = arith.constant dense<0.000000e+00> : vector<512x128xf32>
    %3 = tpu.matmul %0, %2, %cst {dimension_numbers = #tpu.dot_dimension_numbers<[1], [0], [0], [1], [0, 0, 1, 1], [], []>} : vector<512x512xbf16>, vector<512x128xbf16>, vector<512x128xf32> -> vector<512x128xf32>
    %4 = arith.addf %3, %1 : vector<512x128xf32>
    %5 = arith.truncf %4 : vector<512x128xf32> to vector<512x128xbf16>
    %c0_3 = arith.constant 0 : index
    %c0_4 = arith.constant 0 : index
    %c0_5 = arith.constant 0 : index
    %6 = vector.load %arg3[%c0_3, %c0_4, %c0_5] : memref<2x128x128xbf16, #tpu.memory_space<vmem>>, vector<1x128x128xbf16>
    %7 = vector.shape_cast %6 : vector<1x128x128xbf16> to vector<128x128xbf16>
    %cst_6 = arith.constant dense<0.000000e+00> : vector<512x128xf32>
    %8 = tpu.matmul %5, %7, %cst_6 {dimension_numbers = #tpu.dot_dimension_numbers<[1], [0], [0], [1], [0, 0, 1, 1], [], []>} : vector<512x128xbf16>, vector<128x128xbf16>, vector<512x128xf32> -> vector<512x128xf32>
    %c0_7 = arith.constant 0 : index
    %c0_8 = arith.constant 0 : index
    %c0_9 = arith.constant 0 : index
    %9 = vector.load %arg4[%c0_7, %c0_8, %c0_9] : memref<2x1x128xf32, #tpu.memory_space<vmem>>, vector<1x1x128xf32>
    %10 = vector.shape_cast %9 : vector<1x1x128xf32> to vector<1x128xf32>
    %11 = vector.broadcast %10 : vector<1x128xf32> to vector<512x128xf32>
    %12 = arith.addf %8, %11 : vector<512x128xf32>
    %c0_10 = arith.constant 0 : index
    %c0_11 = arith.constant 0 : index
    %c0_12 = arith.constant 0 : index
    %13 = vector.load %arg5[%c0_10, %c0_11, %c0_12] : memref<2x1x128xf32, #tpu.memory_space<vmem>>, vector<1x1x128xf32>
    %14 = vector.shape_cast %13 : vector<1x1x128xf32> to vector<1x128xf32>
    %c0_13 = arith.constant 0 : index
    %c0_14 = arith.constant 0 : index
    %c0_15 = arith.constant 0 : index
    %15 = vector.load %arg6[%c0_13, %c0_14, %c0_15] : memref<2x1x128xf32, #tpu.memory_space<vmem>>, vector<1x1x128xf32>
    %16 = vector.shape_cast %15 : vector<1x1x128xf32> to vector<1x128xf32>
    %cst_16 = arith.constant dense<0.000000e+00> : vector<128xf32>
    %17 = vector.multi_reduction <add>, %12, %cst_16 [0] : vector<512x128xf32> to vector<128xf32>
    %18 = vector.shape_cast %17 : vector<128xf32> to vector<1x128xf32>
    %19 = arith.mulf %12, %12 : vector<512x128xf32>
    %cst_17 = arith.constant dense<0.000000e+00> : vector<128xf32>
    %20 = vector.multi_reduction <add>, %19, %cst_17 [0] : vector<512x128xf32> to vector<128xf32>
    %21 = vector.shape_cast %20 : vector<128xf32> to vector<1x128xf32>
    %cst_18 = arith.constant 0.001953125 : f32
    %22 = vector.broadcast %cst_18 : f32 to vector<1x128xf32>
    %23 = arith.mulf %18, %22 : vector<1x128xf32>
    %cst_19 = arith.constant 0.001953125 : f32
    %24 = vector.broadcast %cst_19 : f32 to vector<1x128xf32>
    %25 = arith.mulf %21, %24 : vector<1x128xf32>
    %26 = arith.mulf %23, %23 : vector<1x128xf32>
    %27 = arith.subf %25, %26 : vector<1x128xf32>
    %28 = vector.broadcast %23 : vector<1x128xf32> to vector<512x128xf32>
    %29 = arith.subf %12, %28 : vector<512x128xf32>
    %cst_20 = arith.constant 9.99999974E-6 : f32
    %30 = vector.broadcast %cst_20 : f32 to vector<1x128xf32>
    %31 = arith.addf %27, %30 : vector<1x128xf32>
    %32 = math.rsqrt %31 : vector<1x128xf32>
    %33 = vector.broadcast %32 : vector<1x128xf32> to vector<512x128xf32>
    %34 = arith.mulf %29, %33 : vector<512x128xf32>
    %35 = vector.broadcast %14 : vector<1x128xf32> to vector<512x128xf32>
    %36 = arith.mulf %34, %35 : vector<512x128xf32>
    %37 = vector.broadcast %16 : vector<1x128xf32> to vector<512x128xf32>
    %38 = arith.addf %36, %37 : vector<512x128xf32>
    %cst_21 = arith.constant 0.000000e+00 : f32
    %39 = vector.broadcast %cst_21 : f32 to vector<512x128xf32>
    %40 = arith.maximumf %38, %39 : vector<512x128xf32>
    %41 = arith.truncf %40 : vector<512x128xf32> to vector<512x128xbf16>
    %c0_22 = arith.constant 0 : index
    %c0_23 = arith.constant 0 : index
    %c0_24 = arith.constant 0 : index
    %42 = vector.load %arg7[%c0_22, %c0_23, %c0_24] : memref<2x128x128xbf16, #tpu.memory_space<vmem>>, vector<1x128x128xbf16>
    %43 = vector.shape_cast %42 : vector<1x128x128xbf16> to vector<128x128xbf16>
    %cst_25 = arith.constant dense<0.000000e+00> : vector<512x128xf32>
    %44 = tpu.matmul %41, %43, %cst_25 {dimension_numbers = #tpu.dot_dimension_numbers<[1], [0], [0], [1], [0, 0, 1, 1], [], []>} : vector<512x128xbf16>, vector<128x128xbf16>, vector<512x128xf32> -> vector<512x128xf32>
    %c0_26 = arith.constant 0 : index
    %c0_27 = arith.constant 0 : index
    %c0_28 = arith.constant 0 : index
    %45 = vector.load %arg8[%c0_26, %c0_27, %c0_28] : memref<2x1x128xf32, #tpu.memory_space<vmem>>, vector<1x1x128xf32>
    %46 = vector.shape_cast %45 : vector<1x1x128xf32> to vector<1x128xf32>
    %47 = vector.broadcast %46 : vector<1x128xf32> to vector<512x128xf32>
    %48 = arith.addf %44, %47 : vector<512x128xf32>
    %c0_29 = arith.constant 0 : index
    %c0_30 = arith.constant 0 : index
    %c0_31 = arith.constant 0 : index
    %49 = vector.load %arg9[%c0_29, %c0_30, %c0_31] : memref<2x1x128xf32, #tpu.memory_space<vmem>>, vector<1x1x128xf32>
    %50 = vector.shape_cast %49 : vector<1x1x128xf32> to vector<1x128xf32>
    %c0_32 = arith.constant 0 : index
    %c0_33 = arith.constant 0 : index
    %c0_34 = arith.constant 0 : index
    %51 = vector.load %arg10[%c0_32, %c0_33, %c0_34] : memref<2x1x128xf32, #tpu.memory_space<vmem>>, vector<1x1x128xf32>
    %52 = vector.shape_cast %51 : vector<1x1x128xf32> to vector<1x128xf32>
    %cst_35 = arith.constant dense<0.000000e+00> : vector<128xf32>
    %53 = vector.multi_reduction <add>, %48, %cst_35 [0] : vector<512x128xf32> to vector<128xf32>
    %54 = vector.shape_cast %53 : vector<128xf32> to vector<1x128xf32>
    %55 = arith.mulf %48, %48 : vector<512x128xf32>
    %cst_36 = arith.constant dense<0.000000e+00> : vector<128xf32>
    %56 = vector.multi_reduction <add>, %55, %cst_36 [0] : vector<512x128xf32> to vector<128xf32>
    %57 = vector.shape_cast %56 : vector<128xf32> to vector<1x128xf32>
    %cst_37 = arith.constant 0.001953125 : f32
    %58 = vector.broadcast %cst_37 : f32 to vector<1x128xf32>
    %59 = arith.mulf %54, %58 : vector<1x128xf32>
    %cst_38 = arith.constant 0.001953125 : f32
    %60 = vector.broadcast %cst_38 : f32 to vector<1x128xf32>
    %61 = arith.mulf %57, %60 : vector<1x128xf32>
    %62 = arith.mulf %59, %59 : vector<1x128xf32>
    %63 = arith.subf %61, %62 : vector<1x128xf32>
    %64 = vector.broadcast %59 : vector<1x128xf32> to vector<512x128xf32>
    %65 = arith.subf %48, %64 : vector<512x128xf32>
    %cst_39 = arith.constant 9.99999974E-6 : f32
    %66 = vector.broadcast %cst_39 : f32 to vector<1x128xf32>
    %67 = arith.addf %63, %66 : vector<1x128xf32>
    %68 = math.rsqrt %67 : vector<1x128xf32>
    %69 = vector.broadcast %68 : vector<1x128xf32> to vector<512x128xf32>
    %70 = arith.mulf %65, %69 : vector<512x128xf32>
    %71 = vector.broadcast %50 : vector<1x128xf32> to vector<512x128xf32>
    %72 = arith.mulf %70, %71 : vector<512x128xf32>
    %73 = vector.broadcast %52 : vector<1x128xf32> to vector<512x128xf32>
    %74 = arith.addf %72, %73 : vector<512x128xf32>
    %cst_40 = arith.constant 0.000000e+00 : f32
    %75 = vector.broadcast %cst_40 : f32 to vector<512x128xf32>
    %76 = arith.maximumf %74, %75 : vector<512x128xf32>
    %77 = arith.truncf %76 : vector<512x128xf32> to vector<512x128xbf16>
    %cst_41 = arith.constant dense<0.000000e+00> : vector<512x128xf32>
    %78 = tpu.matmul %0, %77, %cst_41 {dimension_numbers = #tpu.dot_dimension_numbers<[1], [0], [0], [1], [0, 0, 1, 1], [], []>} : vector<512x512xbf16>, vector<512x128xbf16>, vector<512x128xf32> -> vector<512x128xf32>
    %79 = arith.addf %78, %76 : vector<512x128xf32>
    %80 = arith.truncf %79 : vector<512x128xf32> to vector<512x128xbf16>
    %c1 = arith.constant 1 : index
    %c0_42 = arith.constant 0 : index
    %c0_43 = arith.constant 0 : index
    %81 = vector.load %arg3[%c1, %c0_42, %c0_43] : memref<2x128x128xbf16, #tpu.memory_space<vmem>>, vector<1x128x128xbf16>
    %82 = vector.shape_cast %81 : vector<1x128x128xbf16> to vector<128x128xbf16>
    %cst_44 = arith.constant dense<0.000000e+00> : vector<512x128xf32>
    %83 = tpu.matmul %80, %82, %cst_44 {dimension_numbers = #tpu.dot_dimension_numbers<[1], [0], [0], [1], [0, 0, 1, 1], [], []>} : vector<512x128xbf16>, vector<128x128xbf16>, vector<512x128xf32> -> vector<512x128xf32>
    %c1_45 = arith.constant 1 : index
    %c0_46 = arith.constant 0 : index
    %c0_47 = arith.constant 0 : index
    %84 = vector.load %arg4[%c1_45, %c0_46, %c0_47] : memref<2x1x128xf32, #tpu.memory_space<vmem>>, vector<1x1x128xf32>
    %85 = vector.shape_cast %84 : vector<1x1x128xf32> to vector<1x128xf32>
    %86 = vector.broadcast %85 : vector<1x128xf32> to vector<512x128xf32>
    %87 = arith.addf %83, %86 : vector<512x128xf32>
    %c1_48 = arith.constant 1 : index
    %c0_49 = arith.constant 0 : index
    %c0_50 = arith.constant 0 : index
    %88 = vector.load %arg5[%c1_48, %c0_49, %c0_50] : memref<2x1x128xf32, #tpu.memory_space<vmem>>, vector<1x1x128xf32>
    %89 = vector.shape_cast %88 : vector<1x1x128xf32> to vector<1x128xf32>
    %c1_51 = arith.constant 1 : index
    %c0_52 = arith.constant 0 : index
    %c0_53 = arith.constant 0 : index
    %90 = vector.load %arg6[%c1_51, %c0_52, %c0_53] : memref<2x1x128xf32, #tpu.memory_space<vmem>>, vector<1x1x128xf32>
    %91 = vector.shape_cast %90 : vector<1x1x128xf32> to vector<1x128xf32>
    %cst_54 = arith.constant dense<0.000000e+00> : vector<128xf32>
    %92 = vector.multi_reduction <add>, %87, %cst_54 [0] : vector<512x128xf32> to vector<128xf32>
    %93 = vector.shape_cast %92 : vector<128xf32> to vector<1x128xf32>
    %94 = arith.mulf %87, %87 : vector<512x128xf32>
    %cst_55 = arith.constant dense<0.000000e+00> : vector<128xf32>
    %95 = vector.multi_reduction <add>, %94, %cst_55 [0] : vector<512x128xf32> to vector<128xf32>
    %96 = vector.shape_cast %95 : vector<128xf32> to vector<1x128xf32>
    %cst_56 = arith.constant 0.001953125 : f32
    %97 = vector.broadcast %cst_56 : f32 to vector<1x128xf32>
    %98 = arith.mulf %93, %97 : vector<1x128xf32>
    %cst_57 = arith.constant 0.001953125 : f32
    %99 = vector.broadcast %cst_57 : f32 to vector<1x128xf32>
    %100 = arith.mulf %96, %99 : vector<1x128xf32>
    %101 = arith.mulf %98, %98 : vector<1x128xf32>
    %102 = arith.subf %100, %101 : vector<1x128xf32>
    %103 = vector.broadcast %98 : vector<1x128xf32> to vector<512x128xf32>
    %104 = arith.subf %87, %103 : vector<512x128xf32>
    %cst_58 = arith.constant 9.99999974E-6 : f32
    %105 = vector.broadcast %cst_58 : f32 to vector<1x128xf32>
    %106 = arith.addf %102, %105 : vector<1x128xf32>
    %107 = math.rsqrt %106 : vector<1x128xf32>
    %108 = vector.broadcast %107 : vector<1x128xf32> to vector<512x128xf32>
    %109 = arith.mulf %104, %108 : vector<512x128xf32>
    %110 = vector.broadcast %89 : vector<1x128xf32> to vector<512x128xf32>
    %111 = arith.mulf %109, %110 : vector<512x128xf32>
    %112 = vector.broadcast %91 : vector<1x128xf32> to vector<512x128xf32>
    %113 = arith.addf %111, %112 : vector<512x128xf32>
    %cst_59 = arith.constant 0.000000e+00 : f32
    %114 = vector.broadcast %cst_59 : f32 to vector<512x128xf32>
    %115 = arith.maximumf %113, %114 : vector<512x128xf32>
    %116 = arith.truncf %115 : vector<512x128xf32> to vector<512x128xbf16>
    %c1_60 = arith.constant 1 : index
    %c0_61 = arith.constant 0 : index
    %c0_62 = arith.constant 0 : index
    %117 = vector.load %arg7[%c1_60, %c0_61, %c0_62] : memref<2x128x128xbf16, #tpu.memory_space<vmem>>, vector<1x128x128xbf16>
    %118 = vector.shape_cast %117 : vector<1x128x128xbf16> to vector<128x128xbf16>
    %cst_63 = arith.constant dense<0.000000e+00> : vector<512x128xf32>
    %119 = tpu.matmul %116, %118, %cst_63 {dimension_numbers = #tpu.dot_dimension_numbers<[1], [0], [0], [1], [0, 0, 1, 1], [], []>} : vector<512x128xbf16>, vector<128x128xbf16>, vector<512x128xf32> -> vector<512x128xf32>
    %c1_64 = arith.constant 1 : index
    %c0_65 = arith.constant 0 : index
    %c0_66 = arith.constant 0 : index
    %120 = vector.load %arg8[%c1_64, %c0_65, %c0_66] : memref<2x1x128xf32, #tpu.memory_space<vmem>>, vector<1x1x128xf32>
    %121 = vector.shape_cast %120 : vector<1x1x128xf32> to vector<1x128xf32>
    %122 = vector.broadcast %121 : vector<1x128xf32> to vector<512x128xf32>
    %123 = arith.addf %119, %122 : vector<512x128xf32>
    %c1_67 = arith.constant 1 : index
    %c0_68 = arith.constant 0 : index
    %c0_69 = arith.constant 0 : index
    %124 = vector.load %arg9[%c1_67, %c0_68, %c0_69] : memref<2x1x128xf32, #tpu.memory_space<vmem>>, vector<1x1x128xf32>
    %125 = vector.shape_cast %124 : vector<1x1x128xf32> to vector<1x128xf32>
    %c1_70 = arith.constant 1 : index
    %c0_71 = arith.constant 0 : index
    %c0_72 = arith.constant 0 : index
    %126 = vector.load %arg10[%c1_70, %c0_71, %c0_72] : memref<2x1x128xf32, #tpu.memory_space<vmem>>, vector<1x1x128xf32>
    %127 = vector.shape_cast %126 : vector<1x1x128xf32> to vector<1x128xf32>
    %cst_73 = arith.constant dense<0.000000e+00> : vector<128xf32>
    %128 = vector.multi_reduction <add>, %123, %cst_73 [0] : vector<512x128xf32> to vector<128xf32>
    %129 = vector.shape_cast %128 : vector<128xf32> to vector<1x128xf32>
    %130 = arith.mulf %123, %123 : vector<512x128xf32>
    %cst_74 = arith.constant dense<0.000000e+00> : vector<128xf32>
    %131 = vector.multi_reduction <add>, %130, %cst_74 [0] : vector<512x128xf32> to vector<128xf32>
    %132 = vector.shape_cast %131 : vector<128xf32> to vector<1x128xf32>
    %cst_75 = arith.constant 0.001953125 : f32
    %133 = vector.broadcast %cst_75 : f32 to vector<1x128xf32>
    %134 = arith.mulf %129, %133 : vector<1x128xf32>
    %cst_76 = arith.constant 0.001953125 : f32
    %135 = vector.broadcast %cst_76 : f32 to vector<1x128xf32>
    %136 = arith.mulf %132, %135 : vector<1x128xf32>
    %137 = arith.mulf %134, %134 : vector<1x128xf32>
    %138 = arith.subf %136, %137 : vector<1x128xf32>
    %139 = vector.broadcast %134 : vector<1x128xf32> to vector<512x128xf32>
    %140 = arith.subf %123, %139 : vector<512x128xf32>
    %cst_77 = arith.constant 9.99999974E-6 : f32
    %141 = vector.broadcast %cst_77 : f32 to vector<1x128xf32>
    %142 = arith.addf %138, %141 : vector<1x128xf32>
    %143 = math.rsqrt %142 : vector<1x128xf32>
    %144 = vector.broadcast %143 : vector<1x128xf32> to vector<512x128xf32>
    %145 = arith.mulf %140, %144 : vector<512x128xf32>
    %146 = vector.broadcast %125 : vector<1x128xf32> to vector<512x128xf32>
    %147 = arith.mulf %145, %146 : vector<512x128xf32>
    %148 = vector.broadcast %127 : vector<1x128xf32> to vector<512x128xf32>
    %149 = arith.addf %147, %148 : vector<512x128xf32>
    %cst_78 = arith.constant 0.000000e+00 : f32
    %150 = vector.broadcast %cst_78 : f32 to vector<512x128xf32>
    %151 = arith.maximumf %149, %150 : vector<512x128xf32>
    %c0_79 = arith.constant 0 : index
    %c0_80 = arith.constant 0 : index
    %152 = vector.load %arg1[%c0_79, %c0_80] : memref<8x512xbf16, #tpu.memory_space<vmem>>, vector<8x512xbf16>
    %153 = arith.truncf %151 : vector<512x128xf32> to vector<512x128xbf16>
    %cst_81 = arith.constant dense<0.000000e+00> : vector<8x128xf32>
    %154 = tpu.matmul %152, %153, %cst_81 {dimension_numbers = #tpu.dot_dimension_numbers<[1], [0], [0], [1], [0, 0, 1, 1], [], []>} : vector<8x512xbf16>, vector<512x128xbf16>, vector<8x128xf32> -> vector<8x128xf32>
    %155 = arith.truncf %154 : vector<8x128xf32> to vector<8x128xbf16>
    %c0_82 = arith.constant 0 : index
    %c0_83 = arith.constant 0 : index
    %156 = vector.load %arg11[%c0_82, %c0_83] : memref<128x128xbf16, #tpu.memory_space<vmem>>, vector<128x128xbf16>
    %cst_84 = arith.constant dense<0.000000e+00> : vector<8x128xf32>
    %157 = tpu.matmul %155, %156, %cst_84 {dimension_numbers = #tpu.dot_dimension_numbers<[1], [0], [0], [1], [0, 0, 1, 1], [], []>} : vector<8x128xbf16>, vector<128x128xbf16>, vector<8x128xf32> -> vector<8x128xf32>
    %c0_85 = arith.constant 0 : index
    %c0_86 = arith.constant 0 : index
    %158 = vector.load %arg12[%c0_85, %c0_86] : memref<1x128xf32, #tpu.memory_space<vmem>>, vector<1x128xf32>
    %159 = vector.broadcast %158 : vector<1x128xf32> to vector<8x128xf32>
    %160 = arith.addf %157, %159 : vector<8x128xf32>
    %cst_87 = arith.constant 0.000000e+00 : f32
    %161 = vector.broadcast %cst_87 : f32 to vector<8x128xf32>
    %162 = arith.maximumf %160, %161 : vector<8x128xf32>
    %163 = arith.truncf %162 : vector<8x128xf32> to vector<8x128xbf16>
    %c0_88 = arith.constant 0 : index
    %c0_89 = arith.constant 0 : index
    %164 = vector.load %arg13[%c0_88, %c0_89] : memref<128x128xbf16, #tpu.memory_space<vmem>>, vector<128x128xbf16>
    %cst_90 = arith.constant dense<0.000000e+00> : vector<8x128xf32>
    %165 = tpu.matmul %163, %164, %cst_90 {dimension_numbers = #tpu.dot_dimension_numbers<[1], [0], [0], [1], [0, 0, 1, 1], [], []>} : vector<8x128xbf16>, vector<128x128xbf16>, vector<8x128xf32> -> vector<8x128xf32>
    %c0_91 = arith.constant 0 : index
    %c0_92 = arith.constant 0 : index
    %166 = vector.load %arg14[%c0_91, %c0_92] : memref<1x128xf32, #tpu.memory_space<vmem>>, vector<1x128xf32>
    %167 = vector.broadcast %166 : vector<1x128xf32> to vector<8x128xf32>
    %168 = arith.addf %165, %167 : vector<8x128xf32>
    %c0_93 = arith.constant 0 : index
    %c0_94 = arith.constant 0 : index
    %169 = vector.load %arg15[%c0_93, %c0_94] : memref<8x128xf32, #tpu.memory_space<vmem>>, vector<8x128xf32>
    tpu.vector_store %arg15[%c0_93, %c0_94], %168 {strides = array<i32>} : memref<8x128xf32, #tpu.memory_space<vmem>>, vector<8x128xf32>,
    return
  }
}

</mosaic_0001>

<llo_original>
// kernel: gcn_forward.1
$region0: #{gcn_forward.1}
  #allocation0 [shape = 'u32[]', space=smem, size = 0x4, offset = 0x4, fixed_abs, tag = 'smem constant byte address 0x4 - core index']
  #allocation1 [shape = 'u32[144,128]{1,0:T(1,128)}', space=vmem, size = 0x12000, scoped, tag = 'internal scratch']
  %s0 = inlined_call_operand.vmem [shape: bf16[512,512], index: 0, kind: input, shape index: {}]
  %s1 = inlined_call_operand.vmem [shape: bf16[8,512], index: 1, kind: input, shape index: {}]
  %s2 = inlined_call_operand.vmem [shape: f32[512,128], index: 2, kind: input, shape index: {}]
  %s3 = inlined_call_operand.vmem [shape: bf16[2,128,128], index: 3, kind: input, shape index: {}]
  %s4 = inlined_call_operand.vmem [shape: f32[2,1,128], index: 4, kind: input, shape index: {}]
  %s5 = inlined_call_operand.vmem [shape: f32[2,1,128], index: 5, kind: input, shape index: {}]
  %s6 = inlined_call_operand.vmem [shape: f32[2,1,128], index: 6, kind: input, shape index: {}]
  %s7 = inlined_call_operand.vmem [shape: bf16[2,128,128], index: 7, kind: input, shape index: {}]
  %s8 = inlined_call_operand.vmem [shape: f32[2,1,128], index: 8, kind: input, shape index: {}]
  %s9 = inlined_call_operand.vmem [shape: f32[2,1,128], index: 9, kind: input, shape index: {}]
  %s10 = inlined_call_operand.vmem [shape: f32[2,1,128], index: 10, kind: input, shape index: {}]
  %s11 = inlined_call_operand.vmem [shape: bf16[128,128], index: 11, kind: input, shape index: {}]
  %s12 = inlined_call_operand.vmem [shape: f32[1,128], index: 12, kind: input, shape index: {}]
  %s13 = inlined_call_operand.vmem [shape: bf16[128,128], index: 13, kind: input, shape index: {}]
  %s14 = inlined_call_operand.vmem [shape: f32[1,128], index: 14, kind: input, shape index: {}]
  %s15 = inlined_call_operand.vmem [shape: f32[8,128], index: 15, kind: output, shape index: {}]
  %s16 = sld [smem:[#allocation0]]
  $region70: #{gcn_forward.1} parent=0
    _
  %s18 = ssub.s32 1, %s16
  %s19 = scalar_select 0, %s18, %s16
  // Predicated region
  $region2: #{gcn_forward.1} parent=0 // pred_check
    _
  $region3: #{gcn_forward.1} parent=0 // pred_check_branch
    %21 = sbr.rel (0) target = $region5
  $region4: #{gcn_forward.1} parent=0 // pred_region
    _
  $region5: #{gcn_forward.1} parent=0 // pred_fallthru
    _
  // Predicated region
  $region6: #{gcn_forward.1} parent=0 // pred_check
    _
  $region7: #{gcn_forward.1} parent=0 // pred_check_branch
    %23 = sbr.rel (0) target = $region9
  $region8: #{gcn_forward.1} parent=0 // pred_region
    _
  $region9: #{gcn_forward.1} parent=0 // pred_fallthru
    _
  // Predicated region
  $region10: #{gcn_forward.1} parent=0 // pred_check
    _
  $region11: #{gcn_forward.1} parent=0 // pred_check_branch
    %25 = sbr.rel (0) target = $region13
  $region12: #{gcn_forward.1} parent=0 // pred_region
    _
  $region13: #{gcn_forward.1} parent=0 // pred_fallthru
    _
  // Predicated region
  $region14: #{gcn_forward.1} parent=0 // pred_check
    _
  $region15: #{gcn_forward.1} parent=0 // pred_check_branch
    %27 = sbr.rel (0) target = $region17
  $region16: #{gcn_forward.1} parent=0 // pred_region
    _
  $region17: #{gcn_forward.1} parent=0 // pred_fallthru
    _
  // Predicated region
  $region18: #{gcn_forward.1} parent=0 // pred_check
    _
  $region19: #{gcn_forward.1} parent=0 // pred_check_branch
    %29 = sbr.rel (0) target = $region21
  $region20: #{gcn_forward.1} parent=0 // pred_region
    _
  $region21: #{gcn_forward.1} parent=0 // pred_fallthru
    _
  // Predicated region
  $region22: #{gcn_forward.1} parent=0 // pred_check
    _
  $region23: #{gcn_forward.1} parent=0 // pred_check_branch
    %31 = sbr.rel (0) target = $region25
  $region24: #{gcn_forward.1} parent=0 // pred_region
    _
  $region25: #{gcn_forward.1} parent=0 // pred_fallthru
    _
  // Predicated region
  $region26: #{gcn_forward.1} parent=0 // pred_check
    _
  $region27: #{gcn_forward.1} parent=0 // pred_check_branch
    %33 = sbr.rel (0) target = $region29
  $region28: #{gcn_forward.1} parent=0 // pred_region
    _
  $region29: #{gcn_forward.1} parent=0 // pred_fallthru
    _
  // Predicated region
  $region30: #{gcn_forward.1} parent=0 // pred_check
    _
  $region31: #{gcn_forward.1} parent=0 // pred_check_branch
    %35 = sbr.rel (0) target = $region33
  $region32: #{gcn_forward.1} parent=0 // pred_region
    _
  $region33: #{gcn_forward.1} parent=0 // pred_fallthru
    _
  // Predicated region
  $region34: #{gcn_forward.1} parent=0 // pred_check
    _
  $region35: #{gcn_forward.1} parent=0 // pred_check_branch
    %37 = sbr.rel (0) target = $region37
  $region36: #{gcn_forward.1} parent=0 // pred_region
    _
  $region37: #{gcn_forward.1} parent=0 // pred_fallthru
    _
  // Predicated region
  $region38: #{gcn_forward.1} parent=0 // pred_check
    _
  $region39: #{gcn_forward.1} parent=0 // pred_check_branch
    %39 = sbr.rel (0) target = $region41
  $region40: #{gcn_forward.1} parent=0 // pred_region
    _
  $region41: #{gcn_forward.1} parent=0 // pred_fallthru
    _
  // Predicated region
  $region42: #{gcn_forward.1} parent=0 // pred_check
    _
  $region43: #{gcn_forward.1} parent=0 // pred_check_branch
    %41 = sbr.rel (0) target = $region45
  $region44: #{gcn_forward.1} parent=0 // pred_region
    _
  $region45: #{gcn_forward.1} parent=0 // pred_fallthru
    _
  // Predicated region
  $region46: #{gcn_forward.1} parent=0 // pred_check
    _
  $region47: #{gcn_forward.1} parent=0 // pred_check_branch
    %43 = sbr.rel (0) target = $region49
  $region48: #{gcn_forward.1} parent=0 // pred_region
    _
  $region49: #{gcn_forward.1} parent=0 // pred_fallthru
    _
  // Predicated region
  $region50: #{gcn_forward.1} parent=0 // pred_check
    _
  $region51: #{gcn_forward.1} parent=0 // pred_check_branch
    %45 = sbr.rel (0) target = $region53
  $region52: #{gcn_forward.1} parent=0 // pred_region
    _
  $region53: #{gcn_forward.1} parent=0 // pred_fallthru
    _
  // Predicated region
  $region54: #{gcn_forward.1} parent=0 // pred_check
    _
  $region55: #{gcn_forward.1} parent=0 // pred_check_branch
    %47 = sbr.rel (0) target = $region57
  $region56: #{gcn_forward.1} parent=0 // pred_region
    _
  $region57: #{gcn_forward.1} parent=0 // pred_fallthru
    _
  // Predicated region
  $region58: #{gcn_forward.1} parent=0 // pred_check
    _
  $region59: #{gcn_forward.1} parent=0 // pred_check_branch
    %49 = sbr.rel (0) target = $region61
  $region60: #{gcn_forward.1} parent=0 // pred_region
    _
  $region61: #{gcn_forward.1} parent=0 // pred_fallthru
    _
  %v51 = vld [vmem:[%s0] sm:$0xff]
  %v52 = vld [vmem:[%s0 + $0x8] sm:$0xff]
  %v53 = vld [vmem:[%s0 + $0x10] sm:$0xff]
  %v54 = vld [vmem:[%s0 + $0x18] sm:$0xff]
  %v55 = vld [vmem:[%s0 + $0x20] sm:$0xff]
  %v56 = vld [vmem:[%s0 + $0x28] sm:$0xff]
  %v57 = vld [vmem:[%s0 + $0x30] sm:$0xff]
  %v58 = vld [vmem:[%s0 + $0x38] sm:$0xff]
  %v59 = vld [vmem:[%s0 + $0x40] sm:$0xff]
  %v60 = vld [vmem:[%s0 + $0x48] sm:$0xff]
  %v61 = vld [vmem:[%s0 + $0x50] sm:$0xff]
  %v62 = vld [vmem:[%s0 + $0x58] sm:$0xff]
  %v63 = vld [vmem:[%s0 + $0x60] sm:$0xff]
  %v64 = vld [vmem:[%s0 + $0x68] sm:$0xff]
  %v65 = vld [vmem:[%s0 + $0x70] sm:$0xff]
  %v66 = vld [vmem:[%s0 + $0x78] sm:$0xff]
  %v67 = vld [vmem:[%s0 + $0x80] sm:$0xff]
  %v68 = vld [vmem:[%s0 + $0x88] sm:$0xff]
  %v69 = vld [vmem:[%s0 + $0x90] sm:$0xff]
  %v70 = vld [vmem:[%s0 + $0x98] sm:$0xff]
  %v71 = vld [vmem:[%s0 + $0xa0] sm:$0xff]
  %v72 = vld [vmem:[%s0 + $0xa8] sm:$0xff]
  %v73 = vld [vmem:[%s0 + $0xb0] sm:$0xff]
  %v74 = vld [vmem:[%s0 + $0xb8] sm:$0xff]
  %v75 = vld [vmem:[%s0 + $0xc0] sm:$0xff]
  %v76 = vld [vmem:[%s0 + $0xc8] sm:$0xff]
  %v77 = vld [vmem:[%s0 + $0xd0] sm:$0xff]
  %v78 = vld [vmem:[%s0 + $0xd8] sm:$0xff]
  %v79 = vld [vmem:[%s0 + $0xe0] sm:$0xff]
  %v80 = vld [vmem:[%s0 + $0xe8] sm:$0xff]
  %v81 = vld [vmem:[%s0 + $0xf0] sm:$0xff]
  %v82 = vld [vmem:[%s0 + $0xf8] sm:$0xff]
  %v83 = vld [vmem:[%s0 + $0x100] sm:$0xff]
  %v84 = vld [vmem:[%s0 + $0x108] sm:$0xff]
  %v85 = vld [vmem:[%s0 + $0x110] sm:$0xff]
  %v86 = vld [vmem:[%s0 + $0x118] sm:$0xff]
  %v87 = vld [vmem:[%s0 + $0x120] sm:$0xff]
  %v88 = vld [vmem:[%s0 + $0x128] sm:$0xff]
  %v89 = vld [vmem:[%s0 + $0x130] sm:$0xff]
  %v90 = vld [vmem:[%s0 + $0x138] sm:$0xff]
  %v91 = vld [vmem:[%s0 + $0x140] sm:$0xff]
  %v92 = vld [vmem:[%s0 + $0x148] sm:$0xff]
  %v93 = vld [vmem:[%s0 + $0x150] sm:$0xff]
  %v94 = vld [vmem:[%s0 + $0x158] sm:$0xff]
  %v95 = vld [vmem:[%s0 + $0x160] sm:$0xff]
  %v96 = vld [vmem:[%s0 + $0x168] sm:$0xff]
  %v97 = vld [vmem:[%s0 + $0x170] sm:$0xff]
  %v98 = vld [vmem:[%s0 + $0x178] sm:$0xff]
  %v99 = vld [vmem:[%s0 + $0x180] sm:$0xff]
  %v100 = vld [vmem:[%s0 + $0x188] sm:$0xff]
  %v101 = vld [vmem:[%s0 + $0x190] sm:$0xff]
  %v102 = vld [vmem:[%s0 + $0x198] sm:$0xff]
  %v103 = vld [vmem:[%s0 + $0x1a0] sm:$0xff]
  %v104 = vld [vmem:[%s0 + $0x1a8] sm:$0xff]
  %v105 = vld [vmem:[%s0 + $0x1b0] sm:$0xff]
  %v106 = vld [vmem:[%s0 + $0x1b8] sm:$0xff]
  %v107 = vld [vmem:[%s0 + $0x1c0] sm:$0xff]
  %v108 = vld [vmem:[%s0 + $0x1c8] sm:$0xff]
  %v109 = vld [vmem:[%s0 + $0x1d0] sm:$0xff]
  %v110 = vld [vmem:[%s0 + $0x1d8] sm:$0xff]
  %v111 = vld [vmem:[%s0 + $0x1e0] sm:$0xff]
  %v112 = vld [vmem:[%s0 + $0x1e8] sm:$0xff]
  %v113 = vld [vmem:[%s0 + $0x1f0] sm:$0xff]
  %v114 = vld [vmem:[%s0 + $0x1f8] sm:$0xff]
  %v115 = vld [vmem:[%s0 + $0x200] sm:$0xff]
  %v116 = vld [vmem:[%s0 + $0x208] sm:$0xff]
  %v117 = vld [vmem:[%s0 + $0x210] sm:$0xff]
  %v118 = vld [vmem:[%s0 + $0x218] sm:$0xff]
  %v119 = vld [vmem:[%s0 + $0x220] sm:$0xff]
  %v120 = vld [vmem:[%s0 + $0x228] sm:$0xff]
  %v121 = vld [vmem:[%s0 + $0x230] sm:$0xff]
  %v122 = vld [vmem:[%s0 + $0x238] sm:$0xff]
  %v123 = vld [vmem:[%s0 + $0x240] sm:$0xff]
  %v124 = vld [vmem:[%s0 + $0x248] sm:$0xff]
  %v125 = vld [vmem:[%s0 + $0x250] sm:$0xff]
  %v126 = vld [vmem:[%s0 + $0x258] sm:$0xff]
  %v127 = vld [vmem:[%s0 + $0x260] sm:$0xff]
  %v128 = vld [vmem:[%s0 + $0x268] sm:$0xff]
  %v129 = vld [vmem:[%s0 + $0x270] sm:$0xff]
  %v130 = vld [vmem:[%s0 + $0x278] sm:$0xff]
  %v131 = vld [vmem:[%s0 + $0x280] sm:$0xff]
  %v132 = vld [vmem:[%s0 + $0x288] sm:$0xff]
  %v133 = vld [vmem:[%s0 + $0x290] sm:$0xff]
  %v134 = vld [vmem:[%s0 + $0x298] sm:$0xff]
  %v135 = vld [vmem:[%s0 + $0x2a0] sm:$0xff]
  %v136 = vld [vmem:[%s0 + $0x2a8] sm:$0xff]
  %v137 = vld [vmem:[%s0 + $0x2b0] sm:$0xff]
  %v138 = vld [vmem:[%s0 + $0x2b8] sm:$0xff]
  %v139 = vld [vmem:[%s0 + $0x2c0] sm:$0xff]
  %v140 = vld [vmem:[%s0 + $0x2c8] sm:$0xff]
  %v141 = vld [vmem:[%s0 + $0x2d0] sm:$0xff]
  %v142 = vld [vmem:[%s0 + $0x2d8] sm:$0xff]
  %v143 = vld [vmem:[%s0 + $0x2e0] sm:$0xff]
  %v144 = vld [vmem:[%s0 + $0x2e8] sm:$0xff]
  %v145 = vld [vmem:[%s0 + $0x2f0] sm:$0xff]
  %v146 = vld [vmem:[%s0 + $0x2f8] sm:$0xff]
  %v147 = vld [vmem:[%s0 + $0x300] sm:$0xff]
  %v148 = vld [vmem:[%s0 + $0x308] sm:$0xff]
  %v149 = vld [vmem:[%s0 + $0x310] sm:$0xff]
  %v150 = vld [vmem:[%s0 + $0x318] sm:$0xff]
  %v151 = vld [vmem:[%s0 + $0x320] sm:$0xff]
  %v152 = vld [vmem:[%s0 + $0x328] sm:$0xff]
  %v153 = vld [vmem:[%s0 + $0x330] sm:$0xff]
  %v154 = vld [vmem:[%s0 + $0x338] sm:$0xff]
  %v155 = vld [vmem:[%s0 + $0x340] sm:$0xff]
  %v156 = vld [vmem:[%s0 + $0x348] sm:$0xff]
  %v157 = vld [vmem:[%s0 + $0x350] sm:$0xff]
  %v158 = vld [vmem:[%s0 + $0x358] sm:$0xff]
  %v159 = vld [vmem:[%s0 + $0x360] sm:$0xff]
  %v160 = vld [vmem:[%s0 + $0x368] sm:$0xff]
  %v161 = vld [vmem:[%s0 + $0x370] sm:$0xff]
  %v162 = vld [vmem:[%s0 + $0x378] sm:$0xff]
  %v163 = vld [vmem:[%s0 + $0x380] sm:$0xff]
  %v164 = vld [vmem:[%s0 + $0x388] sm:$0xff]
  %v165 = vld [vmem:[%s0 + $0x390] sm:$0xff]
  %v166 = vld [vmem:[%s0 + $0x398] sm:$0xff]
  %v167 = vld [vmem:[%s0 + $0x3a0] sm:$0xff]
  %v168 = vld [vmem:[%s0 + $0x3a8] sm:$0xff]
  %v169 = vld [vmem:[%s0 + $0x3b0] sm:$0xff]
  %v170 = vld [vmem:[%s0 + $0x3b8] sm:$0xff]
  %v171 = vld [vmem:[%s0 + $0x3c0] sm:$0xff]
  %v172 = vld [vmem:[%s0 + $0x3c8] sm:$0xff]
  %v173 = vld [vmem:[%s0 + $0x3d0] sm:$0xff]
  %v174 = vld [vmem:[%s0 + $0x3d8] sm:$0xff]
  %v175 = vld [vmem:[%s0 + $0x3e0] sm:$0xff]
  %v176 = vld [vmem:[%s0 + $0x3e8] sm:$0xff]
  %v177 = vld [vmem:[%s0 + $0x3f0] sm:$0xff]
  %v178 = vld [vmem:[%s0 + $0x3f8] sm:$0xff]
  %v179 = vld [vmem:[%s2] sm:$0xff]
  %v180 = vld [vmem:[%s2 + $0x8] sm:$0xff]
  %v181 = vld [vmem:[%s2 + $0x10] sm:$0xff]
  %v182 = vld [vmem:[%s2 + $0x18] sm:$0xff]
  %v183 = vld [vmem:[%s2 + $0x20] sm:$0xff]
  %v184 = vld [vmem:[%s2 + $0x28] sm:$0xff]
  %v185 = vld [vmem:[%s2 + $0x30] sm:$0xff]
  %v186 = vld [vmem:[%s2 + $0x38] sm:$0xff]
  %v187 = vld [vmem:[%s2 + $0x40] sm:$0xff]
  %v188 = vld [vmem:[%s2 + $0x48] sm:$0xff]
  %v189 = vld [vmem:[%s2 + $0x50] sm:$0xff]
  %v190 = vld [vmem:[%s2 + $0x58] sm:$0xff]
  %v191 = vld [vmem:[%s2 + $0x60] sm:$0xff]
  %v192 = vld [vmem:[%s2 + $0x68] sm:$0xff]
  %v193 = vld [vmem:[%s2 + $0x70] sm:$0xff]
  %v194 = vld [vmem:[%s2 + $0x78] sm:$0xff]
  %v195 = vld [vmem:[%s2 + $0x80] sm:$0xff]
  %v196 = vld [vmem:[%s2 + $0x88] sm:$0xff]
  %v197 = vld [vmem:[%s2 + $0x90] sm:$0xff]
  %v198 = vld [vmem:[%s2 + $0x98] sm:$0xff]
  %v199 = vld [vmem:[%s2 + $0xa0] sm:$0xff]
  %v200 = vld [vmem:[%s2 + $0xa8] sm:$0xff]
  %v201 = vld [vmem:[%s2 + $0xb0] sm:$0xff]
  %v202 = vld [vmem:[%s2 + $0xb8] sm:$0xff]
  %v203 = vld [vmem:[%s2 + $0xc0] sm:$0xff]
  %v204 = vld [vmem:[%s2 + $0xc8] sm:$0xff]
  %v205 = vld [vmem:[%s2 + $0xd0] sm:$0xff]
  %v206 = vld [vmem:[%s2 + $0xd8] sm:$0xff]
  %v207 = vld [vmem:[%s2 + $0xe0] sm:$0xff]
  %v208 = vld [vmem:[%s2 + $0xe8] sm:$0xff]
  %v209 = vld [vmem:[%s2 + $0xf0] sm:$0xff]
  %v210 = vld [vmem:[%s2 + $0xf8] sm:$0xff]
  %v211 = vld [vmem:[%s2 + $0x100] sm:$0xff]
  %v212 = vld [vmem:[%s2 + $0x108] sm:$0xff]
  %v213 = vld [vmem:[%s2 + $0x110] sm:$0xff]
  %v214 = vld [vmem:[%s2 + $0x118] sm:$0xff]
  %v215 = vld [vmem:[%s2 + $0x120] sm:$0xff]
  %v216 = vld [vmem:[%s2 + $0x128] sm:$0xff]
  %v217 = vld [vmem:[%s2 + $0x130] sm:$0xff]
  %v218 = vld [vmem:[%s2 + $0x138] sm:$0xff]
  %v219 = vld [vmem:[%s2 + $0x140] sm:$0xff]
  %v220 = vld [vmem:[%s2 + $0x148] sm:$0xff]
  %v221 = vld [vmem:[%s2 + $0x150] sm:$0xff]
  %v222 = vld [vmem:[%s2 + $0x158] sm:$0xff]
  %v223 = vld [vmem:[%s2 + $0x160] sm:$0xff]
  %v224 = vld [vmem:[%s2 + $0x168] sm:$0xff]
  %v225 = vld [vmem:[%s2 + $0x170] sm:$0xff]
  %v226 = vld [vmem:[%s2 + $0x178] sm:$0xff]
  %v227 = vld [vmem:[%s2 + $0x180] sm:$0xff]
  %v228 = vld [vmem:[%s2 + $0x188] sm:$0xff]
  %v229 = vld [vmem:[%s2 + $0x190] sm:$0xff]
  %v230 = vld [vmem:[%s2 + $0x198] sm:$0xff]
  %v231 = vld [vmem:[%s2 + $0x1a0] sm:$0xff]
  %v232 = vld [vmem:[%s2 + $0x1a8] sm:$0xff]
  %v233 = vld [vmem:[%s2 + $0x1b0] sm:$0xff]
  %v234 = vld [vmem:[%s2 + $0x1b8] sm:$0xff]
  %v235 = vld [vmem:[%s2 + $0x1c0] sm:$0xff]
  %v236 = vld [vmem:[%s2 + $0x1c8] sm:$0xff]
  %v237 = vld [vmem:[%s2 + $0x1d0] sm:$0xff]
  %v238 = vld [vmem:[%s2 + $0x1d8] sm:$0xff]
  %v239 = vld [vmem:[%s2 + $0x1e0] sm:$0xff]
  %v240 = vld [vmem:[%s2 + $0x1e8] sm:$0xff]
  %v241 = vld [vmem:[%s2 + $0x1f0] sm:$0xff]
  %v242 = vld [vmem:[%s2 + $0x1f8] sm:$0xff]
  %v243 = vpack.c.bf16 %v180, %v179
  %v244 = vpack.c.bf16 %v182, %v181
  %v245 = vpack.c.bf16 %v184, %v183
  %v246 = vpack.c.bf16 %v186, %v185
  %v247 = vpack.c.bf16 %v188, %v187
  %v248 = vpack.c.bf16 %v190, %v189
  %v249 = vpack.c.bf16 %v192, %v191
  %v250 = vpack.c.bf16 %v194, %v193
  %v251 = vpack.c.bf16 %v196, %v195
  %v252 = vpack.c.bf16 %v198, %v197
  %v253 = vpack.c.bf16 %v200, %v199
  %v254 = vpack.c.bf16 %v202, %v201
  %v255 = vpack.c.bf16 %v204, %v203
  %v256 = vpack.c.bf16 %v206, %v205
  %v257 = vpack.c.bf16 %v208, %v207
  %v258 = vpack.c.bf16 %v210, %v209
  %v259 = vpack.c.bf16 %v212, %v211
  %v260 = vpack.c.bf16 %v214, %v213
  %v261 = vpack.c.bf16 %v216, %v215
  %v262 = vpack.c.bf16 %v218, %v217
  %v263 = vpack.c.bf16 %v220, %v219
  %v264 = vpack.c.bf16 %v222, %v221
  %v265 = vpack.c.bf16 %v224, %v223
  %v266 = vpack.c.bf16 %v226, %v225
  %v267 = vpack.c.bf16 %v228, %v227
  %v268 = vpack.c.bf16 %v230, %v229
  %v269 = vpack.c.bf16 %v232, %v231
  %v270 = vpack.c.bf16 %v234, %v233
  %v271 = vpack.c.bf16 %v236, %v235
  %v272 = vpack.c.bf16 %v238, %v237
  %v273 = vpack.c.bf16 %v240, %v239
  %v274 = vpack.c.bf16 %v242, %v241
  %v403 = vunpack.c.l.b16 %v51
  %v404 = vunpack.c.h.b16 %v51
  %v405 = vunpack.c.l.b16 %v52
  %v406 = vunpack.c.h.b16 %v52
  %v407 = vunpack.c.l.b16 %v53
  %v408 = vunpack.c.h.b16 %v53
  %v409 = vunpack.c.l.b16 %v54
  %v410 = vunpack.c.h.b16 %v54
  %v411 = vunpack.c.l.b16 %v55
  %v412 = vunpack.c.h.b16 %v55
  %v413 = vunpack.c.l.b16 %v56
  %v414 = vunpack.c.h.b16 %v56
  %v415 = vunpack.c.l.b16 %v57
  %v416 = vunpack.c.h.b16 %v57
  %v417 = vunpack.c.l.b16 %v58
  %v418 = vunpack.c.h.b16 %v58
  %v419 = vunpack.c.l.b16 %v59
  %v420 = vunpack.c.h.b16 %v59
  %v421 = vunpack.c.l.b16 %v60
  %v422 = vunpack.c.h.b16 %v60
  %v423 = vunpack.c.l.b16 %v61
  %v424 = vunpack.c.h.b16 %v61
  %v425 = vunpack.c.l.b16 %v62
  %v426 = vunpack.c.h.b16 %v62
  %v427 = vunpack.c.l.b16 %v63
  %v428 = vunpack.c.h.b16 %v63
  %v429 = vunpack.c.l.b16 %v64
  %v430 = vunpack.c.h.b16 %v64
  %v431 = vunpack.c.l.b16 %v65
  %v432 = vunpack.c.h.b16 %v65
  %v433 = vunpack.c.l.b16 %v66
  %v434 = vunpack.c.h.b16 %v66
  %v435 = vunpack.c.l.b16 %v67
  %v436 = vunpack.c.h.b16 %v67
  %v437 = vunpack.c.l.b16 %v68
  %v438 = vunpack.c.h.b16 %v68
  %v439 = vunpack.c.l.b16 %v69
  %v440 = vunpack.c.h.b16 %v69
  %v441 = vunpack.c.l.b16 %v70
  %v442 = vunpack.c.h.b16 %v70
  %v443 = vunpack.c.l.b16 %v71
  %v444 = vunpack.c.h.b16 %v71
  %v445 = vunpack.c.l.b16 %v72
  %v446 = vunpack.c.h.b16 %v72
  %v447 = vunpack.c.l.b16 %v73
  %v448 = vunpack.c.h.b16 %v73
  %v449 = vunpack.c.l.b16 %v74
  %v450 = vunpack.c.h.b16 %v74
  %v451 = vunpack.c.l.b16 %v75
  %v452 = vunpack.c.h.b16 %v75
  %v453 = vunpack.c.l.b16 %v76
  %v454 = vunpack.c.h.b16 %v76
  %v455 = vunpack.c.l.b16 %v77
  %v456 = vunpack.c.h.b16 %v77
  %v457 = vunpack.c.l.b16 %v78
  %v458 = vunpack.c.h.b16 %v78
  %v459 = vunpack.c.l.b16 %v79
  %v460 = vunpack.c.h.b16 %v79
  %v461 = vunpack.c.l.b16 %v80
  %v462 = vunpack.c.h.b16 %v80
  %v463 = vunpack.c.l.b16 %v81
  %v464 = vunpack.c.h.b16 %v81
  %v465 = vunpack.c.l.b16 %v82
  %v466 = vunpack.c.h.b16 %v82
  %v467 = vunpack.c.l.b16 %v83
  %v468 = vunpack.c.h.b16 %v83
  %v469 = vunpack.c.l.b16 %v84
  %v470 = vunpack.c.h.b16 %v84
  %v471 = vunpack.c.l.b16 %v85
  %v472 = vunpack.c.h.b16 %v85
  %v473 = vunpack.c.l.b16 %v86
  %v474 = vunpack.c.h.b16 %v86
  %v475 = vunpack.c.l.b16 %v87
  %v476 = vunpack.c.h.b16 %v87
  %v477 = vunpack.c.l.b16 %v88
  %v478 = vunpack.c.h.b16 %v88
  %v479 = vunpack.c.l.b16 %v89
  %v480 = vunpack.c.h.b16 %v89
  %v481 = vunpack.c.l.b16 %v90
  %v482 = vunpack.c.h.b16 %v90
  %v483 = vunpack.c.l.b16 %v91
  %v484 = vunpack.c.h.b16 %v91
  %v485 = vunpack.c.l.b16 %v92
  %v486 = vunpack.c.h.b16 %v92
  %v487 = vunpack.c.l.b16 %v93
  %v488 = vunpack.c.h.b16 %v93
  %v489 = vunpack.c.l.b16 %v94
  %v490 = vunpack.c.h.b16 %v94
  %v491 = vunpack.c.l.b16 %v95
  %v492 = vunpack.c.h.b16 %v95
  %v493 = vunpack.c.l.b16 %v96
  %v494 = vunpack.c.h.b16 %v96
  %v495 = vunpack.c.l.b16 %v97
  %v496 = vunpack.c.h.b16 %v97
  %v497 = vunpack.c.l.b16 %v98
  %v498 = vunpack.c.h.b16 %v98
  %v499 = vunpack.c.l.b16 %v99
  %v500 = vunpack.c.h.b16 %v99
  %v501 = vunpack.c.l.b16 %v100
  %v502 = vunpack.c.h.b16 %v100
  %v503 = vunpack.c.l.b16 %v101
  %v504 = vunpack.c.h.b16 %v101
  %v505 = vunpack.c.l.b16 %v102
  %v506 = vunpack.c.h.b16 %v102
  %v507 = vunpack.c.l.b16 %v103
  %v508 = vunpack.c.h.b16 %v103
  %v509 = vunpack.c.l.b16 %v104
  %v510 = vunpack.c.h.b16 %v104
  %v511 = vunpack.c.l.b16 %v105
  %v512 = vunpack.c.h.b16 %v105
  %v513 = vunpack.c.l.b16 %v106
  %v514 = vunpack.c.h.b16 %v106
  %v515 = vunpack.c.l.b16 %v107
  %v516 = vunpack.c.h.b16 %v107
  %v517 = vunpack.c.l.b16 %v108
  %v518 = vunpack.c.h.b16 %v108
  %v519 = vunpack.c.l.b16 %v109
  %v520 = vunpack.c.h.b16 %v109
  %v521 = vunpack.c.l.b16 %v110
  %v522 = vunpack.c.h.b16 %v110
  %v523 = vunpack.c.l.b16 %v111
  %v524 = vunpack.c.h.b16 %v111
  %v525 = vunpack.c.l.b16 %v112
  %v526 = vunpack.c.h.b16 %v112
  %v527 = vunpack.c.l.b16 %v113
  %v528 = vunpack.c.h.b16 %v113
  %v529 = vunpack.c.l.b16 %v114
  %v530 = vunpack.c.h.b16 %v114
  %v531 = vunpack.c.l.b16 %v115
  %v532 = vunpack.c.h.b16 %v115
  %v533 = vunpack.c.l.b16 %v116
  %v534 = vunpack.c.h.b16 %v116
  %v535 = vunpack.c.l.b16 %v117
  %v536 = vunpack.c.h.b16 %v117
  %v537 = vunpack.c.l.b16 %v118
  %v538 = vunpack.c.h.b16 %v118
  %v539 = vunpack.c.l.b16 %v119
  %v540 = vunpack.c.h.b16 %v119
  %v541 = vunpack.c.l.b16 %v120
  %v542 = vunpack.c.h.b16 %v120
  %v543 = vunpack.c.l.b16 %v121
  %v544 = vunpack.c.h.b16 %v121
  %v545 = vunpack.c.l.b16 %v122
  %v546 = vunpack.c.h.b16 %v122
  %v547 = vunpack.c.l.b16 %v123
  %v548 = vunpack.c.h.b16 %v123
  %v549 = vunpack.c.l.b16 %v124
  %v550 = vunpack.c.h.b16 %v124
  %v551 = vunpack.c.l.b16 %v125
  %v552 = vunpack.c.h.b16 %v125
  %v553 = vunpack.c.l.b16 %v126
  %v554 = vunpack.c.h.b16 %v126
  %v555 = vunpack.c.l.b16 %v127
  %v556 = vunpack.c.h.b16 %v127
  %v557 = vunpack.c.l.b16 %v128
  %v558 = vunpack.c.h.b16 %v128
  %v559 = vunpack.c.l.b16 %v129
  %v560 = vunpack.c.h.b16 %v129
  %v561 = vunpack.c.l.b16 %v130
  %v562 = vunpack.c.h.b16 %v130
  %v563 = vunpack.c.l.b16 %v131
  %v564 = vunpack.c.h.b16 %v131
  %v565 = vunpack.c.l.b16 %v132
  %v566 = vunpack.c.h.b16 %v132
  %v567 = vunpack.c.l.b16 %v133
  %v568 = vunpack.c.h.b16 %v133
  %v569 = vunpack.c.l.b16 %v134
  %v570 = vunpack.c.h.b16 %v134
  %v571 = vunpack.c.l.b16 %v135
  %v572 = vunpack.c.h.b16 %v135
  %v573 = vunpack.c.l.b16 %v136
  %v574 = vunpack.c.h.b16 %v136
  %v575 = vunpack.c.l.b16 %v137
  %v576 = vunpack.c.h.b16 %v137
  %v577 = vunpack.c.l.b16 %v138
  %v578 = vunpack.c.h.b16 %v138
  %v579 = vunpack.c.l.b16 %v139
  %v580 = vunpack.c.h.b16 %v139
  %v581 = vunpack.c.l.b16 %v140
  %v582 = vunpack.c.h.b16 %v140
  %v583 = vunpack.c.l.b16 %v141
  %v584 = vunpack.c.h.b16 %v141
  %v585 = vunpack.c.l.b16 %v142
  %v586 = vunpack.c.h.b16 %v142
  %v587 = vunpack.c.l.b16 %v143
  %v588 = vunpack.c.h.b16 %v143
  %v589 = vunpack.c.l.b16 %v144
  %v590 = vunpack.c.h.b16 %v144
  %v591 = vunpack.c.l.b16 %v145
  %v592 = vunpack.c.h.b16 %v145
  %v593 = vunpack.c.l.b16 %v146
  %v594 = vunpack.c.h.b16 %v146
  %v595 = vunpack.c.l.b16 %v147
  %v596 = vunpack.c.h.b16 %v147
  %v597 = vunpack.c.l.b16 %v148
  %v598 = vunpack.c.h.b16 %v148
  %v599 = vunpack.c.l.b16 %v149
  %v600 = vunpack.c.h.b16 %v149
  %v601 = vunpack.c.l.b16 %v150
  %v602 = vunpack.c.h.b16 %v150
  %v603 = vunpack.c.l.b16 %v151
  %v604 = vunpack.c.h.b16 %v151
  %v605 = vunpack.c.l.b16 %v152
  %v606 = vunpack.c.h.b16 %v152
  %v607 = vunpack.c.l.b16 %v153
  %v608 = vunpack.c.h.b16 %v153
  %v609 = vunpack.c.l.b16 %v154
  %v610 = vunpack.c.h.b16 %v154
  %v611 = vunpack.c.l.b16 %v155
  %v612 = vunpack.c.h.b16 %v155
  %v613 = vunpack.c.l.b16 %v156
  %v614 = vunpack.c.h.b16 %v156
  %v615 = vunpack.c.l.b16 %v157
  %v616 = vunpack.c.h.b16 %v157
  %v617 = vunpack.c.l.b16 %v158
  %v618 = vunpack.c.h.b16 %v158
  %v619 = vunpack.c.l.b16 %v159
  %v620 = vunpack.c.h.b16 %v159
  %v621 = vunpack.c.l.b16 %v160
  %v622 = vunpack.c.h.b16 %v160
  %v623 = vunpack.c.l.b16 %v161
  %v624 = vunpack.c.h.b16 %v161
  %v625 = vunpack.c.l.b16 %v162
  %v626 = vunpack.c.h.b16 %v162
  %v627 = vunpack.c.l.b16 %v163
  %v628 = vunpack.c.h.b16 %v163
  %v629 = vunpack.c.l.b16 %v164
  %v630 = vunpack.c.h.b16 %v164
  %v631 = vunpack.c.l.b16 %v165
  %v632 = vunpack.c.h.b16 %v165
  %v633 = vunpack.c.l.b16 %v166
  %v634 = vunpack.c.h.b16 %v166
  %v635 = vunpack.c.l.b16 %v167
  %v636 = vunpack.c.h.b16 %v167
  %v637 = vunpack.c.l.b16 %v168
  %v638 = vunpack.c.h.b16 %v168
  %v639 = vunpack.c.l.b16 %v169
  %v640 = vunpack.c.h.b16 %v169
  %v641 = vunpack.c.l.b16 %v170
  %v642 = vunpack.c.h.b16 %v170
  %v643 = vunpack.c.l.b16 %v171
  %v644 = vunpack.c.h.b16 %v171
  %v645 = vunpack.c.l.b16 %v172
  %v646 = vunpack.c.h.b16 %v172
  %v647 = vunpack.c.l.b16 %v173
  %v648 = vunpack.c.h.b16 %v173
  %v649 = vunpack.c.l.b16 %v174
  %v650 = vunpack.c.h.b16 %v174
  %v651 = vunpack.c.l.b16 %v175
  %v652 = vunpack.c.h.b16 %v175
  %v653 = vunpack.c.l.b16 %v176
  %v654 = vunpack.c.h.b16 %v176
  %v655 = vunpack.c.l.b16 %v177
  %v656 = vunpack.c.h.b16 %v177
  %v657 = vunpack.c.l.b16 %v178
  %v658 = vunpack.c.h.b16 %v178
  %v659 = vpack.c.b16 %v407, %v403
  %v660 = vpack.c.b16 %v408, %v404
  %v661 = vpack.c.b16 %v409, %v405
  %v662 = vpack.c.b16 %v410, %v406
  %v663 = vpack.c.b16 %v415, %v411
  %v664 = vpack.c.b16 %v416, %v412
  %v665 = vpack.c.b16 %v417, %v413
  %v666 = vpack.c.b16 %v418, %v414
  %v667 = vpack.c.b16 %v423, %v419
  %v668 = vpack.c.b16 %v424, %v420
  %v669 = vpack.c.b16 %v425, %v421
  %v670 = vpack.c.b16 %v426, %v422
  %v671 = vpack.c.b16 %v431, %v427
  %v672 = vpack.c.b16 %v432, %v428
  %v673 = vpack.c.b16 %v433, %v429
  %v674 = vpack.c.b16 %v434, %v430
  %v675 = vpack.c.b16 %v439, %v435
  %v676 = vpack.c.b16 %v440, %v436
  %v677 = vpack.c.b16 %v441, %v437
  %v678 = vpack.c.b16 %v442, %v438
  %v679 = vpack.c.b16 %v447, %v443
  %v680 = vpack.c.b16 %v448, %v444
  %v681 = vpack.c.b16 %v449, %v445
  %v682 = vpack.c.b16 %v450, %v446
  %v683 = vpack.c.b16 %v455, %v451
  %v684 = vpack.c.b16 %v456, %v452
  %v685 = vpack.c.b16 %v457, %v453
  %v686 = vpack.c.b16 %v458, %v454
  %v687 = vpack.c.b16 %v463, %v459
  %v688 = vpack.c.b16 %v464, %v460
  %v689 = vpack.c.b16 %v465, %v461
  %v690 = vpack.c.b16 %v466, %v462
  %v691 = vpack.c.b16 %v471, %v467
  %v692 = vpack.c.b16 %v472, %v468
  %v693 = vpack.c.b16 %v473, %v469
  %v694 = vpack.c.b16 %v474, %v470
  %v695 = vpack.c.b16 %v479, %v475
  %v696 = vpack.c.b16 %v480, %v476
  %v697 = vpack.c.b16 %v481, %v477
  %v698 = vpack.c.b16 %v482, %v478
  %v699 = vpack.c.b16 %v487, %v483
  %v700 = vpack.c.b16 %v488, %v484
  %v701 = vpack.c.b16 %v489, %v485
  %v702 = vpack.c.b16 %v490, %v486
  %v703 = vpack.c.b16 %v495, %v491
  %v704 = vpack.c.b16 %v496, %v492
  %v705 = vpack.c.b16 %v497, %v493
  %v706 = vpack.c.b16 %v498, %v494
  %v707 = vpack.c.b16 %v503, %v499
  %v708 = vpack.c.b16 %v504, %v500
  %v709 = vpack.c.b16 %v505, %v501
  %v710 = vpack.c.b16 %v506, %v502
  %v711 = vpack.c.b16 %v511, %v507
  %v712 = vpack.c.b16 %v512, %v508
  %v713 = vpack.c.b16 %v513, %v509
  %v714 = vpack.c.b16 %v514, %v510
  %v715 = vpack.c.b16 %v519, %v515
  %v716 = vpack.c.b16 %v520, %v516
  %v717 = vpack.c.b16 %v521, %v517
  %v718 = vpack.c.b16 %v522, %v518
  %v719 = vpack.c.b16 %v527, %v523
  %v720 = vpack.c.b16 %v528, %v524
  %v721 = vpack.c.b16 %v529, %v525
  %v722 = vpack.c.b16 %v530, %v526
  %v723 = vpack.c.b16 %v535, %v531
  %v724 = vpack.c.b16 %v536, %v532
  %v725 = vpack.c.b16 %v537, %v533
  %v726 = vpack.c.b16 %v538, %v534
  %v727 = vpack.c.b16 %v543, %v539
  %v728 = vpack.c.b16 %v544, %v540
  %v729 = vpack.c.b16 %v545, %v541
  %v730 = vpack.c.b16 %v546, %v542
  %v731 = vpack.c.b16 %v551, %v547
  %v732 = vpack.c.b16 %v552, %v548
  %v733 = vpack.c.b16 %v553, %v549
  %v734 = vpack.c.b16 %v554, %v550
  %v735 = vpack.c.b16 %v559, %v555
  %v736 = vpack.c.b16 %v560, %v556
  %v737 = vpack.c.b16 %v561, %v557
  %v738 = vpack.c.b16 %v562, %v558
  %v739 = vpack.c.b16 %v567, %v563
  %v740 = vpack.c.b16 %v568, %v564
  %v741 = vpack.c.b16 %v569, %v565
  %v742 = vpack.c.b16 %v570, %v566
  %v743 = vpack.c.b16 %v575, %v571
  %v744 = vpack.c.b16 %v576, %v572
  %v745 = vpack.c.b16 %v577, %v573
  %v746 = vpack.c.b16 %v578, %v574
  %v747 = vpack.c.b16 %v583, %v579
  %v748 = vpack.c.b16 %v584, %v580
  %v749 = vpack.c.b16 %v585, %v581
  %v750 = vpack.c.b16 %v586, %v582
  %v751 = vpack.c.b16 %v591, %v587
  %v752 = vpack.c.b16 %v592, %v588
  %v753 = vpack.c.b16 %v593, %v589
  %v754 = vpack.c.b16 %v594, %v590
  %v755 = vpack.c.b16 %v599, %v595
  %v756 = vpack.c.b16 %v600, %v596
  %v757 = vpack.c.b16 %v601, %v597
  %v758 = vpack.c.b16 %v602, %v598
  %v759 = vpack.c.b16 %v607, %v603
  %v760 = vpack.c.b16 %v608, %v604
  %v761 = vpack.c.b16 %v609, %v605
  %v762 = vpack.c.b16 %v610, %v606
  %v763 = vpack.c.b16 %v615, %v611
  %v764 = vpack.c.b16 %v616, %v612
  %v765 = vpack.c.b16 %v617, %v613
  %v766 = vpack.c.b16 %v618, %v614
  %v767 = vpack.c.b16 %v623, %v619
  %v768 = vpack.c.b16 %v624, %v620
  %v769 = vpack.c.b16 %v625, %v621
  %v770 = vpack.c.b16 %v626, %v622
  %v771 = vpack.c.b16 %v631, %v627
  %v772 = vpack.c.b16 %v632, %v628
  %v773 = vpack.c.b16 %v633, %v629
  %v774 = vpack.c.b16 %v634, %v630
  %v775 = vpack.c.b16 %v639, %v635
  %v776 = vpack.c.b16 %v640, %v636
  %v777 = vpack.c.b16 %v641, %v637
  %v778 = vpack.c.b16 %v642, %v638
  %v779 = vpack.c.b16 %v647, %v643
  %v780 = vpack.c.b16 %v648, %v644
  %v781 = vpack.c.b16 %v649, %v645
  %v782 = vpack.c.b16 %v650, %v646
  %v783 = vpack.c.b16 %v655, %v651
  %v784 = vpack.c.b16 %v656, %v652
  %v785 = vpack.c.b16 %v657, %v653
  %v786 = vpack.c.b16 %v658, %v654
  %915 = vmatprep.subr.bf16.mxu0 0
  %916 = vmatpush1.bf16.msra.mxu0 %v250
  %917 = vmatprep.subr.bf16.mxu0 0
  %918 = vmatpush1.bf16.msra.mxu0 %v249
  %919 = vmatprep.subr.bf16.mxu0 0
  %920 = vmatpush1.bf16.msra.mxu0 %v248
  %921 = vmatprep.subr.bf16.mxu0 0
  %922 = vmatpush1.bf16.msra.mxu0 %v247
  %923 = vmatprep.subr.bf16.mxu0 0
  %924 = vmatpush1.bf16.msra.mxu0 %v246
  %925 = vmatprep.subr.bf16.mxu0 0
  %926 = vmatpush1.bf16.msra.mxu0 %v245
  %927 = vmatprep.subr.bf16.mxu0 0
  %928 = vmatpush1.bf16.msra.mxu0 %v244
  %929 = vmatprep.subr.bf16.mxu0 0
  %930 = vmatpush1.bf16.msra.mxu0 %v243
  %931 = vmatprep.subr.bf16.mxu0 0
  %932 = vmatpush2.bf16.msra.mxu0 %v258
  %933 = vmatprep.subr.bf16.mxu0 0
  %934 = vmatpush2.bf16.msra.mxu0 %v257
  %935 = vmatprep.subr.bf16.mxu0 0
  %936 = vmatpush2.bf16.msra.mxu0 %v256
  %937 = vmatprep.subr.bf16.mxu0 0
  %938 = vmatpush2.bf16.msra.mxu0 %v255
  %939 = vmatprep.subr.bf16.mxu0 0
  %940 = vmatpush2.bf16.msra.mxu0 %v254
  %941 = vmatprep.subr.bf16.mxu0 0
  %942 = vmatpush2.bf16.msra.mxu0 %v253
  %943 = vmatprep.subr.bf16.mxu0 0
  %944 = vmatpush2.bf16.msra.mxu0 %v252
  %945 = vmatprep.subr.bf16.mxu0 0
  %946 = vmatpush2.bf16.msra.mxu0 %v251
  %947 = vmatprep.mubr.bf16.mxu0 %v660
  %948 = vmatmul.mubr.bf16.gmra.mxu0 %v659
  %v949 = vpop.f32.mrf.mxu0
  %v950 = vadd.f32 %v179, %v949
  %v951 = vpop.f32.mrf.mxu0
  %v952 = vpop.f32.mrf.mxu0
  %v953 = vadd.f32 %v180, %v952
  %v954 = vpop.f32.mrf.mxu0
  %955 = vmatprep.mubr.bf16.mxu0 %v664
  %956 = vmatmul.mubr.bf16.gmra.mxu0 %v663
  %v957 = vpop.f32.mrf.mxu0
  %v958 = vadd.f32 %v181, %v957
  %v959 = vpop.f32.mrf.mxu0
  %v960 = vpop.f32.mrf.mxu0
  %v961 = vadd.f32 %v182, %v960
  %v962 = vpop.f32.mrf.mxu0
  %963 = vmatprep.mubr.bf16.mxu0 %v668
  %964 = vmatmul.mubr.bf16.gmra.mxu0 %v667
  %v965 = vpop.f32.mrf.mxu0
  %v966 = vadd.f32 %v183, %v965
  %v967 = vpop.f32.mrf.mxu0
  %v968 = vpop.f32.mrf.mxu0
  %v969 = vadd.f32 %v184, %v968
  %v970 = vpop.f32.mrf.mxu0
  %971 = vmatprep.mubr.bf16.mxu0 %v672
  %972 = vmatmul.mubr.bf16.gmra.mxu0 %v671
  %v973 = vpop.f32.mrf.mxu0
  %v974 = vadd.f32 %v185, %v973
  %v975 = vpop.f32.mrf.mxu0
  %v976 = vpop.f32.mrf.mxu0
  %v977 = vadd.f32 %v186, %v976
  %v978 = vpop.f32.mrf.mxu0
  %979 = vmatprep.mubr.bf16.mxu0 %v676
  %980 = vmatmul.mubr.bf16.gmra.mxu0 %v675
  %v981 = vpop.f32.mrf.mxu0
  %v982 = vadd.f32 %v187, %v981
  %v983 = vpop.f32.mrf.mxu0
  %v984 = vpop.f32.mrf.mxu0
  %v985 = vadd.f32 %v188, %v984
  %v986 = vpop.f32.mrf.mxu0
  %987 = vmatprep.mubr.bf16.mxu0 %v680
  %988 = vmatmul.mubr.bf16.gmra.mxu0 %v679
  %v989 = vpop.f32.mrf.mxu0
  %v990 = vadd.f32 %v189, %v989
  %v991 = vpop.f32.mrf.mxu0
  %v992 = vpop.f32.mrf.mxu0
  %v993 = vadd.f32 %v190, %v992
  %v994 = vpop.f32.mrf.mxu0
  %995 = vmatprep.mubr.bf16.mxu0 %v684
  %996 = vmatmul.mubr.bf16.gmra.mxu0 %v683
  %v997 = vpop.f32.mrf.mxu0
  %v998 = vadd.f32 %v191, %v997
  %v999 = vpop.f32.mrf.mxu0
  %v1000 = vpop.f32.mrf.mxu0
  %v1001 = vadd.f32 %v192, %v1000
  %v1002 = vpop.f32.mrf.mxu0
  %1003 = vmatprep.mubr.bf16.mxu0 %v688
  %1004 = vmatmul.mubr.bf16.gmra.mxu0 %v687
  %v1005 = vpop.f32.mrf.mxu0
  %v1006 = vadd.f32 %v193, %v1005
  %v1007 = vpop.f32.mrf.mxu0
  %v1008 = vpop.f32.mrf.mxu0
  %v1009 = vadd.f32 %v194, %v1008
  %v1010 = vpop.f32.mrf.mxu0
  %1011 = vmatprep.mubr.bf16.mxu0 %v692
  %1012 = vmatmul.mubr.bf16.gmra.mxu0 %v691
  %v1013 = vpop.f32.mrf.mxu0
  %v1014 = vadd.f32 %v195, %v1013
  %v1015 = vpop.f32.mrf.mxu0
  %v1016 = vpop.f32.mrf.mxu0
  %v1017 = vadd.f32 %v196, %v1016
  %v1018 = vpop.f32.mrf.mxu0
  %1019 = vmatprep.mubr.bf16.mxu0 %v696
  %1020 = vmatmul.mubr.bf16.gmra.mxu0 %v695
  %v1021 = vpop.f32.mrf.mxu0
  %v1022 = vadd.f32 %v197, %v1021
  %v1023 = vpop.f32.mrf.mxu0
  %v1024 = vpop.f32.mrf.mxu0
  %v1025 = vadd.f32 %v198, %v1024
  %v1026 = vpop.f32.mrf.mxu0
  %1027 = vmatprep.mubr.bf16.mxu0 %v700
  %1028 = vmatmul.mubr.bf16.gmra.mxu0 %v699
  %v1029 = vpop.f32.mrf.mxu0
  %v1030 = vadd.f32 %v199, %v1029
  %v1031 = vpop.f32.mrf.mxu0
  %v1032 = vpop.f32.mrf.mxu0
  %v1033 = vadd.f32 %v200, %v1032
  %v1034 = vpop.f32.mrf.mxu0
  %1035 = vmatprep.mubr.bf16.mxu0 %v704
  %1036 = vmatmul.mubr.bf16.gmra.mxu0 %v703
  %v1037 = vpop.f32.mrf.mxu0
  %v1038 = vadd.f32 %v201, %v1037
  %v1039 = vpop.f32.mrf.mxu0
  %v1040 = vpop.f32.mrf.mxu0
  %v1041 = vadd.f32 %v202, %v1040
  %v1042 = vpop.f32.mrf.mxu0
  %1043 = vmatprep.mubr.bf16.mxu0 %v708
  %1044 = vmatmul.mubr.bf16.gmra.mxu0 %v707
  %v1045 = vpop.f32.mrf.mxu0
  %v1046 = vadd.f32 %v203, %v1045
  %v1047 = vpop.f32.mrf.mxu0
  %v1048 = vpop.f32.mrf.mxu0
  %v1049 = vadd.f32 %v204, %v1048
  %v1050 = vpop.f32.mrf.mxu0
  %1051 = vmatprep.mubr.bf16.mxu0 %v712
  %1052 = vmatmul.mubr.bf16.gmra.mxu0 %v711
  %v1053 = vpop.f32.mrf.mxu0
  %v1054 = vadd.f32 %v205, %v1053
  %v1055 = vpop.f32.mrf.mxu0
  %v1056 = vpop.f32.mrf.mxu0
  %v1057 = vadd.f32 %v206, %v1056
  %v1058 = vpop.f32.mrf.mxu0
  %1059 = vmatprep.mubr.bf16.mxu0 %v716
  %1060 = vmatmul.mubr.bf16.gmra.mxu0 %v715
  %v1061 = vpop.f32.mrf.mxu0
  %v1062 = vadd.f32 %v207, %v1061
  %v1063 = vpop.f32.mrf.mxu0
  %v1064 = vpop.f32.mrf.mxu0
  %v1065 = vadd.f32 %v208, %v1064
  %v1066 = vpop.f32.mrf.mxu0
  %1067 = vmatprep.mubr.bf16.mxu0 %v720
  %1068 = vmatmul.mubr.bf16.gmra.mxu0 %v719
  %v1069 = vpop.f32.mrf.mxu0
  %v1070 = vadd.f32 %v209, %v1069
  %v1071 = vpop.f32.mrf.mxu0
  %v1072 = vpop.f32.mrf.mxu0
  %v1073 = vadd.f32 %v210, %v1072
  %v1074 = vpop.f32.mrf.mxu0
  %1075 = vmatprep.mubr.bf16.mxu0 %v724
  %1076 = vmatmul.mubr.bf16.gmra.mxu0 %v723
  %v1077 = vpop.f32.mrf.mxu0
  %v1078 = vadd.f32 %v211, %v1077
  %v1079 = vpop.f32.mrf.mxu0
  %v1080 = vpop.f32.mrf.mxu0
  %v1081 = vadd.f32 %v212, %v1080
  %v1082 = vpop.f32.mrf.mxu0
  %1083 = vmatprep.mubr.bf16.mxu0 %v728
  %1084 = vmatmul.mubr.bf16.gmra.mxu0 %v727
  %v1085 = vpop.f32.mrf.mxu0
  %v1086 = vadd.f32 %v213, %v1085
  %v1087 = vpop.f32.mrf.mxu0
  %v1088 = vpop.f32.mrf.mxu0
  %v1089 = vadd.f32 %v214, %v1088
  %v1090 = vpop.f32.mrf.mxu0
  %1091 = vmatprep.mubr.bf16.mxu0 %v732
  %1092 = vmatmul.mubr.bf16.gmra.mxu0 %v731
  %v1093 = vpop.f32.mrf.mxu0
  %v1094 = vadd.f32 %v215, %v1093
  %v1095 = vpop.f32.mrf.mxu0
  %v1096 = vpop.f32.mrf.mxu0
  %v1097 = vadd.f32 %v216, %v1096
  %v1098 = vpop.f32.mrf.mxu0
  %1099 = vmatprep.mubr.bf16.mxu0 %v736
  %1100 = vmatmul.mubr.bf16.gmra.mxu0 %v735
  %v1101 = vpop.f32.mrf.mxu0
  %v1102 = vadd.f32 %v217, %v1101
  %v1103 = vpop.f32.mrf.mxu0
  %v1104 = vpop.f32.mrf.mxu0
  %v1105 = vadd.f32 %v218, %v1104
  %v1106 = vpop.f32.mrf.mxu0
  %1107 = vmatprep.mubr.bf16.mxu0 %v740
  %1108 = vmatmul.mubr.bf16.gmra.mxu0 %v739
  %v1109 = vpop.f32.mrf.mxu0
  %v1110 = vadd.f32 %v219, %v1109
  %v1111 = vpop.f32.mrf.mxu0
  %v1112 = vpop.f32.mrf.mxu0
  %v1113 = vadd.f32 %v220, %v1112
  %v1114 = vpop.f32.mrf.mxu0
  %1115 = vmatprep.mubr.bf16.mxu0 %v744
  %1116 = vmatmul.mubr.bf16.gmra.mxu0 %v743
  %v1117 = vpop.f32.mrf.mxu0
  %v1118 = vadd.f32 %v221, %v1117
  %v1119 = vpop.f32.mrf.mxu0
  %v1120 = vpop.f32.mrf.mxu0
  %v1121 = vadd.f32 %v222, %v1120
  %v1122 = vpop.f32.mrf.mxu0
  %1123 = vmatprep.mubr.bf16.mxu0 %v748
  %1124 = vmatmul.mubr.bf16.gmra.mxu0 %v747
  %v1125 = vpop.f32.mrf.mxu0
  %v1126 = vadd.f32 %v223, %v1125
  %v1127 = vpop.f32.mrf.mxu0
  %v1128 = vpop.f32.mrf.mxu0
  %v1129 = vadd.f32 %v224, %v1128
  %v1130 = vpop.f32.mrf.mxu0
  %1131 = vmatprep.mubr.bf16.mxu0 %v752
  %1132 = vmatmul.mubr.bf16.gmra.mxu0 %v751
  %v1133 = vpop.f32.mrf.mxu0
  %v1134 = vadd.f32 %v225, %v1133
  %v1135 = vpop.f32.mrf.mxu0
  %v1136 = vpop.f32.mrf.mxu0
  %v1137 = vadd.f32 %v226, %v1136
  %v1138 = vpop.f32.mrf.mxu0
  %1139 = vmatprep.mubr.bf16.mxu0 %v756
  %1140 = vmatmul.mubr.bf16.gmra.mxu0 %v755
  %v1141 = vpop.f32.mrf.mxu0
  %v1142 = vadd.f32 %v227, %v1141
  %v1143 = vpop.f32.mrf.mxu0
  %v1144 = vpop.f32.mrf.mxu0
  %v1145 = vadd.f32 %v228, %v1144
  %v1146 = vpop.f32.mrf.mxu0
  %1147 = vmatprep.mubr.bf16.mxu0 %v760
  %1148 = vmatmul.mubr.bf16.gmra.mxu0 %v759
  %v1149 = vpop.f32.mrf.mxu0
  %v1150 = vadd.f32 %v229, %v1149
  %v1151 = vpop.f32.mrf.mxu0
  %v1152 = vpop.f32.mrf.mxu0
  %v1153 = vadd.f32 %v230, %v1152
  %v1154 = vpop.f32.mrf.mxu0
  %1155 = vmatprep.mubr.bf16.mxu0 %v764
  %1156 = vmatmul.mubr.bf16.gmra.mxu0 %v763
  %v1157 = vpop.f32.mrf.mxu0
  %v1158 = vadd.f32 %v231, %v1157
  %v1159 = vpop.f32.mrf.mxu0
  %v1160 = vpop.f32.mrf.mxu0
  %v1161 = vadd.f32 %v232, %v1160
  %v1162 = vpop.f32.mrf.mxu0
  %1163 = vmatprep.mubr.bf16.mxu0 %v768
  %1164 = vmatmul.mubr.bf16.gmra.mxu0 %v767
  %v1165 = vpop.f32.mrf.mxu0
  %v1166 = vadd.f32 %v233, %v1165
  %v1167 = vpop.f32.mrf.mxu0
  %v1168 = vpop.f32.mrf.mxu0
  %v1169 = vadd.f32 %v234, %v1168
  %v1170 = vpop.f32.mrf.mxu0
  %1171 = vmatprep.mubr.bf16.mxu0 %v772
  %1172 = vmatmul.mubr.bf16.gmra.mxu0 %v771
  %v1173 = vpop.f32.mrf.mxu0
  %v1174 = vadd.f32 %v235, %v1173
  %v1175 = vpop.f32.mrf.mxu0
  %v1176 = vpop.f32.mrf.mxu0
  %v1177 = vadd.f32 %v236, %v1176
  %v1178 = vpop.f32.mrf.mxu0
  %1179 = vmatprep.mubr.bf16.mxu0 %v776
  %1180 = vmatmul.mubr.bf16.gmra.mxu0 %v775
  %v1181 = vpop.f32.mrf.mxu0
  %v1182 = vadd.f32 %v237, %v1181
  %v1183 = vpop.f32.mrf.mxu0
  %v1184 = vpop.f32.mrf.mxu0
  %v1185 = vadd.f32 %v238, %v1184
  %v1186 = vpop.f32.mrf.mxu0
  %1187 = vmatprep.mubr.bf16.mxu0 %v780
  %1188 = vmatmul.mubr.bf16.gmra.mxu0 %v779
  %v1189 = vpop.f32.mrf.mxu0
  %v1190 = vadd.f32 %v239, %v1189
  %v1191 = vpop.f32.mrf.mxu0
  %v1192 = vpop.f32.mrf.mxu0
  %v1193 = vadd.f32 %v240, %v1192
  %v1194 = vpop.f32.mrf.mxu0
  %1195 = vmatprep.mubr.bf16.mxu0 %v784
  %1196 = vmatmul.mubr.bf16.gmra.mxu0 %v783
  %v1197 = vpop.f32.mrf.mxu0
  %v1198 = vadd.f32 %v241, %v1197
  %v1199 = vpop.f32.mrf.mxu0
  %v1200 = vpop.f32.mrf.mxu0
  %v1201 = vadd.f32 %v242, %v1200
  %v1202 = vpop.f32.mrf.mxu0
  %1203 = vdwg.mxu0
  %1204 = vmatprep.subr.bf16.mxu0 0
  %1205 = vmatpush1.bf16.msra.mxu0 %v266
  %1206 = vmatprep.subr.bf16.mxu0 0
  %1207 = vmatpush1.bf16.msra.mxu0 %v265
  %1208 = vmatprep.subr.bf16.mxu0 0
  %1209 = vmatpush1.bf16.msra.mxu0 %v264
  %1210 = vmatprep.subr.bf16.mxu0 0
  %1211 = vmatpush1.bf16.msra.mxu0 %v263
  %1212 = vmatprep.subr.bf16.mxu0 0
  %1213 = vmatpush1.bf16.msra.mxu0 %v262
  %1214 = vmatprep.subr.bf16.mxu0 0
  %1215 = vmatpush1.bf16.msra.mxu0 %v261
  %1216 = vmatprep.subr.bf16.mxu0 0
  %1217 = vmatpush1.bf16.msra.mxu0 %v260
  %1218 = vmatprep.subr.bf16.mxu0 0
  %1219 = vmatpush1.bf16.msra.mxu0 %v259
  %1220 = vmatprep.subr.bf16.mxu0 0
  %1221 = vmatpush2.bf16.msra.mxu0 %v274
  %1222 = vmatprep.subr.bf16.mxu0 0
  %1223 = vmatpush2.bf16.msra.mxu0 %v273
  %1224 = vmatprep.subr.bf16.mxu0 0
  %1225 = vmatpush2.bf16.msra.mxu0 %v272
  %1226 = vmatprep.subr.bf16.mxu0 0
  %1227 = vmatpush2.bf16.msra.mxu0 %v271
  %1228 = vmatprep.subr.bf16.mxu0 0
  %1229 = vmatpush2.bf16.msra.mxu0 %v270
  %1230 = vmatprep.subr.bf16.mxu0 0
  %1231 = vmatpush2.bf16.msra.mxu0 %v269
  %1232 = vmatprep.subr.bf16.mxu0 0
  %1233 = vmatpush2.bf16.msra.mxu0 %v268
  %1234 = vmatprep.subr.bf16.mxu0 0
  %1235 = vmatpush2.bf16.msra.mxu0 %v267
  %1236 = vmatprep.mubr.bf16.mxu0 %v662
  %1237 = vmatmul.mubr.bf16.gmra.mxu0 %v661
  %v1238 = vpop.f32.mrf.mxu0
  %v1239 = vadd.f32 %v950, %v1238
  %v1240 = vpop.f32.mrf.mxu0
  %v1241 = vpop.f32.mrf.mxu0
  %v1242 = vadd.f32 %v953, %v1241
  %v1243 = vpop.f32.mrf.mxu0
  %1244 = vmatprep.mubr.bf16.mxu0 %v666
  %1245 = vmatmul.mubr.bf16.gmra.mxu0 %v665
  %v1246 = vpop.f32.mrf.mxu0
  %v1247 = vadd.f32 %v958, %v1246
  %v1248 = vpop.f32.mrf.mxu0
  %v1249 = vpop.f32.mrf.mxu0
  %v1250 = vadd.f32 %v961, %v1249
  %v1251 = vpop.f32.mrf.mxu0
  %1252 = vmatprep.mubr.bf16.mxu0 %v670
  %1253 = vmatmul.mubr.bf16.gmra.mxu0 %v669
  %v1254 = vpop.f32.mrf.mxu0
  %v1255 = vadd.f32 %v966, %v1254
  %v1256 = vpop.f32.mrf.mxu0
  %v1257 = vpop.f32.mrf.mxu0
  %v1258 = vadd.f32 %v969, %v1257
  %v1259 = vpop.f32.mrf.mxu0
  %1260 = vmatprep.mubr.bf16.mxu0 %v674
  %1261 = vmatmul.mubr.bf16.gmra.mxu0 %v673
  %v1262 = vpop.f32.mrf.mxu0
  %v1263 = vadd.f32 %v974, %v1262
  %v1264 = vpop.f32.mrf.mxu0
  %v1265 = vpop.f32.mrf.mxu0
  %v1266 = vadd.f32 %v977, %v1265
  %v1267 = vpop.f32.mrf.mxu0
  %1268 = vmatprep.mubr.bf16.mxu0 %v678
  %1269 = vmatmul.mubr.bf16.gmra.mxu0 %v677
  %v1270 = vpop.f32.mrf.mxu0
  %v1271 = vadd.f32 %v982, %v1270
  %v1272 = vpop.f32.mrf.mxu0
  %v1273 = vpop.f32.mrf.mxu0
  %v1274 = vadd.f32 %v985, %v1273
  %v1275 = vpop.f32.mrf.mxu0
  %1276 = vmatprep.mubr.bf16.mxu0 %v682
  %1277 = vmatmul.mubr.bf16.gmra.mxu0 %v681
  %v1278 = vpop.f32.mrf.mxu0
  %v1279 = vadd.f32 %v990, %v1278
  %v1280 = vpop.f32.mrf.mxu0
  %v1281 = vpop.f32.mrf.mxu0
  %v1282 = vadd.f32 %v993, %v1281
  %v1283 = vpop.f32.mrf.mxu0
  %1284 = vmatprep.mubr.bf16.mxu0 %v686
  %1285 = vmatmul.mubr.bf16.gmra.mxu0 %v685
  %v1286 = vpop.f32.mrf.mxu0
  %v1287 = vadd.f32 %v998, %v1286
  %v1288 = vpop.f32.mrf.mxu0
  %v1289 = vpop.f32.mrf.mxu0
  %v1290 = vadd.f32 %v1001, %v1289
  %v1291 = vpop.f32.mrf.mxu0
  %1292 = vmatprep.mubr.bf16.mxu0 %v690
  %1293 = vmatmul.mubr.bf16.gmra.mxu0 %v689
  %v1294 = vpop.f32.mrf.mxu0
  %v1295 = vadd.f32 %v1006, %v1294
  %v1296 = vpop.f32.mrf.mxu0
  %v1297 = vpop.f32.mrf.mxu0
  %v1298 = vadd.f32 %v1009, %v1297
  %v1299 = vpop.f32.mrf.mxu0
  %1300 = vmatprep.mubr.bf16.mxu0 %v694
  %1301 = vmatmul.mubr.bf16.gmra.mxu0 %v693
  %v1302 = vpop.f32.mrf.mxu0
  %v1303 = vadd.f32 %v1014, %v1302
  %v1304 = vpop.f32.mrf.mxu0
  %v1305 = vpop.f32.mrf.mxu0
  %v1306 = vadd.f32 %v1017, %v1305
  %v1307 = vpop.f32.mrf.mxu0
  %1308 = vmatprep.mubr.bf16.mxu0 %v698
  %1309 = vmatmul.mubr.bf16.gmra.mxu0 %v697
  %v1310 = vpop.f32.mrf.mxu0
  %v1311 = vadd.f32 %v1022, %v1310
  %v1312 = vpop.f32.mrf.mxu0
  %v1313 = vpop.f32.mrf.mxu0
  %v1314 = vadd.f32 %v1025, %v1313
  %v1315 = vpop.f32.mrf.mxu0
  %1316 = vmatprep.mubr.bf16.mxu0 %v702
  %1317 = vmatmul.mubr.bf16.gmra.mxu0 %v701
  %v1318 = vpop.f32.mrf.mxu0
  %v1319 = vadd.f32 %v1030, %v1318
  %v1320 = vpop.f32.mrf.mxu0
  %v1321 = vpop.f32.mrf.mxu0
  %v1322 = vadd.f32 %v1033, %v1321
  %v1323 = vpop.f32.mrf.mxu0
  %1324 = vmatprep.mubr.bf16.mxu0 %v706
  %1325 = vmatmul.mubr.bf16.gmra.mxu0 %v705
  %v1326 = vpop.f32.mrf.mxu0
  %v1327 = vadd.f32 %v1038, %v1326
  %v1328 = vpop.f32.mrf.mxu0
  %v1329 = vpop.f32.mrf.mxu0
  %v1330 = vadd.f32 %v1041, %v1329
  %v1331 = vpop.f32.mrf.mxu0
  %1332 = vmatprep.mubr.bf16.mxu0 %v710
  %1333 = vmatmul.mubr.bf16.gmra.mxu0 %v709
  %v1334 = vpop.f32.mrf.mxu0
  %v1335 = vadd.f32 %v1046, %v1334
  %v1336 = vpop.f32.mrf.mxu0
  %v1337 = vpop.f32.mrf.mxu0
  %v1338 = vadd.f32 %v1049, %v1337
  %v1339 = vpop.f32.mrf.mxu0
  %1340 = vmatprep.mubr.bf16.mxu0 %v714
  %1341 = vmatmul.mubr.bf16.gmra.mxu0 %v713
  %v1342 = vpop.f32.mrf.mxu0
  %v1343 = vadd.f32 %v1054, %v1342
  %v1344 = vpop.f32.mrf.mxu0
  %v1345 = vpop.f32.mrf.mxu0
  %v1346 = vadd.f32 %v1057, %v1345
  %v1347 = vpop.f32.mrf.mxu0
  %1348 = vmatprep.mubr.bf16.mxu0 %v718
  %1349 = vmatmul.mubr.bf16.gmra.mxu0 %v717
  %v1350 = vpop.f32.mrf.mxu0
  %v1351 = vadd.f32 %v1062, %v1350
  %v1352 = vpop.f32.mrf.mxu0
  %v1353 = vpop.f32.mrf.mxu0
  %v1354 = vadd.f32 %v1065, %v1353
  %v1355 = vpop.f32.mrf.mxu0
  %1356 = vmatprep.mubr.bf16.mxu0 %v722
  %1357 = vmatmul.mubr.bf16.gmra.mxu0 %v721
  %v1358 = vpop.f32.mrf.mxu0
  %v1359 = vadd.f32 %v1070, %v1358
  %v1360 = vpop.f32.mrf.mxu0
  %v1361 = vpop.f32.mrf.mxu0
  %v1362 = vadd.f32 %v1073, %v1361
  %v1363 = vpop.f32.mrf.mxu0
  %1364 = vmatprep.mubr.bf16.mxu0 %v726
  %1365 = vmatmul.mubr.bf16.gmra.mxu0 %v725
  %v1366 = vpop.f32.mrf.mxu0
  %v1367 = vadd.f32 %v1078, %v1366
  %v1368 = vpop.f32.mrf.mxu0
  %v1369 = vpop.f32.mrf.mxu0
  %v1370 = vadd.f32 %v1081, %v1369
  %v1371 = vpop.f32.mrf.mxu0
  %1372 = vmatprep.mubr.bf16.mxu0 %v730
  %1373 = vmatmul.mubr.bf16.gmra.mxu0 %v729
  %v1374 = vpop.f32.mrf.mxu0
  %v1375 = vadd.f32 %v1086, %v1374
  %v1376 = vpop.f32.mrf.mxu0
  %v1377 = vpop.f32.mrf.mxu0
  %v1378 = vadd.f32 %v1089, %v1377
  %v1379 = vpop.f32.mrf.mxu0
  %1380 = vmatprep.mubr.bf16.mxu0 %v734
  %1381 = vmatmul.mubr.bf16.gmra.mxu0 %v733
  %v1382 = vpop.f32.mrf.mxu0
  %v1383 = vadd.f32 %v1094, %v1382
  %v1384 = vpop.f32.mrf.mxu0
  %v1385 = vpop.f32.mrf.mxu0
  %v1386 = vadd.f32 %v1097, %v1385
  %v1387 = vpop.f32.mrf.mxu0
  %1388 = vmatprep.mubr.bf16.mxu0 %v738
  %1389 = vmatmul.mubr.bf16.gmra.mxu0 %v737
  %v1390 = vpop.f32.mrf.mxu0
  %v1391 = vadd.f32 %v1102, %v1390
  %v1392 = vpop.f32.mrf.mxu0
  %v1393 = vpop.f32.mrf.mxu0
  %v1394 = vadd.f32 %v1105, %v1393
  %v1395 = vpop.f32.mrf.mxu0
  %1396 = vmatprep.mubr.bf16.mxu0 %v742
  %1397 = vmatmul.mubr.bf16.gmra.mxu0 %v741
  %v1398 = vpop.f32.mrf.mxu0
  %v1399 = vadd.f32 %v1110, %v1398
  %v1400 = vpop.f32.mrf.mxu0
  %v1401 = vpop.f32.mrf.mxu0
  %v1402 = vadd.f32 %v1113, %v1401
  %v1403 = vpop.f32.mrf.mxu0
  %1404 = vmatprep.mubr.bf16.mxu0 %v746
  %1405 = vmatmul.mubr.bf16.gmra.mxu0 %v745
  %v1406 = vpop.f32.mrf.mxu0
  %v1407 = vadd.f32 %v1118, %v1406
  %v1408 = vpop.f32.mrf.mxu0
  %v1409 = vpop.f32.mrf.mxu0
  %v1410 = vadd.f32 %v1121, %v1409
  %v1411 = vpop.f32.mrf.mxu0
  %1412 = vmatprep.mubr.bf16.mxu0 %v750
  %1413 = vmatmul.mubr.bf16.gmra.mxu0 %v749
  %v1414 = vpop.f32.mrf.mxu0
  %v1415 = vadd.f32 %v1126, %v1414
  %v1416 = vpop.f32.mrf.mxu0
  %v1417 = vpop.f32.mrf.mxu0
  %v1418 = vadd.f32 %v1129, %v1417
  %v1419 = vpop.f32.mrf.mxu0
  %1420 = vmatprep.mubr.bf16.mxu0 %v754
  %1421 = vmatmul.mubr.bf16.gmra.mxu0 %v753
  %v1422 = vpop.f32.mrf.mxu0
  %v1423 = vadd.f32 %v1134, %v1422
  %v1424 = vpop.f32.mrf.mxu0
  %v1425 = vpop.f32.mrf.mxu0
  %v1426 = vadd.f32 %v1137, %v1425
  %v1427 = vpop.f32.mrf.mxu0
  %1428 = vmatprep.mubr.bf16.mxu0 %v758
  %1429 = vmatmul.mubr.bf16.gmra.mxu0 %v757
  %v1430 = vpop.f32.mrf.mxu0
  %v1431 = vadd.f32 %v1142, %v1430
  %v1432 = vpop.f32.mrf.mxu0
  %v1433 = vpop.f32.mrf.mxu0
  %v1434 = vadd.f32 %v1145, %v1433
  %v1435 = vpop.f32.mrf.mxu0
  %1436 = vmatprep.mubr.bf16.mxu0 %v762
  %1437 = vmatmul.mubr.bf16.gmra.mxu0 %v761
  %v1438 = vpop.f32.mrf.mxu0
  %v1439 = vadd.f32 %v1150, %v1438
  %v1440 = vpop.f32.mrf.mxu0
  %v1441 = vpop.f32.mrf.mxu0
  %v1442 = vadd.f32 %v1153, %v1441
  %v1443 = vpop.f32.mrf.mxu0
  %1444 = vmatprep.mubr.bf16.mxu0 %v766
  %1445 = vmatmul.mubr.bf16.gmra.mxu0 %v765
  %v1446 = vpop.f32.mrf.mxu0
  %v1447 = vadd.f32 %v1158, %v1446
  %v1448 = vpop.f32.mrf.mxu0
  %v1449 = vpop.f32.mrf.mxu0
  %v1450 = vadd.f32 %v1161, %v1449
  %v1451 = vpop.f32.mrf.mxu0
  %1452 = vmatprep.mubr.bf16.mxu0 %v770
  %1453 = vmatmul.mubr.bf16.gmra.mxu0 %v769
  %v1454 = vpop.f32.mrf.mxu0
  %v1455 = vadd.f32 %v1166, %v1454
  %v1456 = vpop.f32.mrf.mxu0
  %v1457 = vpop.f32.mrf.mxu0
  %v1458 = vadd.f32 %v1169, %v1457
  %v1459 = vpop.f32.mrf.mxu0
  %1460 = vmatprep.mubr.bf16.mxu0 %v774
  %1461 = vmatmul.mubr.bf16.gmra.mxu0 %v773
  %v1462 = vpop.f32.mrf.mxu0
  %v1463 = vadd.f32 %v1174, %v1462
  %v1464 = vpop.f32.mrf.mxu0
  %v1465 = vpop.f32.mrf.mxu0
  %v1466 = vadd.f32 %v1177, %v1465
  %v1467 = vpop.f32.mrf.mxu0
  %1468 = vmatprep.mubr.bf16.mxu0 %v778
  %1469 = vmatmul.mubr.bf16.gmra.mxu0 %v777
  %v1470 = vpop.f32.mrf.mxu0
  %v1471 = vadd.f32 %v1182, %v1470
  %v1472 = vpop.f32.mrf.mxu0
  %v1473 = vpop.f32.mrf.mxu0
  %v1474 = vadd.f32 %v1185, %v1473
  %v1475 = vpop.f32.mrf.mxu0
  %1476 = vmatprep.mubr.bf16.mxu0 %v782
  %1477 = vmatmul.mubr.bf16.gmra.mxu0 %v781
  %v1478 = vpop.f32.mrf.mxu0
  %v1479 = vadd.f32 %v1190, %v1478
  %v1480 = vpop.f32.mrf.mxu0
  %v1481 = vpop.f32.mrf.mxu0
  %v1482 = vadd.f32 %v1193, %v1481
  %v1483 = vpop.f32.mrf.mxu0
  %1484 = vmatprep.mubr.bf16.mxu0 %v786
  %1485 = vmatmul.mubr.bf16.gmra.mxu0 %v785
  %v1486 = vpop.f32.mrf.mxu0
  %v1487 = vadd.f32 %v1198, %v1486
  %v1488 = vpop.f32.mrf.mxu0
  %v1489 = vpop.f32.mrf.mxu0
  %v1490 = vadd.f32 %v1201, %v1489
  %v1491 = vpop.f32.mrf.mxu0
  %1492 = vdwg.mxu0
  %v1493 = vpack.c.bf16 %v1242, %v1239
  %v1494 = vpack.c.bf16 %v1250, %v1247
  %v1495 = vpack.c.bf16 %v1258, %v1255
  %v1496 = vpack.c.bf16 %v1266, %v1263
  %v1497 = vpack.c.bf16 %v1274, %v1271
  %v1498 = vpack.c.bf16 %v1282, %v1279
  %v1499 = vpack.c.bf16 %v1290, %v1287
  %v1500 = vpack.c.bf16 %v1298, %v1295
  %v1501 = vpack.c.bf16 %v1306, %v1303
  %v1502 = vpack.c.bf16 %v1314, %v1311
  %v1503 = vpack.c.bf16 %v1322, %v1319
  %v1504 = vpack.c.bf16 %v1330, %v1327
  %v1505 = vpack.c.bf16 %v1338, %v1335
  %v1506 = vpack.c.bf16 %v1346, %v1343
  %v1507 = vpack.c.bf16 %v1354, %v1351
  %v1508 = vpack.c.bf16 %v1362, %v1359
  %v1509 = vpack.c.bf16 %v1370, %v1367
  %v1510 = vpack.c.bf16 %v1378, %v1375
  %v1511 = vpack.c.bf16 %v1386, %v1383
  %v1512 = vpack.c.bf16 %v1394, %v1391
  %v1513 = vpack.c.bf16 %v1402, %v1399
  %v1514 = vpack.c.bf16 %v1410, %v1407
  %v1515 = vpack.c.bf16 %v1418, %v1415
  %v1516 = vpack.c.bf16 %v1426, %v1423
  %v1517 = vpack.c.bf16 %v1434, %v1431
  %v1518 = vpack.c.bf16 %v1442, %v1439
  %v1519 = vpack.c.bf16 %v1450, %v1447
  %v1520 = vpack.c.bf16 %v1458, %v1455
  %v1521 = vpack.c.bf16 %v1466, %v1463
  %v1522 = vpack.c.bf16 %v1474, %v1471
  %v1523 = vpack.c.bf16 %v1482, %v1479
  %v1524 = vpack.c.bf16 %v1490, %v1487
  %v1525 = vld [vmem:[%s3] sm:$0xf]
  %v1526 = vld [vmem:[%s3 + $0x4] sm:$0xf]
  %v1527 = vld [vmem:[%s3 + $0x8] sm:$0xf]
  %v1528 = vld [vmem:[%s3 + $0xc] sm:$0xf]
  %v1529 = vld [vmem:[%s3 + $0x10] sm:$0xf]
  %v1530 = vld [vmem:[%s3 + $0x14] sm:$0xf]
  %v1531 = vld [vmem:[%s3 + $0x18] sm:$0xf]
  %v1532 = vld [vmem:[%s3 + $0x1c] sm:$0xf]
  %v1533 = vld [vmem:[%s3 + $0x20] sm:$0xf]
  %v1534 = vld [vmem:[%s3 + $0x24] sm:$0xf]
  %v1535 = vld [vmem:[%s3 + $0x28] sm:$0xf]
  %v1536 = vld [vmem:[%s3 + $0x2c] sm:$0xf]
  %v1537 = vld [vmem:[%s3 + $0x30] sm:$0xf]
  %v1538 = vld [vmem:[%s3 + $0x34] sm:$0xf]
  %v1539 = vld [vmem:[%s3 + $0x38] sm:$0xf]
  %v1540 = vld [vmem:[%s3 + $0x3c] sm:$0xf]
  %v1541 = vld [vmem:[%s4] sm:$0x1]
  %v1543 = vlaneseq
  %v1544 = vshrl.u32 %v1543, 7
  %v1545 = vsub.s32 0, %v1544
  %v1546 = vrot.slane %v1541, %v1545
  %v1564 = vunpack.c.l.b16 %v1525
  %v1565 = vunpack.c.l.b16 %v1526
  %v1566 = vunpack.c.l.b16 %v1527
  %v1567 = vunpack.c.l.b16 %v1528
  %v1568 = vunpack.c.l.b16 %v1529
  %v1569 = vunpack.c.l.b16 %v1530
  %v1570 = vunpack.c.l.b16 %v1531
  %v1571 = vunpack.c.l.b16 %v1532
  %v1572 = vunpack.c.l.b16 %v1533
  %v1573 = vunpack.c.l.b16 %v1534
  %v1574 = vunpack.c.l.b16 %v1535
  %v1575 = vunpack.c.l.b16 %v1536
  %v1576 = vunpack.c.l.b16 %v1537
  %v1577 = vunpack.c.l.b16 %v1538
  %v1578 = vunpack.c.l.b16 %v1539
  %v1579 = vunpack.c.l.b16 %v1540
  %v1580 = vpack.c.b16 %v1565, %v1564
  %v1581 = vpack.c.b16 %v1567, %v1566
  %v1582 = vpack.c.b16 %v1569, %v1568
  %v1583 = vpack.c.b16 %v1571, %v1570
  %v1584 = vpack.c.b16 %v1573, %v1572
  %v1585 = vpack.c.b16 %v1575, %v1574
  %v1586 = vpack.c.b16 %v1577, %v1576
  %v1587 = vpack.c.b16 %v1579, %v1578
  %1596 = vmatprep.subr.bf16.mxu0 0
  %1597 = vmatpush1.bf16.msra.mxu0 %v1587
  %1598 = vmatprep.subr.bf16.mxu0 0
  %1599 = vmatpush1.bf16.msra.mxu0 %v1586
  %1600 = vmatprep.subr.bf16.mxu0 0
  %1601 = vmatpush1.bf16.msra.mxu0 %v1585
  %1602 = vmatprep.subr.bf16.mxu0 0
  %1603 = vmatpush1.bf16.msra.mxu0 %v1584
  %1604 = vmatprep.subr.bf16.mxu0 0
  %1605 = vmatpush1.bf16.msra.mxu0 %v1583
  %1606 = vmatprep.subr.bf16.mxu0 0
  %1607 = vmatpush1.bf16.msra.mxu0 %v1582
  %1608 = vmatprep.subr.bf16.mxu0 0
  %1609 = vmatpush1.bf16.msra.mxu0 %v1581
  %1610 = vmatprep.subr.bf16.mxu0 0
  %1611 = vmatpush1.bf16.msra.mxu0 %v1580
  %1612 = vmatprep.subr.bf16.mxu0 0
  %1613 = vmatpush2.bf16.msra.mxu0 0
  %1614 = vmatprep.subr.bf16.mxu0 0
  %1615 = vmatpush2.bf16.msra.mxu0 0
  %1616 = vmatprep.subr.bf16.mxu0 0
  %1617 = vmatpush2.bf16.msra.mxu0 0
  %1618 = vmatprep.subr.bf16.mxu0 0
  %1619 = vmatpush2.bf16.msra.mxu0 0
  %1620 = vmatprep.subr.bf16.mxu0 0
  %1621 = vmatpush2.bf16.msra.mxu0 0
  %1622 = vmatprep.subr.bf16.mxu0 0
  %1623 = vmatpush2.bf16.msra.mxu0 0
  %1624 = vmatprep.subr.bf16.mxu0 0
  %1625 = vmatpush2.bf16.msra.mxu0 0
  %1626 = vmatprep.subr.bf16.mxu0 0
  %1627 = vmatpush2.bf16.msra.mxu0 0
  %1628 = vmatprep.mubr.bf16.mxu0 0
  %1629 = vmatmul.mubr.bf16.gmra.mxu0 %v1493
  %v1630 = vpop.f32.mrf.mxu0
  %v1631 = vadd.f32 %v1546, %v1630
  %v1632 = vpop.f32.mrf.mxu0
  %v1633 = vpop.f32.mrf.mxu0
  %v1634 = vadd.f32 %v1546, %v1633
  %v1635 = vpop.f32.mrf.mxu0
  %1636 = vmatprep.mubr.bf16.mxu0 0
  %1637 = vmatmul.mubr.bf16.gmra.mxu0 %v1494
  %v1638 = vpop.f32.mrf.mxu0
  %v1639 = vadd.f32 %v1546, %v1638
  %v1640 = vpop.f32.mrf.mxu0
  %v1641 = vpop.f32.mrf.mxu0
  %v1642 = vadd.f32 %v1546, %v1641
  %v1643 = vpop.f32.mrf.mxu0
  %1644 = vmatprep.mubr.bf16.mxu0 0
  %1645 = vmatmul.mubr.bf16.gmra.mxu0 %v1495
  %v1646 = vpop.f32.mrf.mxu0
  %v1647 = vadd.f32 %v1546, %v1646
  %v1648 = vpop.f32.mrf.mxu0
  %v1649 = vpop.f32.mrf.mxu0
  %v1650 = vadd.f32 %v1546, %v1649
  %v1651 = vpop.f32.mrf.mxu0
  %1652 = vmatprep.mubr.bf16.mxu0 0
  %1653 = vmatmul.mubr.bf16.gmra.mxu0 %v1496
  %v1654 = vpop.f32.mrf.mxu0
  %v1655 = vadd.f32 %v1546, %v1654
  %v1656 = vpop.f32.mrf.mxu0
  %v1657 = vpop.f32.mrf.mxu0
  %v1658 = vadd.f32 %v1546, %v1657
  %v1659 = vpop.f32.mrf.mxu0
  %1660 = vmatprep.mubr.bf16.mxu0 0
  %1661 = vmatmul.mubr.bf16.gmra.mxu0 %v1497
  %v1662 = vpop.f32.mrf.mxu0
  %v1663 = vadd.f32 %v1546, %v1662
  %v1664 = vpop.f32.mrf.mxu0
  %v1665 = vpop.f32.mrf.mxu0
  %v1666 = vadd.f32 %v1546, %v1665
  %v1667 = vpop.f32.mrf.mxu0
  %1668 = vmatprep.mubr.bf16.mxu0 0
  %1669 = vmatmul.mubr.bf16.gmra.mxu0 %v1498
  %v1670 = vpop.f32.mrf.mxu0
  %v1671 = vadd.f32 %v1546, %v1670
  %v1672 = vpop.f32.mrf.mxu0
  %v1673 = vpop.f32.mrf.mxu0
  %v1674 = vadd.f32 %v1546, %v1673
  %v1675 = vpop.f32.mrf.mxu0
  %1676 = vmatprep.mubr.bf16.mxu0 0
  %1677 = vmatmul.mubr.bf16.gmra.mxu0 %v1499
  %v1678 = vpop.f32.mrf.mxu0
  %v1679 = vadd.f32 %v1546, %v1678
  %v1680 = vpop.f32.mrf.mxu0
  %v1681 = vpop.f32.mrf.mxu0
  %v1682 = vadd.f32 %v1546, %v1681
  %v1683 = vpop.f32.mrf.mxu0
  %1684 = vmatprep.mubr.bf16.mxu0 0
  %1685 = vmatmul.mubr.bf16.gmra.mxu0 %v1500
  %v1686 = vpop.f32.mrf.mxu0
  %v1687 = vadd.f32 %v1546, %v1686
  %v1688 = vpop.f32.mrf.mxu0
  %v1689 = vpop.f32.mrf.mxu0
  %v1690 = vadd.f32 %v1546, %v1689
  %v1691 = vpop.f32.mrf.mxu0
  %1692 = vmatprep.mubr.bf16.mxu0 0
  %1693 = vmatmul.mubr.bf16.gmra.mxu0 %v1501
  %v1694 = vpop.f32.mrf.mxu0
  %v1695 = vadd.f32 %v1546, %v1694
  %v1696 = vpop.f32.mrf.mxu0
  %v1697 = vpop.f32.mrf.mxu0
  %v1698 = vadd.f32 %v1546, %v1697
  %v1699 = vpop.f32.mrf.mxu0
  %1700 = vmatprep.mubr.bf16.mxu0 0
  %1701 = vmatmul.mubr.bf16.gmra.mxu0 %v1502
  %v1702 = vpop.f32.mrf.mxu0
  %v1703 = vadd.f32 %v1546, %v1702
  %v1704 = vpop.f32.mrf.mxu0
  %v1705 = vpop.f32.mrf.mxu0
  %v1706 = vadd.f32 %v1546, %v1705
  %v1707 = vpop.f32.mrf.mxu0
  %1708 = vmatprep.mubr.bf16.mxu0 0
  %1709 = vmatmul.mubr.bf16.gmra.mxu0 %v1503
  %v1710 = vpop.f32.mrf.mxu0
  %v1711 = vadd.f32 %v1546, %v1710
  %v1712 = vpop.f32.mrf.mxu0
  %v1713 = vpop.f32.mrf.mxu0
  %v1714 = vadd.f32 %v1546, %v1713
  %v1715 = vpop.f32.mrf.mxu0
  %1716 = vmatprep.mubr.bf16.mxu0 0
  %1717 = vmatmul.mubr.bf16.gmra.mxu0 %v1504
  %v1718 = vpop.f32.mrf.mxu0
  %v1719 = vadd.f32 %v1546, %v1718
  %v1720 = vpop.f32.mrf.mxu0
  %v1721 = vpop.f32.mrf.mxu0
  %v1722 = vadd.f32 %v1546, %v1721
  %v1723 = vpop.f32.mrf.mxu0
  %1724 = vmatprep.mubr.bf16.mxu0 0
  %1725 = vmatmul.mubr.bf16.gmra.mxu0 %v1505
  %v1726 = vpop.f32.mrf.mxu0
  %v1727 = vadd.f32 %v1546, %v1726
  %v1728 = vpop.f32.mrf.mxu0
  %v1729 = vpop.f32.mrf.mxu0
  %v1730 = vadd.f32 %v1546, %v1729
  %v1731 = vpop.f32.mrf.mxu0
  %1732 = vmatprep.mubr.bf16.mxu0 0
  %1733 = vmatmul.mubr.bf16.gmra.mxu0 %v1506
  %v1734 = vpop.f32.mrf.mxu0
  %v1735 = vadd.f32 %v1546, %v1734
  %v1736 = vpop.f32.mrf.mxu0
  %v1737 = vpop.f32.mrf.mxu0
  %v1738 = vadd.f32 %v1546, %v1737
  %v1739 = vpop.f32.mrf.mxu0
  %1740 = vmatprep.mubr.bf16.mxu0 0
  %1741 = vmatmul.mubr.bf16.gmra.mxu0 %v1507
  %v1742 = vpop.f32.mrf.mxu0
  %v1743 = vadd.f32 %v1546, %v1742
  %v1744 = vpop.f32.mrf.mxu0
  %v1745 = vpop.f32.mrf.mxu0
  %v1746 = vadd.f32 %v1546, %v1745
  %v1747 = vpop.f32.mrf.mxu0
  %1748 = vmatprep.mubr.bf16.mxu0 0
  %1749 = vmatmul.mubr.bf16.gmra.mxu0 %v1508
  %v1750 = vpop.f32.mrf.mxu0
  %v1751 = vadd.f32 %v1546, %v1750
  %v1752 = vpop.f32.mrf.mxu0
  %v1753 = vpop.f32.mrf.mxu0
  %v1754 = vadd.f32 %v1546, %v1753
  %v1755 = vpop.f32.mrf.mxu0
  %1756 = vmatprep.mubr.bf16.mxu0 0
  %1757 = vmatmul.mubr.bf16.gmra.mxu0 %v1509
  %v1758 = vpop.f32.mrf.mxu0
  %v1759 = vadd.f32 %v1546, %v1758
  %v1760 = vpop.f32.mrf.mxu0
  %v1761 = vpop.f32.mrf.mxu0
  %v1762 = vadd.f32 %v1546, %v1761
  %v1763 = vpop.f32.mrf.mxu0
  %1764 = vmatprep.mubr.bf16.mxu0 0
  %1765 = vmatmul.mubr.bf16.gmra.mxu0 %v1510
  %v1766 = vpop.f32.mrf.mxu0
  %v1767 = vadd.f32 %v1546, %v1766
  %v1768 = vpop.f32.mrf.mxu0
  %v1769 = vpop.f32.mrf.mxu0
  %v1770 = vadd.f32 %v1546, %v1769
  %v1771 = vpop.f32.mrf.mxu0
  %1772 = vmatprep.mubr.bf16.mxu0 0
  %1773 = vmatmul.mubr.bf16.gmra.mxu0 %v1511
  %v1774 = vpop.f32.mrf.mxu0
  %v1775 = vadd.f32 %v1546, %v1774
  %v1776 = vpop.f32.mrf.mxu0
  %v1777 = vpop.f32.mrf.mxu0
  %v1778 = vadd.f32 %v1546, %v1777
  %v1779 = vpop.f32.mrf.mxu0
  %1780 = vmatprep.mubr.bf16.mxu0 0
  %1781 = vmatmul.mubr.bf16.gmra.mxu0 %v1512
  %v1782 = vpop.f32.mrf.mxu0
  %v1783 = vadd.f32 %v1546, %v1782
  %v1784 = vpop.f32.mrf.mxu0
  %v1785 = vpop.f32.mrf.mxu0
  %v1786 = vadd.f32 %v1546, %v1785
  %v1787 = vpop.f32.mrf.mxu0
  %1788 = vmatprep.mubr.bf16.mxu0 0
  %1789 = vmatmul.mubr.bf16.gmra.mxu0 %v1513
  %v1790 = vpop.f32.mrf.mxu0
  %v1791 = vadd.f32 %v1546, %v1790
  %v1792 = vpop.f32.mrf.mxu0
  %v1793 = vpop.f32.mrf.mxu0
  %v1794 = vadd.f32 %v1546, %v1793
  %v1795 = vpop.f32.mrf.mxu0
  %1796 = vmatprep.mubr.bf16.mxu0 0
  %1797 = vmatmul.mubr.bf16.gmra.mxu0 %v1514
  %v1798 = vpop.f32.mrf.mxu0
  %v1799 = vadd.f32 %v1546, %v1798
  %v1800 = vpop.f32.mrf.mxu0
  %v1801 = vpop.f32.mrf.mxu0
  %v1802 = vadd.f32 %v1546, %v1801
  %v1803 = vpop.f32.mrf.mxu0
  %1804 = vmatprep.mubr.bf16.mxu0 0
  %1805 = vmatmul.mubr.bf16.gmra.mxu0 %v1515
  %v1806 = vpop.f32.mrf.mxu0
  %v1807 = vadd.f32 %v1546, %v1806
  %v1808 = vpop.f32.mrf.mxu0
  %v1809 = vpop.f32.mrf.mxu0
  %v1810 = vadd.f32 %v1546, %v1809
  %v1811 = vpop.f32.mrf.mxu0
  %1812 = vmatprep.mubr.bf16.mxu0 0
  %1813 = vmatmul.mubr.bf16.gmra.mxu0 %v1516
  %v1814 = vpop.f32.mrf.mxu0
  %v1815 = vadd.f32 %v1546, %v1814
  %v1816 = vpop.f32.mrf.mxu0
  %v1817 = vpop.f32.mrf.mxu0
  %v1818 = vadd.f32 %v1546, %v1817
  %v1819 = vpop.f32.mrf.mxu0
  %1820 = vmatprep.mubr.bf16.mxu0 0
  %1821 = vmatmul.mubr.bf16.gmra.mxu0 %v1517
  %v1822 = vpop.f32.mrf.mxu0
  %v1823 = vadd.f32 %v1546, %v1822
  %v1824 = vpop.f32.mrf.mxu0
  %v1825 = vpop.f32.mrf.mxu0
  %v1826 = vadd.f32 %v1546, %v1825
  %v1827 = vpop.f32.mrf.mxu0
  %1828 = vmatprep.mubr.bf16.mxu0 0
  %1829 = vmatmul.mubr.bf16.gmra.mxu0 %v1518
  %v1830 = vpop.f32.mrf.mxu0
  %v1831 = vadd.f32 %v1546, %v1830
  %v1832 = vpop.f32.mrf.mxu0
  %v1833 = vpop.f32.mrf.mxu0
  %v1834 = vadd.f32 %v1546, %v1833
  %v1835 = vpop.f32.mrf.mxu0
  %1836 = vmatprep.mubr.bf16.mxu0 0
  %1837 = vmatmul.mubr.bf16.gmra.mxu0 %v1519
  %v1838 = vpop.f32.mrf.mxu0
  %v1839 = vadd.f32 %v1546, %v1838
  %v1840 = vpop.f32.mrf.mxu0
  %v1841 = vpop.f32.mrf.mxu0
  %v1842 = vadd.f32 %v1546, %v1841
  %v1843 = vpop.f32.mrf.mxu0
  %1844 = vmatprep.mubr.bf16.mxu0 0
  %1845 = vmatmul.mubr.bf16.gmra.mxu0 %v1520
  %v1846 = vpop.f32.mrf.mxu0
  %v1847 = vadd.f32 %v1546, %v1846
  %v1848 = vpop.f32.mrf.mxu0
  %v1849 = vpop.f32.mrf.mxu0
  %v1850 = vadd.f32 %v1546, %v1849
  %v1851 = vpop.f32.mrf.mxu0
  %1852 = vmatprep.mubr.bf16.mxu0 0
  %1853 = vmatmul.mubr.bf16.gmra.mxu0 %v1521
  %v1854 = vpop.f32.mrf.mxu0
  %v1855 = vadd.f32 %v1546, %v1854
  %v1856 = vpop.f32.mrf.mxu0
  %v1857 = vpop.f32.mrf.mxu0
  %v1858 = vadd.f32 %v1546, %v1857
  %v1859 = vpop.f32.mrf.mxu0
  %1860 = vmatprep.mubr.bf16.mxu0 0
  %1861 = vmatmul.mubr.bf16.gmra.mxu0 %v1522
  %v1862 = vpop.f32.mrf.mxu0
  %v1863 = vadd.f32 %v1546, %v1862
  %v1864 = vpop.f32.mrf.mxu0
  %v1865 = vpop.f32.mrf.mxu0
  %v1866 = vadd.f32 %v1546, %v1865
  %v1867 = vpop.f32.mrf.mxu0
  %1868 = vmatprep.mubr.bf16.mxu0 0
  %1869 = vmatmul.mubr.bf16.gmra.mxu0 %v1523
  %v1870 = vpop.f32.mrf.mxu0
  %v1871 = vadd.f32 %v1546, %v1870
  %v1872 = vpop.f32.mrf.mxu0
  %v1873 = vpop.f32.mrf.mxu0
  %v1874 = vadd.f32 %v1546, %v1873
  %v1875 = vpop.f32.mrf.mxu0
  %1876 = vmatprep.mubr.bf16.mxu0 0
  %1877 = vmatmul.mubr.bf16.gmra.mxu0 %v1524
  %v1878 = vpop.f32.mrf.mxu0
  %v1879 = vadd.f32 %v1546, %v1878
  %v1880 = vpop.f32.mrf.mxu0
  %v1881 = vpop.f32.mrf.mxu0
  %v1882 = vadd.f32 %v1546, %v1881
  %v1883 = vpop.f32.mrf.mxu0
  %1884 = vdwg.mxu0
  %v1885 = vld [vmem:[%s5] sm:$0x1]
  %v1886 = vld [vmem:[%s6] sm:$0x1]
  %v1887 = vadd.f32 %v1631, %v1634
  %v1888 = vadd.f32 %v1887, %v1639
  %v1889 = vadd.f32 %v1888, %v1642
  %v1890 = vadd.f32 %v1889, %v1647
  %v1891 = vadd.f32 %v1890, %v1650
  %v1892 = vadd.f32 %v1891, %v1655
  %v1893 = vadd.f32 %v1892, %v1658
  %v1894 = vadd.f32 %v1893, %v1663
  %v1895 = vadd.f32 %v1894, %v1666
  %v1896 = vadd.f32 %v1895, %v1671
  %v1897 = vadd.f32 %v1896, %v1674
  %v1898 = vadd.f32 %v1897, %v1679
  %v1899 = vadd.f32 %v1898, %v1682
  %v1900 = vadd.f32 %v1899, %v1687
  %v1901 = vadd.f32 %v1900, %v1690
  %v1902 = vadd.f32 %v1901, %v1695
  %v1903 = vadd.f32 %v1902, %v1698
  %v1904 = vadd.f32 %v1903, %v1703
  %v1905 = vadd.f32 %v1904, %v1706
  %v1906 = vadd.f32 %v1905, %v1711
  %v1907 = vadd.f32 %v1906, %v1714
  %v1908 = vadd.f32 %v1907, %v1719
  %v1909 = vadd.f32 %v1908, %v1722
  %v1910 = vadd.f32 %v1909, %v1727
  %v1911 = vadd.f32 %v1910, %v1730
  %v1912 = vadd.f32 %v1911, %v1735
  %v1913 = vadd.f32 %v1912, %v1738
  %v1914 = vadd.f32 %v1913, %v1743
  %v1915 = vadd.f32 %v1914, %v1746
  %v1916 = vadd.f32 %v1915, %v1751
  %v1917 = vadd.f32 %v1916, %v1754
  %v1918 = vadd.f32 %v1917, %v1759
  %v1919 = vadd.f32 %v1918, %v1762
  %v1920 = vadd.f32 %v1919, %v1767
  %v1921 = vadd.f32 %v1920, %v1770
  %v1922 = vadd.f32 %v1921, %v1775
  %v1923 = vadd.f32 %v1922, %v1778
  %v1924 = vadd.f32 %v1923, %v1783
  %v1925 = vadd.f32 %v1924, %v1786
  %v1926 = vadd.f32 %v1925, %v1791
  %v1927 = vadd.f32 %v1926, %v1794
  %v1928 = vadd.f32 %v1927, %v1799
  %v1929 = vadd.f32 %v1928, %v1802
  %v1930 = vadd.f32 %v1929, %v1807
  %v1931 = vadd.f32 %v1930, %v1810
  %v1932 = vadd.f32 %v1931, %v1815
  %v1933 = vadd.f32 %v1932, %v1818
  %v1934 = vadd.f32 %v1933, %v1823
  %v1935 = vadd.f32 %v1934, %v1826
  %v1936 = vadd.f32 %v1935, %v1831
  %v1937 = vadd.f32 %v1936, %v1834
  %v1938 = vadd.f32 %v1937, %v1839
  %v1939 = vadd.f32 %v1938, %v1842
  %v1940 = vadd.f32 %v1939, %v1847
  %v1941 = vadd.f32 %v1940, %v1850
  %v1942 = vadd.f32 %v1941, %v1855
  %v1943 = vadd.f32 %v1942, %v1858
  %v1944 = vadd.f32 %v1943, %v1863
  %v1945 = vadd.f32 %v1944, %v1866
  %v1946 = vadd.f32 %v1945, %v1871
  %v1947 = vadd.f32 %v1946, %v1874
  %v1948 = vadd.f32 %v1947, %v1879
  %v1949 = vadd.f32 %v1948, %v1882
  %v1950 = vrot.slane %v1949, 4
  %v1951 = vadd.f32 %v1949, %v1950
  %v1952 = vrot.slane %v1951, 2
  %v1953 = vadd.f32 %v1951, %v1952
  %v1954 = vrot.slane %v1953, 1
  %v1955 = vadd.f32 %v1953, %v1954
  %v1956 = vmul.f32 %v1631, %v1631
  %v1957 = vmul.f32 %v1634, %v1634
  %v1958 = vmul.f32 %v1639, %v1639
  %v1959 = vmul.f32 %v1642, %v1642
  %v1960 = vmul.f32 %v1647, %v1647
  %v1961 = vmul.f32 %v1650, %v1650
  %v1962 = vmul.f32 %v1655, %v1655
  %v1963 = vmul.f32 %v1658, %v1658
  %v1964 = vmul.f32 %v1663, %v1663
  %v1965 = vmul.f32 %v1666, %v1666
  %v1966 = vmul.f32 %v1671, %v1671
  %v1967 = vmul.f32 %v1674, %v1674
  %v1968 = vmul.f32 %v1679, %v1679
  %v1969 = vmul.f32 %v1682, %v1682
  %v1970 = vmul.f32 %v1687, %v1687
  %v1971 = vmul.f32 %v1690, %v1690
  %v1972 = vmul.f32 %v1695, %v1695
  %v1973 = vmul.f32 %v1698, %v1698
  %v1974 = vmul.f32 %v1703, %v1703
  %v1975 = vmul.f32 %v1706, %v1706
  %v1976 = vmul.f32 %v1711, %v1711
  %v1977 = vmul.f32 %v1714, %v1714
  %v1978 = vmul.f32 %v1719, %v1719
  %v1979 = vmul.f32 %v1722, %v1722
  %v1980 = vmul.f32 %v1727, %v1727
  %v1981 = vmul.f32 %v1730, %v1730
  %v1982 = vmul.f32 %v1735, %v1735
  %v1983 = vmul.f32 %v1738, %v1738
  %v1984 = vmul.f32 %v1743, %v1743
  %v1985 = vmul.f32 %v1746, %v1746
  %v1986 = vmul.f32 %v1751, %v1751
  %v1987 = vmul.f32 %v1754, %v1754
  %v1988 = vmul.f32 %v1759, %v1759
  %v1989 = vmul.f32 %v1762, %v1762
  %v1990 = vmul.f32 %v1767, %v1767
  %v1991 = vmul.f32 %v1770, %v1770
  %v1992 = vmul.f32 %v1775, %v1775
  %v1993 = vmul.f32 %v1778, %v1778
  %v1994 = vmul.f32 %v1783, %v1783
  %v1995 = vmul.f32 %v1786, %v1786
  %v1996 = vmul.f32 %v1791, %v1791
  %v1997 = vmul.f32 %v1794, %v1794
  %v1998 = vmul.f32 %v1799, %v1799
  %v1999 = vmul.f32 %v1802, %v1802
  %v2000 = vmul.f32 %v1807, %v1807
  %v2001 = vmul.f32 %v1810, %v1810
  %v2002 = vmul.f32 %v1815, %v1815
  %v2003 = vmul.f32 %v1818, %v1818
  %v2004 = vmul.f32 %v1823, %v1823
  %v2005 = vmul.f32 %v1826, %v1826
  %v2006 = vmul.f32 %v1831, %v1831
  %v2007 = vmul.f32 %v1834, %v1834
  %v2008 = vmul.f32 %v1839, %v1839
  %v2009 = vmul.f32 %v1842, %v1842
  %v2010 = vmul.f32 %v1847, %v1847
  %v2011 = vmul.f32 %v1850, %v1850
  %v2012 = vmul.f32 %v1855, %v1855
  %v2013 = vmul.f32 %v1858, %v1858
  %v2014 = vmul.f32 %v1863, %v1863
  %v2015 = vmul.f32 %v1866, %v1866
  %v2016 = vmul.f32 %v1871, %v1871
  %v2017 = vmul.f32 %v1874, %v1874
  %v2018 = vmul.f32 %v1879, %v1879
  %v2019 = vmul.f32 %v1882, %v1882
  %v2020 = vadd.f32 %v1956, %v1957
  %v2021 = vadd.f32 %v2020, %v1958
  %v2022 = vadd.f32 %v2021, %v1959
  %v2023 = vadd.f32 %v2022, %v1960
  %v2024 = vadd.f32 %v2023, %v1961
  %v2025 = vadd.f32 %v2024, %v1962
  %v2026 = vadd.f32 %v2025, %v1963
  %v2027 = vadd.f32 %v2026, %v1964
  %v2028 = vadd.f32 %v2027, %v1965
  %v2029 = vadd.f32 %v2028, %v1966
  %v2030 = vadd.f32 %v2029, %v1967
  %v2031 = vadd.f32 %v2030, %v1968
  %v2032 = vadd.f32 %v2031, %v1969
  %v2033 = vadd.f32 %v2032, %v1970
  %v2034 = vadd.f32 %v2033, %v1971
  %v2035 = vadd.f32 %v2034, %v1972
  %v2036 = vadd.f32 %v2035, %v1973
  %v2037 = vadd.f32 %v2036, %v1974
  %v2038 = vadd.f32 %v2037, %v1975
  %v2039 = vadd.f32 %v2038, %v1976
  %v2040 = vadd.f32 %v2039, %v1977
  %v2041 = vadd.f32 %v2040, %v1978
  %v2042 = vadd.f32 %v2041, %v1979
  %v2043 = vadd.f32 %v2042, %v1980
  %v2044 = vadd.f32 %v2043, %v1981
  %v2045 = vadd.f32 %v2044, %v1982
  %v2046 = vadd.f32 %v2045, %v1983
  %v2047 = vadd.f32 %v2046, %v1984
  %v2048 = vadd.f32 %v2047, %v1985
  %v2049 = vadd.f32 %v2048, %v1986
  %v2050 = vadd.f32 %v2049, %v1987
  %v2051 = vadd.f32 %v2050, %v1988
  %v2052 = vadd.f32 %v2051, %v1989
  %v2053 = vadd.f32 %v2052, %v1990
  %v2054 = vadd.f32 %v2053, %v1991
  %v2055 = vadd.f32 %v2054, %v1992
  %v2056 = vadd.f32 %v2055, %v1993
  %v2057 = vadd.f32 %v2056, %v1994
  %v2058 = vadd.f32 %v2057, %v1995
  %v2059 = vadd.f32 %v2058, %v1996
  %v2060 = vadd.f32 %v2059, %v1997
  %v2061 = vadd.f32 %v2060, %v1998
  %v2062 = vadd.f32 %v2061, %v1999
  %v2063 = vadd.f32 %v2062, %v2000
  %v2064 = vadd.f32 %v2063, %v2001
  %v2065 = vadd.f32 %v2064, %v2002
  %v2066 = vadd.f32 %v2065, %v2003
  %v2067 = vadd.f32 %v2066, %v2004
  %v2068 = vadd.f32 %v2067, %v2005
  %v2069 = vadd.f32 %v2068, %v2006
  %v2070 = vadd.f32 %v2069, %v2007
  %v2071 = vadd.f32 %v2070, %v2008
  %v2072 = vadd.f32 %v2071, %v2009
  %v2073 = vadd.f32 %v2072, %v2010
  %v2074 = vadd.f32 %v2073, %v2011
  %v2075 = vadd.f32 %v2074, %v2012
  %v2076 = vadd.f32 %v2075, %v2013
  %v2077 = vadd.f32 %v2076, %v2014
  %v2078 = vadd.f32 %v2077, %v2015
  %v2079 = vadd.f32 %v2078, %v2016
  %v2080 = vadd.f32 %v2079, %v2017
  %v2081 = vadd.f32 %v2080, %v2018
  %v2082 = vadd.f32 %v2081, %v2019
  %v2083 = vrot.slane %v2082, 4
  %v2084 = vadd.f32 %v2082, %v2083
  %v2085 = vrot.slane %v2084, 2
  %v2086 = vadd.f32 %v2084, %v2085
  %v2087 = vrot.slane %v2086, 1
  %v2088 = vadd.f32 %v2086, %v2087
  %v2089 = vmul.f32 %v1955, 0.001953125
  %v2090 = vmul.f32 %v2088, 0.001953125
  %v2091 = vmul.f32 %v2089, %v2089
  %v2092 = vsub.f32 %v2090, %v2091
  %v2093 = vsub.f32 %v1631, %v2089
  %v2094 = vsub.f32 %v1634, %v2089
  %v2095 = vsub.f32 %v1639, %v2089
  %v2096 = vsub.f32 %v1642, %v2089
  %v2097 = vsub.f32 %v1647, %v2089
  %v2098 = vsub.f32 %v1650, %v2089
  %v2099 = vsub.f32 %v1655, %v2089
  %v2100 = vsub.f32 %v1658, %v2089
  %v2101 = vsub.f32 %v1663, %v2089
  %v2102 = vsub.f32 %v1666, %v2089
  %v2103 = vsub.f32 %v1671, %v2089
  %v2104 = vsub.f32 %v1674, %v2089
  %v2105 = vsub.f32 %v1679, %v2089
  %v2106 = vsub.f32 %v1682, %v2089
  %v2107 = vsub.f32 %v1687, %v2089
  %v2108 = vsub.f32 %v1690, %v2089
  %v2109 = vsub.f32 %v1695, %v2089
  %v2110 = vsub.f32 %v1698, %v2089
  %v2111 = vsub.f32 %v1703, %v2089
  %v2112 = vsub.f32 %v1706, %v2089
  %v2113 = vsub.f32 %v1711, %v2089
  %v2114 = vsub.f32 %v1714, %v2089
  %v2115 = vsub.f32 %v1719, %v2089
  %v2116 = vsub.f32 %v1722, %v2089
  %v2117 = vsub.f32 %v1727, %v2089
  %v2118 = vsub.f32 %v1730, %v2089
  %v2119 = vsub.f32 %v1735, %v2089
  %v2120 = vsub.f32 %v1738, %v2089
  %v2121 = vsub.f32 %v1743, %v2089
  %v2122 = vsub.f32 %v1746, %v2089
  %v2123 = vsub.f32 %v1751, %v2089
  %v2124 = vsub.f32 %v1754, %v2089
  %v2125 = vsub.f32 %v1759, %v2089
  %v2126 = vsub.f32 %v1762, %v2089
  %v2127 = vsub.f32 %v1767, %v2089
  %v2128 = vsub.f32 %v1770, %v2089
  %v2129 = vsub.f32 %v1775, %v2089
  %v2130 = vsub.f32 %v1778, %v2089
  %v2131 = vsub.f32 %v1783, %v2089
  %v2132 = vsub.f32 %v1786, %v2089
  %v2133 = vsub.f32 %v1791, %v2089
  %v2134 = vsub.f32 %v1794, %v2089
  %v2135 = vsub.f32 %v1799, %v2089
  %v2136 = vsub.f32 %v1802, %v2089
  %v2137 = vsub.f32 %v1807, %v2089
  %v2138 = vsub.f32 %v1810, %v2089
  %v2139 = vsub.f32 %v1815, %v2089
  %v2140 = vsub.f32 %v1818, %v2089
  %v2141 = vsub.f32 %v1823, %v2089
  %v2142 = vsub.f32 %v1826, %v2089
  %v2143 = vsub.f32 %v1831, %v2089
  %v2144 = vsub.f32 %v1834, %v2089
  %v2145 = vsub.f32 %v1839, %v2089
  %v2146 = vsub.f32 %v1842, %v2089
  %v2147 = vsub.f32 %v1847, %v2089
  %v2148 = vsub.f32 %v1850, %v2089
  %v2149 = vsub.f32 %v1855, %v2089
  %v2150 = vsub.f32 %v1858, %v2089
  %v2151 = vsub.f32 %v1863, %v2089
  %v2152 = vsub.f32 %v1866, %v2089
  %v2153 = vsub.f32 %v1871, %v2089
  %v2154 = vsub.f32 %v1874, %v2089
  %v2155 = vsub.f32 %v1879, %v2089
  %v2156 = vsub.f32 %v1882, %v2089
  %v2157 = vadd.f32 %v2092, 1e-05
  %v2158 = vrsqrt.pop %v2157
  %v2159 = vmul.f32 %v2093, %v2158
  %v2160 = vmul.f32 %v2094, %v2158
  %v2161 = vmul.f32 %v2095, %v2158
  %v2162 = vmul.f32 %v2096, %v2158
  %v2163 = vmul.f32 %v2097, %v2158
  %v2164 = vmul.f32 %v2098, %v2158
  %v2165 = vmul.f32 %v2099, %v2158
  %v2166 = vmul.f32 %v2100, %v2158
  %v2167 = vmul.f32 %v2101, %v2158
  %v2168 = vmul.f32 %v2102, %v2158
  %v2169 = vmul.f32 %v2103, %v2158
  %v2170 = vmul.f32 %v2104, %v2158
  %v2171 = vmul.f32 %v2105, %v2158
  %v2172 = vmul.f32 %v2106, %v2158
  %v2173 = vmul.f32 %v2107, %v2158
  %v2174 = vmul.f32 %v2108, %v2158
  %v2175 = vmul.f32 %v2109, %v2158
  %v2176 = vmul.f32 %v2110, %v2158
  %v2177 = vmul.f32 %v2111, %v2158
  %v2178 = vmul.f32 %v2112, %v2158
  %v2179 = vmul.f32 %v2113, %v2158
  %v2180 = vmul.f32 %v2114, %v2158
  %v2181 = vmul.f32 %v2115, %v2158
  %v2182 = vmul.f32 %v2116, %v2158
  %v2183 = vmul.f32 %v2117, %v2158
  %v2184 = vmul.f32 %v2118, %v2158
  %v2185 = vmul.f32 %v2119, %v2158
  %v2186 = vmul.f32 %v2120, %v2158
  %v2187 = vmul.f32 %v2121, %v2158
  %v2188 = vmul.f32 %v2122, %v2158
  %v2189 = vmul.f32 %v2123, %v2158
  %v2190 = vmul.f32 %v2124, %v2158
  %v2191 = vmul.f32 %v2125, %v2158
  %v2192 = vmul.f32 %v2126, %v2158
  %v2193 = vmul.f32 %v2127, %v2158
  %v2194 = vmul.f32 %v2128, %v2158
  %v2195 = vmul.f32 %v2129, %v2158
  %v2196 = vmul.f32 %v2130, %v2158
  %v2197 = vmul.f32 %v2131, %v2158
  %v2198 = vmul.f32 %v2132, %v2158
  %v2199 = vmul.f32 %v2133, %v2158
  %v2200 = vmul.f32 %v2134, %v2158
  %v2201 = vmul.f32 %v2135, %v2158
  %v2202 = vmul.f32 %v2136, %v2158
  %v2203 = vmul.f32 %v2137, %v2158
  %v2204 = vmul.f32 %v2138, %v2158
  %v2205 = vmul.f32 %v2139, %v2158
  %v2206 = vmul.f32 %v2140, %v2158
  %v2207 = vmul.f32 %v2141, %v2158
  %v2208 = vmul.f32 %v2142, %v2158
  %v2209 = vmul.f32 %v2143, %v2158
  %v2210 = vmul.f32 %v2144, %v2158
  %v2211 = vmul.f32 %v2145, %v2158
  %v2212 = vmul.f32 %v2146, %v2158
  %v2213 = vmul.f32 %v2147, %v2158
  %v2214 = vmul.f32 %v2148, %v2158
  %v2215 = vmul.f32 %v2149, %v2158
  %v2216 = vmul.f32 %v2150, %v2158
  %v2217 = vmul.f32 %v2151, %v2158
  %v2218 = vmul.f32 %v2152, %v2158
  %v2219 = vmul.f32 %v2153, %v2158
  %v2220 = vmul.f32 %v2154, %v2158
  %v2221 = vmul.f32 %v2155, %v2158
  %v2222 = vmul.f32 %v2156, %v2158
  %v2224 = vlaneseq
  %v2225 = vshrl.u32 %v2224, 7
  %v2226 = vsub.s32 0, %v2225
  %v2227 = vrot.slane %v1885, %v2226
  %v2229 = vmul.f32 %v2159, %v2227
  %v2230 = vmul.f32 %v2160, %v2227
  %v2231 = vmul.f32 %v2161, %v2227
  %v2232 = vmul.f32 %v2162, %v2227
  %v2233 = vmul.f32 %v2163, %v2227
  %v2234 = vmul.f32 %v2164, %v2227
  %v2235 = vmul.f32 %v2165, %v2227
  %v2236 = vmul.f32 %v2166, %v2227
  %v2237 = vmul.f32 %v2167, %v2227
  %v2238 = vmul.f32 %v2168, %v2227
  %v2239 = vmul.f32 %v2169, %v2227
  %v2240 = vmul.f32 %v2170, %v2227
  %v2241 = vmul.f32 %v2171, %v2227
  %v2242 = vmul.f32 %v2172, %v2227
  %v2243 = vmul.f32 %v2173, %v2227
  %v2244 = vmul.f32 %v2174, %v2227
  %v2245 = vmul.f32 %v2175, %v2227
  %v2246 = vmul.f32 %v2176, %v2227
  %v2247 = vmul.f32 %v2177, %v2227
  %v2248 = vmul.f32 %v2178, %v2227
  %v2249 = vmul.f32 %v2179, %v2227
  %v2250 = vmul.f32 %v2180, %v2227
  %v2251 = vmul.f32 %v2181, %v2227
  %v2252 = vmul.f32 %v2182, %v2227
  %v2253 = vmul.f32 %v2183, %v2227
  %v2254 = vmul.f32 %v2184, %v2227
  %v2255 = vmul.f32 %v2185, %v2227
  %v2256 = vmul.f32 %v2186, %v2227
  %v2257 = vmul.f32 %v2187, %v2227
  %v2258 = vmul.f32 %v2188, %v2227
  %v2259 = vmul.f32 %v2189, %v2227
  %v2260 = vmul.f32 %v2190, %v2227
  %v2261 = vmul.f32 %v2191, %v2227
  %v2262 = vmul.f32 %v2192, %v2227
  %v2263 = vmul.f32 %v2193, %v2227
  %v2264 = vmul.f32 %v2194, %v2227
  %v2265 = vmul.f32 %v2195, %v2227
  %v2266 = vmul.f32 %v2196, %v2227
  %v2267 = vmul.f32 %v2197, %v2227
  %v2268 = vmul.f32 %v2198, %v2227
  %v2269 = vmul.f32 %v2199, %v2227
  %v2270 = vmul.f32 %v2200, %v2227
  %v2271 = vmul.f32 %v2201, %v2227
  %v2272 = vmul.f32 %v2202, %v2227
  %v2273 = vmul.f32 %v2203, %v2227
  %v2274 = vmul.f32 %v2204, %v2227
  %v2275 = vmul.f32 %v2205, %v2227
  %v2276 = vmul.f32 %v2206, %v2227
  %v2277 = vmul.f32 %v2207, %v2227
  %v2278 = vmul.f32 %v2208, %v2227
  %v2279 = vmul.f32 %v2209, %v2227
  %v2280 = vmul.f32 %v2210, %v2227
  %v2281 = vmul.f32 %v2211, %v2227
  %v2282 = vmul.f32 %v2212, %v2227
  %v2283 = vmul.f32 %v2213, %v2227
  %v2284 = vmul.f32 %v2214, %v2227
  %v2285 = vmul.f32 %v2215, %v2227
  %v2286 = vmul.f32 %v2216, %v2227
  %v2287 = vmul.f32 %v2217, %v2227
  %v2288 = vmul.f32 %v2218, %v2227
  %v2289 = vmul.f32 %v2219, %v2227
  %v2290 = vmul.f32 %v2220, %v2227
  %v2291 = vmul.f32 %v2221, %v2227
  %v2292 = vmul.f32 %v2222, %v2227
  %v2294 = vlaneseq
  %v2295 = vshrl.u32 %v2294, 7
  %v2296 = vsub.s32 0, %v2295
  %v2297 = vrot.slane %v1886, %v2296
  %v2299 = vadd.f32 %v2229, %v2297
  %v2300 = vadd.f32 %v2230, %v2297
  %v2301 = vadd.f32 %v2231, %v2297
  %v2302 = vadd.f32 %v2232, %v2297
  %v2303 = vadd.f32 %v2233, %v2297
  %v2304 = vadd.f32 %v2234, %v2297
  %v2305 = vadd.f32 %v2235, %v2297
  %v2306 = vadd.f32 %v2236, %v2297
  %v2307 = vadd.f32 %v2237, %v2297
  %v2308 = vadd.f32 %v2238, %v2297
  %v2309 = vadd.f32 %v2239, %v2297
  %v2310 = vadd.f32 %v2240, %v2297
  %v2311 = vadd.f32 %v2241, %v2297
  %v2312 = vadd.f32 %v2242, %v2297
  %v2313 = vadd.f32 %v2243, %v2297
  %v2314 = vadd.f32 %v2244, %v2297
  %v2315 = vadd.f32 %v2245, %v2297
  %v2316 = vadd.f32 %v2246, %v2297
  %v2317 = vadd.f32 %v2247, %v2297
  %v2318 = vadd.f32 %v2248, %v2297
  %v2319 = vadd.f32 %v2249, %v2297
  %v2320 = vadd.f32 %v2250, %v2297
  %v2321 = vadd.f32 %v2251, %v2297
  %v2322 = vadd.f32 %v2252, %v2297
  %v2323 = vadd.f32 %v2253, %v2297
  %v2324 = vadd.f32 %v2254, %v2297
  %v2325 = vadd.f32 %v2255, %v2297
  %v2326 = vadd.f32 %v2256, %v2297
  %v2327 = vadd.f32 %v2257, %v2297
  %v2328 = vadd.f32 %v2258, %v2297
  %v2329 = vadd.f32 %v2259, %v2297
  %v2330 = vadd.f32 %v2260, %v2297
  %v2331 = vadd.f32 %v2261, %v2297
  %v2332 = vadd.f32 %v2262, %v2297
  %v2333 = vadd.f32 %v2263, %v2297
  %v2334 = vadd.f32 %v2264, %v2297
  %v2335 = vadd.f32 %v2265, %v2297
  %v2336 = vadd.f32 %v2266, %v2297
  %v2337 = vadd.f32 %v2267, %v2297
  %v2338 = vadd.f32 %v2268, %v2297
  %v2339 = vadd.f32 %v2269, %v2297
  %v2340 = vadd.f32 %v2270, %v2297
  %v2341 = vadd.f32 %v2271, %v2297
  %v2342 = vadd.f32 %v2272, %v2297
  %v2343 = vadd.f32 %v2273, %v2297
  %v2344 = vadd.f32 %v2274, %v2297
  %v2345 = vadd.f32 %v2275, %v2297
  %v2346 = vadd.f32 %v2276, %v2297
  %v2347 = vadd.f32 %v2277, %v2297
  %v2348 = vadd.f32 %v2278, %v2297
  %v2349 = vadd.f32 %v2279, %v2297
  %v2350 = vadd.f32 %v2280, %v2297
  %v2351 = vadd.f32 %v2281, %v2297
  %v2352 = vadd.f32 %v2282, %v2297
  %v2353 = vadd.f32 %v2283, %v2297
  %v2354 = vadd.f32 %v2284, %v2297
  %v2355 = vadd.f32 %v2285, %v2297
  %v2356 = vadd.f32 %v2286, %v2297
  %v2357 = vadd.f32 %v2287, %v2297
  %v2358 = vadd.f32 %v2288, %v2297
  %v2359 = vadd.f32 %v2289, %v2297
  %v2360 = vadd.f32 %v2290, %v2297
  %v2361 = vadd.f32 %v2291, %v2297
  %v2362 = vadd.f32 %v2292, %v2297
  %v2363 = vmax.f32 %v2299, 0.0
  %v2364 = vmax.f32 %v2300, 0.0
  %v2365 = vmax.f32 %v2301, 0.0
  %v2366 = vmax.f32 %v2302, 0.0
  %v2367 = vmax.f32 %v2303, 0.0
  %v2368 = vmax.f32 %v2304, 0.0
  %v2369 = vmax.f32 %v2305, 0.0
  %v2370 = vmax.f32 %v2306, 0.0
  %v2371 = vmax.f32 %v2307, 0.0
  %v2372 = vmax.f32 %v2308, 0.0
  %v2373 = vmax.f32 %v2309, 0.0
  %v2374 = vmax.f32 %v2310, 0.0
  %v2375 = vmax.f32 %v2311, 0.0
  %v2376 = vmax.f32 %v2312, 0.0
  %v2377 = vmax.f32 %v2313, 0.0
  %v2378 = vmax.f32 %v2314, 0.0
  %v2379 = vmax.f32 %v2315, 0.0
  %v2380 = vmax.f32 %v2316, 0.0
  %v2381 = vmax.f32 %v2317, 0.0
  %v2382 = vmax.f32 %v2318, 0.0
  %v2383 = vmax.f32 %v2319, 0.0
  %v2384 = vmax.f32 %v2320, 0.0
  %v2385 = vmax.f32 %v2321, 0.0
  %v2386 = vmax.f32 %v2322, 0.0
  %v2387 = vmax.f32 %v2323, 0.0
  %v2388 = vmax.f32 %v2324, 0.0
  %v2389 = vmax.f32 %v2325, 0.0
  %v2390 = vmax.f32 %v2326, 0.0
  %v2391 = vmax.f32 %v2327, 0.0
  %v2392 = vmax.f32 %v2328, 0.0
  %v2393 = vmax.f32 %v2329, 0.0
  %v2394 = vmax.f32 %v2330, 0.0
  %v2395 = vmax.f32 %v2331, 0.0
  %v2396 = vmax.f32 %v2332, 0.0
  %v2397 = vmax.f32 %v2333, 0.0
  %v2398 = vmax.f32 %v2334, 0.0
  %v2399 = vmax.f32 %v2335, 0.0
  %v2400 = vmax.f32 %v2336, 0.0
  %v2401 = vmax.f32 %v2337, 0.0
  %v2402 = vmax.f32 %v2338, 0.0
  %v2403 = vmax.f32 %v2339, 0.0
  %v2404 = vmax.f32 %v2340, 0.0
  %v2405 = vmax.f32 %v2341, 0.0
  %v2406 = vmax.f32 %v2342, 0.0
  %v2407 = vmax.f32 %v2343, 0.0
  %v2408 = vmax.f32 %v2344, 0.0
  %v2409 = vmax.f32 %v2345, 0.0
  %v2410 = vmax.f32 %v2346, 0.0
  %v2411 = vmax.f32 %v2347, 0.0
  %v2412 = vmax.f32 %v2348, 0.0
  %v2413 = vmax.f32 %v2349, 0.0
  %v2414 = vmax.f32 %v2350, 0.0
  %v2415 = vmax.f32 %v2351, 0.0
  %v2416 = vmax.f32 %v2352, 0.0
  %v2417 = vmax.f32 %v2353, 0.0
  %v2418 = vmax.f32 %v2354, 0.0
  %v2419 = vmax.f32 %v2355, 0.0
  %v2420 = vmax.f32 %v2356, 0.0
  %v2421 = vmax.f32 %v2357, 0.0
  %v2422 = vmax.f32 %v2358, 0.0
  %v2423 = vmax.f32 %v2359, 0.0
  %v2424 = vmax.f32 %v2360, 0.0
  %v2425 = vmax.f32 %v2361, 0.0
  %v2426 = vmax.f32 %v2362, 0.0
  %v2427 = vpack.c.bf16 %v2364, %v2363
  %v2428 = vpack.c.bf16 %v2366, %v2365
  %v2429 = vpack.c.bf16 %v2368, %v2367
  %v2430 = vpack.c.bf16 %v2370, %v2369
  %v2431 = vpack.c.bf16 %v2372, %v2371
  %v2432 = vpack.c.bf16 %v2374, %v2373
  %v2433 = vpack.c.bf16 %v2376, %v2375
  %v2434 = vpack.c.bf16 %v2378, %v2377
  %v2435 = vpack.c.bf16 %v2380, %v2379
  %v2436 = vpack.c.bf16 %v2382, %v2381
  %v2437 = vpack.c.bf16 %v2384, %v2383
  %v2438 = vpack.c.bf16 %v2386, %v2385
  %v2439 = vpack.c.bf16 %v2388, %v2387
  %v2440 = vpack.c.bf16 %v2390, %v2389
  %v2441 = vpack.c.bf16 %v2392, %v2391
  %v2442 = vpack.c.bf16 %v2394, %v2393
  %v2443 = vpack.c.bf16 %v2396, %v2395
  %v2444 = vpack.c.bf16 %v2398, %v2397
  %v2445 = vpack.c.bf16 %v2400, %v2399
  %v2446 = vpack.c.bf16 %v2402, %v2401
  %v2447 = vpack.c.bf16 %v2404, %v2403
  %v2448 = vpack.c.bf16 %v2406, %v2405
  %v2449 = vpack.c.bf16 %v2408, %v2407
  %v2450 = vpack.c.bf16 %v2410, %v2409
  %v2451 = vpack.c.bf16 %v2412, %v2411
  %v2452 = vpack.c.bf16 %v2414, %v2413
  %v2453 = vpack.c.bf16 %v2416, %v2415
  %v2454 = vpack.c.bf16 %v2418, %v2417
  %v2455 = vpack.c.bf16 %v2420, %v2419
  %v2456 = vpack.c.bf16 %v2422, %v2421
  %v2457 = vpack.c.bf16 %v2424, %v2423
  %v2458 = vpack.c.bf16 %v2426, %v2425
  %v2459 = vld [vmem:[%s7] sm:$0xf]
  %v2460 = vld [vmem:[%s7 + $0x4] sm:$0xf]
  %v2461 = vld [vmem:[%s7 + $0x8] sm:$0xf]
  %v2462 = vld [vmem:[%s7 + $0xc] sm:$0xf]
  %v2463 = vld [vmem:[%s7 + $0x10] sm:$0xf]
  %v2464 = vld [vmem:[%s7 + $0x14] sm:$0xf]
  %v2465 = vld [vmem:[%s7 + $0x18] sm:$0xf]
  %v2466 = vld [vmem:[%s7 + $0x1c] sm:$0xf]
  %v2467 = vld [vmem:[%s7 + $0x20] sm:$0xf]
  %v2468 = vld [vmem:[%s7 + $0x24] sm:$0xf]
  %v2469 = vld [vmem:[%s7 + $0x28] sm:$0xf]
  %v2470 = vld [vmem:[%s7 + $0x2c] sm:$0xf]
  %v2471 = vld [vmem:[%s7 + $0x30] sm:$0xf]
  %v2472 = vld [vmem:[%s7 + $0x34] sm:$0xf]
  %v2473 = vld [vmem:[%s7 + $0x38] sm:$0xf]
  %v2474 = vld [vmem:[%s7 + $0x3c] sm:$0xf]
  %v2475 = vld [vmem:[%s8] sm:$0x1]
  %v2477 = vlaneseq
  %v2478 = vshrl.u32 %v2477, 7
  %v2479 = vsub.s32 0, %v2478
  %v2480 = vrot.slane %v2475, %v2479
  %v2498 = vunpack.c.l.b16 %v2459
  %v2499 = vunpack.c.l.b16 %v2460
  %v2500 = vunpack.c.l.b16 %v2461
  %v2501 = vunpack.c.l.b16 %v2462
  %v2502 = vunpack.c.l.b16 %v2463
  %v2503 = vunpack.c.l.b16 %v2464
  %v2504 = vunpack.c.l.b16 %v2465
  %v2505 = vunpack.c.l.b16 %v2466
  %v2506 = vunpack.c.l.b16 %v2467
  %v2507 = vunpack.c.l.b16 %v2468
  %v2508 = vunpack.c.l.b16 %v2469
  %v2509 = vunpack.c.l.b16 %v2470
  %v2510 = vunpack.c.l.b16 %v2471
  %v2511 = vunpack.c.l.b16 %v2472
  %v2512 = vunpack.c.l.b16 %v2473
  %v2513 = vunpack.c.l.b16 %v2474
  %v2514 = vpack.c.b16 %v2499, %v2498
  %v2515 = vpack.c.b16 %v2501, %v2500
  %v2516 = vpack.c.b16 %v2503, %v2502
  %v2517 = vpack.c.b16 %v2505, %v2504
  %v2518 = vpack.c.b16 %v2507, %v2506
  %v2519 = vpack.c.b16 %v2509, %v2508
  %v2520 = vpack.c.b16 %v2511, %v2510
  %v2521 = vpack.c.b16 %v2513, %v2512
  %2530 = vmatprep.subr.bf16.mxu0 0
  %2531 = vmatpush1.bf16.msra.mxu0 %v2521
  %2532 = vmatprep.subr.bf16.mxu0 0
  %2533 = vmatpush1.bf16.msra.mxu0 %v2520
  %2534 = vmatprep.subr.bf16.mxu0 0
  %2535 = vmatpush1.bf16.msra.mxu0 %v2519
  %2536 = vmatprep.subr.bf16.mxu0 0
  %2537 = vmatpush1.bf16.msra.mxu0 %v2518
  %2538 = vmatprep.subr.bf16.mxu0 0
  %2539 = vmatpush1.bf16.msra.mxu0 %v2517
  %2540 = vmatprep.subr.bf16.mxu0 0
  %2541 = vmatpush1.bf16.msra.mxu0 %v2516
  %2542 = vmatprep.subr.bf16.mxu0 0
  %2543 = vmatpush1.bf16.msra.mxu0 %v2515
  %2544 = vmatprep.subr.bf16.mxu0 0
  %2545 = vmatpush1.bf16.msra.mxu0 %v2514
  %2546 = vmatprep.subr.bf16.mxu0 0
  %2547 = vmatpush2.bf16.msra.mxu0 0
  %2548 = vmatprep.subr.bf16.mxu0 0
  %2549 = vmatpush2.bf16.msra.mxu0 0
  %2550 = vmatprep.subr.bf16.mxu0 0
  %2551 = vmatpush2.bf16.msra.mxu0 0
  %2552 = vmatprep.subr.bf16.mxu0 0
  %2553 = vmatpush2.bf16.msra.mxu0 0
  %2554 = vmatprep.subr.bf16.mxu0 0
  %2555 = vmatpush2.bf16.msra.mxu0 0
  %2556 = vmatprep.subr.bf16.mxu0 0
  %2557 = vmatpush2.bf16.msra.mxu0 0
  %2558 = vmatprep.subr.bf16.mxu0 0
  %2559 = vmatpush2.bf16.msra.mxu0 0
  %2560 = vmatprep.subr.bf16.mxu0 0
  %2561 = vmatpush2.bf16.msra.mxu0 0
  %2562 = vmatprep.mubr.bf16.mxu0 0
  %2563 = vmatmul.mubr.bf16.gmra.mxu0 %v2427
  %v2564 = vpop.f32.mrf.mxu0
  %v2565 = vadd.f32 %v2480, %v2564
  %v2566 = vpop.f32.mrf.mxu0
  %v2567 = vpop.f32.mrf.mxu0
  %v2568 = vadd.f32 %v2480, %v2567
  %v2569 = vpop.f32.mrf.mxu0
  %2570 = vmatprep.mubr.bf16.mxu0 0
  %2571 = vmatmul.mubr.bf16.gmra.mxu0 %v2428
  %v2572 = vpop.f32.mrf.mxu0
  %v2573 = vadd.f32 %v2480, %v2572
  %v2574 = vpop.f32.mrf.mxu0
  %v2575 = vpop.f32.mrf.mxu0
  %v2576 = vadd.f32 %v2480, %v2575
  %v2577 = vpop.f32.mrf.mxu0
  %2578 = vmatprep.mubr.bf16.mxu0 0
  %2579 = vmatmul.mubr.bf16.gmra.mxu0 %v2429
  %v2580 = vpop.f32.mrf.mxu0
  %v2581 = vadd.f32 %v2480, %v2580
  %v2582 = vpop.f32.mrf.mxu0
  %v2583 = vpop.f32.mrf.mxu0
  %v2584 = vadd.f32 %v2480, %v2583
  %v2585 = vpop.f32.mrf.mxu0
  %2586 = vmatprep.mubr.bf16.mxu0 0
  %2587 = vmatmul.mubr.bf16.gmra.mxu0 %v2430
  %v2588 = vpop.f32.mrf.mxu0
  %v2589 = vadd.f32 %v2480, %v2588
  %v2590 = vpop.f32.mrf.mxu0
  %v2591 = vpop.f32.mrf.mxu0
  %v2592 = vadd.f32 %v2480, %v2591
  %v2593 = vpop.f32.mrf.mxu0
  %2594 = vmatprep.mubr.bf16.mxu0 0
  %2595 = vmatmul.mubr.bf16.gmra.mxu0 %v2431
  %v2596 = vpop.f32.mrf.mxu0
  %v2597 = vadd.f32 %v2480, %v2596
  %v2598 = vpop.f32.mrf.mxu0
  %v2599 = vpop.f32.mrf.mxu0
  %v2600 = vadd.f32 %v2480, %v2599
  %v2601 = vpop.f32.mrf.mxu0
  %2602 = vmatprep.mubr.bf16.mxu0 0
  %2603 = vmatmul.mubr.bf16.gmra.mxu0 %v2432
  %v2604 = vpop.f32.mrf.mxu0
  %v2605 = vadd.f32 %v2480, %v2604
  %v2606 = vpop.f32.mrf.mxu0
  %v2607 = vpop.f32.mrf.mxu0
  %v2608 = vadd.f32 %v2480, %v2607
  %v2609 = vpop.f32.mrf.mxu0
  %2610 = vmatprep.mubr.bf16.mxu0 0
  %2611 = vmatmul.mubr.bf16.gmra.mxu0 %v2433
  %v2612 = vpop.f32.mrf.mxu0
  %v2613 = vadd.f32 %v2480, %v2612
  %v2614 = vpop.f32.mrf.mxu0
  %v2615 = vpop.f32.mrf.mxu0
  %v2616 = vadd.f32 %v2480, %v2615
  %v2617 = vpop.f32.mrf.mxu0
  %2618 = vmatprep.mubr.bf16.mxu0 0
  %2619 = vmatmul.mubr.bf16.gmra.mxu0 %v2434
  %v2620 = vpop.f32.mrf.mxu0
  %v2621 = vadd.f32 %v2480, %v2620
  %v2622 = vpop.f32.mrf.mxu0
  %v2623 = vpop.f32.mrf.mxu0
  %v2624 = vadd.f32 %v2480, %v2623
  %v2625 = vpop.f32.mrf.mxu0
  %2626 = vmatprep.mubr.bf16.mxu0 0
  %2627 = vmatmul.mubr.bf16.gmra.mxu0 %v2435
  %v2628 = vpop.f32.mrf.mxu0
  %v2629 = vadd.f32 %v2480, %v2628
  %v2630 = vpop.f32.mrf.mxu0
  %v2631 = vpop.f32.mrf.mxu0
  %v2632 = vadd.f32 %v2480, %v2631
  %v2633 = vpop.f32.mrf.mxu0
  %2634 = vmatprep.mubr.bf16.mxu0 0
  %2635 = vmatmul.mubr.bf16.gmra.mxu0 %v2436
  %v2636 = vpop.f32.mrf.mxu0
  %v2637 = vadd.f32 %v2480, %v2636
  %v2638 = vpop.f32.mrf.mxu0
  %v2639 = vpop.f32.mrf.mxu0
  %v2640 = vadd.f32 %v2480, %v2639
  %v2641 = vpop.f32.mrf.mxu0
  %2642 = vmatprep.mubr.bf16.mxu0 0
  %2643 = vmatmul.mubr.bf16.gmra.mxu0 %v2437
  %v2644 = vpop.f32.mrf.mxu0
  %v2645 = vadd.f32 %v2480, %v2644
  %v2646 = vpop.f32.mrf.mxu0
  %v2647 = vpop.f32.mrf.mxu0
  %v2648 = vadd.f32 %v2480, %v2647
  %v2649 = vpop.f32.mrf.mxu0
  %2650 = vmatprep.mubr.bf16.mxu0 0
  %2651 = vmatmul.mubr.bf16.gmra.mxu0 %v2438
  %v2652 = vpop.f32.mrf.mxu0
  %v2653 = vadd.f32 %v2480, %v2652
  %v2654 = vpop.f32.mrf.mxu0
  %v2655 = vpop.f32.mrf.mxu0
  %v2656 = vadd.f32 %v2480, %v2655
  %v2657 = vpop.f32.mrf.mxu0
  %2658 = vmatprep.mubr.bf16.mxu0 0
  %2659 = vmatmul.mubr.bf16.gmra.mxu0 %v2439
  %v2660 = vpop.f32.mrf.mxu0
  %v2661 = vadd.f32 %v2480, %v2660
  %v2662 = vpop.f32.mrf.mxu0
  %v2663 = vpop.f32.mrf.mxu0
  %v2664 = vadd.f32 %v2480, %v2663
  %v2665 = vpop.f32.mrf.mxu0
  %2666 = vmatprep.mubr.bf16.mxu0 0
  %2667 = vmatmul.mubr.bf16.gmra.mxu0 %v2440
  %v2668 = vpop.f32.mrf.mxu0
  %v2669 = vadd.f32 %v2480, %v2668
  %v2670 = vpop.f32.mrf.mxu0
  %v2671 = vpop.f32.mrf.mxu0
  %v2672 = vadd.f32 %v2480, %v2671
  %v2673 = vpop.f32.mrf.mxu0
  %2674 = vmatprep.mubr.bf16.mxu0 0
  %2675 = vmatmul.mubr.bf16.gmra.mxu0 %v2441
  %v2676 = vpop.f32.mrf.mxu0
  %v2677 = vadd.f32 %v2480, %v2676
  %v2678 = vpop.f32.mrf.mxu0
  %v2679 = vpop.f32.mrf.mxu0
  %v2680 = vadd.f32 %v2480, %v2679
  %v2681 = vpop.f32.mrf.mxu0
  %2682 = vmatprep.mubr.bf16.mxu0 0
  %2683 = vmatmul.mubr.bf16.gmra.mxu0 %v2442
  %v2684 = vpop.f32.mrf.mxu0
  %v2685 = vadd.f32 %v2480, %v2684
  %v2686 = vpop.f32.mrf.mxu0
  %v2687 = vpop.f32.mrf.mxu0
  %v2688 = vadd.f32 %v2480, %v2687
  %v2689 = vpop.f32.mrf.mxu0
  %2690 = vmatprep.mubr.bf16.mxu0 0
  %2691 = vmatmul.mubr.bf16.gmra.mxu0 %v2443
  %v2692 = vpop.f32.mrf.mxu0
  %v2693 = vadd.f32 %v2480, %v2692
  %v2694 = vpop.f32.mrf.mxu0
  %v2695 = vpop.f32.mrf.mxu0
  %v2696 = vadd.f32 %v2480, %v2695
  %v2697 = vpop.f32.mrf.mxu0
  %2698 = vmatprep.mubr.bf16.mxu0 0
  %2699 = vmatmul.mubr.bf16.gmra.mxu0 %v2444
  %v2700 = vpop.f32.mrf.mxu0
  %v2701 = vadd.f32 %v2480, %v2700
  %v2702 = vpop.f32.mrf.mxu0
  %v2703 = vpop.f32.mrf.mxu0
  %v2704 = vadd.f32 %v2480, %v2703
  %v2705 = vpop.f32.mrf.mxu0
  %2706 = vmatprep.mubr.bf16.mxu0 0
  %2707 = vmatmul.mubr.bf16.gmra.mxu0 %v2445
  %v2708 = vpop.f32.mrf.mxu0
  %v2709 = vadd.f32 %v2480, %v2708
  %v2710 = vpop.f32.mrf.mxu0
  %v2711 = vpop.f32.mrf.mxu0
  %v2712 = vadd.f32 %v2480, %v2711
  %v2713 = vpop.f32.mrf.mxu0
  %2714 = vmatprep.mubr.bf16.mxu0 0
  %2715 = vmatmul.mubr.bf16.gmra.mxu0 %v2446
  %v2716 = vpop.f32.mrf.mxu0
  %v2717 = vadd.f32 %v2480, %v2716
  %v2718 = vpop.f32.mrf.mxu0
  %v2719 = vpop.f32.mrf.mxu0
  %v2720 = vadd.f32 %v2480, %v2719
  %v2721 = vpop.f32.mrf.mxu0
  %2722 = vmatprep.mubr.bf16.mxu0 0
  %2723 = vmatmul.mubr.bf16.gmra.mxu0 %v2447
  %v2724 = vpop.f32.mrf.mxu0
  %v2725 = vadd.f32 %v2480, %v2724
  %v2726 = vpop.f32.mrf.mxu0
  %v2727 = vpop.f32.mrf.mxu0
  %v2728 = vadd.f32 %v2480, %v2727
  %v2729 = vpop.f32.mrf.mxu0
  %2730 = vmatprep.mubr.bf16.mxu0 0
  %2731 = vmatmul.mubr.bf16.gmra.mxu0 %v2448
  %v2732 = vpop.f32.mrf.mxu0
  %v2733 = vadd.f32 %v2480, %v2732
  %v2734 = vpop.f32.mrf.mxu0
  %v2735 = vpop.f32.mrf.mxu0
  %v2736 = vadd.f32 %v2480, %v2735
  %v2737 = vpop.f32.mrf.mxu0
  %2738 = vmatprep.mubr.bf16.mxu0 0
  %2739 = vmatmul.mubr.bf16.gmra.mxu0 %v2449
  %v2740 = vpop.f32.mrf.mxu0
  %v2741 = vadd.f32 %v2480, %v2740
  %v2742 = vpop.f32.mrf.mxu0
  %v2743 = vpop.f32.mrf.mxu0
  %v2744 = vadd.f32 %v2480, %v2743
  %v2745 = vpop.f32.mrf.mxu0
  %2746 = vmatprep.mubr.bf16.mxu0 0
  %2747 = vmatmul.mubr.bf16.gmra.mxu0 %v2450
  %v2748 = vpop.f32.mrf.mxu0
  %v2749 = vadd.f32 %v2480, %v2748
  %v2750 = vpop.f32.mrf.mxu0
  %v2751 = vpop.f32.mrf.mxu0
  %v2752 = vadd.f32 %v2480, %v2751
  %v2753 = vpop.f32.mrf.mxu0
  %2754 = vmatprep.mubr.bf16.mxu0 0
  %2755 = vmatmul.mubr.bf16.gmra.mxu0 %v2451
  %v2756 = vpop.f32.mrf.mxu0
  %v2757 = vadd.f32 %v2480, %v2756
  %v2758 = vpop.f32.mrf.mxu0
  %v2759 = vpop.f32.mrf.mxu0
  %v2760 = vadd.f32 %v2480, %v2759
  %v2761 = vpop.f32.mrf.mxu0
  %2762 = vmatprep.mubr.bf16.mxu0 0
  %2763 = vmatmul.mubr.bf16.gmra.mxu0 %v2452
  %v2764 = vpop.f32.mrf.mxu0
  %v2765 = vadd.f32 %v2480, %v2764
  %v2766 = vpop.f32.mrf.mxu0
  %v2767 = vpop.f32.mrf.mxu0
  %v2768 = vadd.f32 %v2480, %v2767
  %v2769 = vpop.f32.mrf.mxu0
  %2770 = vmatprep.mubr.bf16.mxu0 0
  %2771 = vmatmul.mubr.bf16.gmra.mxu0 %v2453
  %v2772 = vpop.f32.mrf.mxu0
  %v2773 = vadd.f32 %v2480, %v2772
  %v2774 = vpop.f32.mrf.mxu0
  %v2775 = vpop.f32.mrf.mxu0
  %v2776 = vadd.f32 %v2480, %v2775
  %v2777 = vpop.f32.mrf.mxu0
  %2778 = vmatprep.mubr.bf16.mxu0 0
  %2779 = vmatmul.mubr.bf16.gmra.mxu0 %v2454
  %v2780 = vpop.f32.mrf.mxu0
  %v2781 = vadd.f32 %v2480, %v2780
  %v2782 = vpop.f32.mrf.mxu0
  %v2783 = vpop.f32.mrf.mxu0
  %v2784 = vadd.f32 %v2480, %v2783
  %v2785 = vpop.f32.mrf.mxu0
  %2786 = vmatprep.mubr.bf16.mxu0 0
  %2787 = vmatmul.mubr.bf16.gmra.mxu0 %v2455
  %v2788 = vpop.f32.mrf.mxu0
  %v2789 = vadd.f32 %v2480, %v2788
  %v2790 = vpop.f32.mrf.mxu0
  %v2791 = vpop.f32.mrf.mxu0
  %v2792 = vadd.f32 %v2480, %v2791
  %v2793 = vpop.f32.mrf.mxu0
  %2794 = vmatprep.mubr.bf16.mxu0 0
  %2795 = vmatmul.mubr.bf16.gmra.mxu0 %v2456
  %v2796 = vpop.f32.mrf.mxu0
  %v2797 = vadd.f32 %v2480, %v2796
  %v2798 = vpop.f32.mrf.mxu0
  %v2799 = vpop.f32.mrf.mxu0
  %v2800 = vadd.f32 %v2480, %v2799
  %v2801 = vpop.f32.mrf.mxu0
  %2802 = vmatprep.mubr.bf16.mxu0 0
  %2803 = vmatmul.mubr.bf16.gmra.mxu0 %v2457
  %v2804 = vpop.f32.mrf.mxu0
  %v2805 = vadd.f32 %v2480, %v2804
  %v2806 = vpop.f32.mrf.mxu0
  %v2807 = vpop.f32.mrf.mxu0
  %v2808 = vadd.f32 %v2480, %v2807
  %v2809 = vpop.f32.mrf.mxu0
  %2810 = vmatprep.mubr.bf16.mxu0 0
  %2811 = vmatmul.mubr.bf16.gmra.mxu0 %v2458
  %v2812 = vpop.f32.mrf.mxu0
  %v2813 = vadd.f32 %v2480, %v2812
  %v2814 = vpop.f32.mrf.mxu0
  %v2815 = vpop.f32.mrf.mxu0
  %v2816 = vadd.f32 %v2480, %v2815
  %v2817 = vpop.f32.mrf.mxu0
  %2818 = vdwg.mxu0
  %v2819 = vld [vmem:[%s9] sm:$0x1]
  %v2820 = vld [vmem:[%s10] sm:$0x1]
  %v2821 = vadd.f32 %v2565, %v2568
  %v2822 = vadd.f32 %v2821, %v2573
  %v2823 = vadd.f32 %v2822, %v2576
  %v2824 = vadd.f32 %v2823, %v2581
  %v2825 = vadd.f32 %v2824, %v2584
  %v2826 = vadd.f32 %v2825, %v2589
  %v2827 = vadd.f32 %v2826, %v2592
  %v2828 = vadd.f32 %v2827, %v2597
  %v2829 = vadd.f32 %v2828, %v2600
  %v2830 = vadd.f32 %v2829, %v2605
  %v2831 = vadd.f32 %v2830, %v2608
  %v2832 = vadd.f32 %v2831, %v2613
  %v2833 = vadd.f32 %v2832, %v2616
  %v2834 = vadd.f32 %v2833, %v2621
  %v2835 = vadd.f32 %v2834, %v2624
  %v2836 = vadd.f32 %v2835, %v2629
  %v2837 = vadd.f32 %v2836, %v2632
  %v2838 = vadd.f32 %v2837, %v2637
  %v2839 = vadd.f32 %v2838, %v2640
  %v2840 = vadd.f32 %v2839, %v2645
  %v2841 = vadd.f32 %v2840, %v2648
  %v2842 = vadd.f32 %v2841, %v2653
  %v2843 = vadd.f32 %v2842, %v2656
  %v2844 = vadd.f32 %v2843, %v2661
  %v2845 = vadd.f32 %v2844, %v2664
  %v2846 = vadd.f32 %v2845, %v2669
  %v2847 = vadd.f32 %v2846, %v2672
  %v2848 = vadd.f32 %v2847, %v2677
  %v2849 = vadd.f32 %v2848, %v2680
  %v2850 = vadd.f32 %v2849, %v2685
  %v2851 = vadd.f32 %v2850, %v2688
  %v2852 = vadd.f32 %v2851, %v2693
  %v2853 = vadd.f32 %v2852, %v2696
  %v2854 = vadd.f32 %v2853, %v2701
  %v2855 = vadd.f32 %v2854, %v2704
  %v2856 = vadd.f32 %v2855, %v2709
  %v2857 = vadd.f32 %v2856, %v2712
  %v2858 = vadd.f32 %v2857, %v2717
  %v2859 = vadd.f32 %v2858, %v2720
  %v2860 = vadd.f32 %v2859, %v2725
  %v2861 = vadd.f32 %v2860, %v2728
  %v2862 = vadd.f32 %v2861, %v2733
  %v2863 = vadd.f32 %v2862, %v2736
  %v2864 = vadd.f32 %v2863, %v2741
  %v2865 = vadd.f32 %v2864, %v2744
  %v2866 = vadd.f32 %v2865, %v2749
  %v2867 = vadd.f32 %v2866, %v2752
  %v2868 = vadd.f32 %v2867, %v2757
  %v2869 = vadd.f32 %v2868, %v2760
  %v2870 = vadd.f32 %v2869, %v2765
  %v2871 = vadd.f32 %v2870, %v2768
  %v2872 = vadd.f32 %v2871, %v2773
  %v2873 = vadd.f32 %v2872, %v2776
  %v2874 = vadd.f32 %v2873, %v2781
  %v2875 = vadd.f32 %v2874, %v2784
  %v2876 = vadd.f32 %v2875, %v2789
  %v2877 = vadd.f32 %v2876, %v2792
  %v2878 = vadd.f32 %v2877, %v2797
  %v2879 = vadd.f32 %v2878, %v2800
  %v2880 = vadd.f32 %v2879, %v2805
  %v2881 = vadd.f32 %v2880, %v2808
  %v2882 = vadd.f32 %v2881, %v2813
  %v2883 = vadd.f32 %v2882, %v2816
  %v2884 = vrot.slane %v2883, 4
  %v2885 = vadd.f32 %v2883, %v2884
  %v2886 = vrot.slane %v2885, 2
  %v2887 = vadd.f32 %v2885, %v2886
  %v2888 = vrot.slane %v2887, 1
  %v2889 = vadd.f32 %v2887, %v2888
  %v2890 = vmul.f32 %v2565, %v2565
  %v2891 = vmul.f32 %v2568, %v2568
  %v2892 = vmul.f32 %v2573, %v2573
  %v2893 = vmul.f32 %v2576, %v2576
  %v2894 = vmul.f32 %v2581, %v2581
  %v2895 = vmul.f32 %v2584, %v2584
  %v2896 = vmul.f32 %v2589, %v2589
  %v2897 = vmul.f32 %v2592, %v2592
  %v2898 = vmul.f32 %v2597, %v2597
  %v2899 = vmul.f32 %v2600, %v2600
  %v2900 = vmul.f32 %v2605, %v2605
  %v2901 = vmul.f32 %v2608, %v2608
  %v2902 = vmul.f32 %v2613, %v2613
  %v2903 = vmul.f32 %v2616, %v2616
  %v2904 = vmul.f32 %v2621, %v2621
  %v2905 = vmul.f32 %v2624, %v2624
  %v2906 = vmul.f32 %v2629, %v2629
  %v2907 = vmul.f32 %v2632, %v2632
  %v2908 = vmul.f32 %v2637, %v2637
  %v2909 = vmul.f32 %v2640, %v2640
  %v2910 = vmul.f32 %v2645, %v2645
  %v2911 = vmul.f32 %v2648, %v2648
  %v2912 = vmul.f32 %v2653, %v2653
  %v2913 = vmul.f32 %v2656, %v2656
  %v2914 = vmul.f32 %v2661, %v2661
  %v2915 = vmul.f32 %v2664, %v2664
  %v2916 = vmul.f32 %v2669, %v2669
  %v2917 = vmul.f32 %v2672, %v2672
  %v2918 = vmul.f32 %v2677, %v2677
  %v2919 = vmul.f32 %v2680, %v2680
  %v2920 = vmul.f32 %v2685, %v2685
  %v2921 = vmul.f32 %v2688, %v2688
  %v2922 = vmul.f32 %v2693, %v2693
  %v2923 = vmul.f32 %v2696, %v2696
  %v2924 = vmul.f32 %v2701, %v2701
  %v2925 = vmul.f32 %v2704, %v2704
  %v2926 = vmul.f32 %v2709, %v2709
  %v2927 = vmul.f32 %v2712, %v2712
  %v2928 = vmul.f32 %v2717, %v2717
  %v2929 = vmul.f32 %v2720, %v2720
  %v2930 = vmul.f32 %v2725, %v2725
  %v2931 = vmul.f32 %v2728, %v2728
  %v2932 = vmul.f32 %v2733, %v2733
  %v2933 = vmul.f32 %v2736, %v2736
  %v2934 = vmul.f32 %v2741, %v2741
  %v2935 = vmul.f32 %v2744, %v2744
  %v2936 = vmul.f32 %v2749, %v2749
  %v2937 = vmul.f32 %v2752, %v2752
  %v2938 = vmul.f32 %v2757, %v2757
  %v2939 = vmul.f32 %v2760, %v2760
  %v2940 = vmul.f32 %v2765, %v2765
  %v2941 = vmul.f32 %v2768, %v2768
  %v2942 = vmul.f32 %v2773, %v2773
  %v2943 = vmul.f32 %v2776, %v2776
  %v2944 = vmul.f32 %v2781, %v2781
  %v2945 = vmul.f32 %v2784, %v2784
  %v2946 = vmul.f32 %v2789, %v2789
  %v2947 = vmul.f32 %v2792, %v2792
  %v2948 = vmul.f32 %v2797, %v2797
  %v2949 = vmul.f32 %v2800, %v2800
  %v2950 = vmul.f32 %v2805, %v2805
  %v2951 = vmul.f32 %v2808, %v2808
  %v2952 = vmul.f32 %v2813, %v2813
  %v2953 = vmul.f32 %v2816, %v2816
  %v2954 = vadd.f32 %v2890, %v2891
  %v2955 = vadd.f32 %v2954, %v2892
  %v2956 = vadd.f32 %v2955, %v2893
  %v2957 = vadd.f32 %v2956, %v2894
  %v2958 = vadd.f32 %v2957, %v2895
  %v2959 = vadd.f32 %v2958, %v2896
  %v2960 = vadd.f32 %v2959, %v2897
  %v2961 = vadd.f32 %v2960, %v2898
  %v2962 = vadd.f32 %v2961, %v2899
  %v2963 = vadd.f32 %v2962, %v2900
  %v2964 = vadd.f32 %v2963, %v2901
  %v2965 = vadd.f32 %v2964, %v2902
  %v2966 = vadd.f32 %v2965, %v2903
  %v2967 = vadd.f32 %v2966, %v2904
  %v2968 = vadd.f32 %v2967, %v2905
  %v2969 = vadd.f32 %v2968, %v2906
  %v2970 = vadd.f32 %v2969, %v2907
  %v2971 = vadd.f32 %v2970, %v2908
  %v2972 = vadd.f32 %v2971, %v2909
  %v2973 = vadd.f32 %v2972, %v2910
  %v2974 = vadd.f32 %v2973, %v2911
  %v2975 = vadd.f32 %v2974, %v2912
  %v2976 = vadd.f32 %v2975, %v2913
  %v2977 = vadd.f32 %v2976, %v2914
  %v2978 = vadd.f32 %v2977, %v2915
  %v2979 = vadd.f32 %v2978, %v2916
  %v2980 = vadd.f32 %v2979, %v2917
  %v2981 = vadd.f32 %v2980, %v2918
  %v2982 = vadd.f32 %v2981, %v2919
  %v2983 = vadd.f32 %v2982, %v2920
  %v2984 = vadd.f32 %v2983, %v2921
  %v2985 = vadd.f32 %v2984, %v2922
  %v2986 = vadd.f32 %v2985, %v2923
  %v2987 = vadd.f32 %v2986, %v2924
  %v2988 = vadd.f32 %v2987, %v2925
  %v2989 = vadd.f32 %v2988, %v2926
  %v2990 = vadd.f32 %v2989, %v2927
  %v2991 = vadd.f32 %v2990, %v2928
  %v2992 = vadd.f32 %v2991, %v2929
  %v2993 = vadd.f32 %v2992, %v2930
  %v2994 = vadd.f32 %v2993, %v2931
  %v2995 = vadd.f32 %v2994, %v2932
  %v2996 = vadd.f32 %v2995, %v2933
  %v2997 = vadd.f32 %v2996, %v2934
  %v2998 = vadd.f32 %v2997, %v2935
  %v2999 = vadd.f32 %v2998, %v2936
  %v3000 = vadd.f32 %v2999, %v2937
  %v3001 = vadd.f32 %v3000, %v2938
  %v3002 = vadd.f32 %v3001, %v2939
  %v3003 = vadd.f32 %v3002, %v2940
  %v3004 = vadd.f32 %v3003, %v2941
  %v3005 = vadd.f32 %v3004, %v2942
  %v3006 = vadd.f32 %v3005, %v2943
  %v3007 = vadd.f32 %v3006, %v2944
  %v3008 = vadd.f32 %v3007, %v2945
  %v3009 = vadd.f32 %v3008, %v2946
  %v3010 = vadd.f32 %v3009, %v2947
  %v3011 = vadd.f32 %v3010, %v2948
  %v3012 = vadd.f32 %v3011, %v2949
  %v3013 = vadd.f32 %v3012, %v2950
  %v3014 = vadd.f32 %v3013, %v2951
  %v3015 = vadd.f32 %v3014, %v2952
  %v3016 = vadd.f32 %v3015, %v2953
  %v3017 = vrot.slane %v3016, 4
  %v3018 = vadd.f32 %v3016, %v3017
  %v3019 = vrot.slane %v3018, 2
  %v3020 = vadd.f32 %v3018, %v3019
  %v3021 = vrot.slane %v3020, 1
  %v3022 = vadd.f32 %v3020, %v3021
  %v3023 = vmul.f32 %v2889, 0.001953125
  %v3024 = vmul.f32 %v3022, 0.001953125
  %v3025 = vmul.f32 %v3023, %v3023
  %v3026 = vsub.f32 %v3024, %v3025
  %v3027 = vsub.f32 %v2565, %v3023
  %v3028 = vsub.f32 %v2568, %v3023
  %v3029 = vsub.f32 %v2573, %v3023
  %v3030 = vsub.f32 %v2576, %v3023
  %v3031 = vsub.f32 %v2581, %v3023
  %v3032 = vsub.f32 %v2584, %v3023
  %v3033 = vsub.f32 %v2589, %v3023
  %v3034 = vsub.f32 %v2592, %v3023
  %v3035 = vsub.f32 %v2597, %v3023
  %v3036 = vsub.f32 %v2600, %v3023
  %v3037 = vsub.f32 %v2605, %v3023
  %v3038 = vsub.f32 %v2608, %v3023
  %v3039 = vsub.f32 %v2613, %v3023
  %v3040 = vsub.f32 %v2616, %v3023
  %v3041 = vsub.f32 %v2621, %v3023
  %v3042 = vsub.f32 %v2624, %v3023
  %v3043 = vsub.f32 %v2629, %v3023
  %v3044 = vsub.f32 %v2632, %v3023
  %v3045 = vsub.f32 %v2637, %v3023
  %v3046 = vsub.f32 %v2640, %v3023
  %v3047 = vsub.f32 %v2645, %v3023
  %v3048 = vsub.f32 %v2648, %v3023
  %v3049 = vsub.f32 %v2653, %v3023
  %v3050 = vsub.f32 %v2656, %v3023
  %v3051 = vsub.f32 %v2661, %v3023
  %v3052 = vsub.f32 %v2664, %v3023
  %v3053 = vsub.f32 %v2669, %v3023
  %v3054 = vsub.f32 %v2672, %v3023
  %v3055 = vsub.f32 %v2677, %v3023
  %v3056 = vsub.f32 %v2680, %v3023
  %v3057 = vsub.f32 %v2685, %v3023
  %v3058 = vsub.f32 %v2688, %v3023
  %v3059 = vsub.f32 %v2693, %v3023
  %v3060 = vsub.f32 %v2696, %v3023
  %v3061 = vsub.f32 %v2701, %v3023
  %v3062 = vsub.f32 %v2704, %v3023
  %v3063 = vsub.f32 %v2709, %v3023
  %v3064 = vsub.f32 %v2712, %v3023
  %v3065 = vsub.f32 %v2717, %v3023
  %v3066 = vsub.f32 %v2720, %v3023
  %v3067 = vsub.f32 %v2725, %v3023
  %v3068 = vsub.f32 %v2728, %v3023
  %v3069 = vsub.f32 %v2733, %v3023
  %v3070 = vsub.f32 %v2736, %v3023
  %v3071 = vsub.f32 %v2741, %v3023
  %v3072 = vsub.f32 %v2744, %v3023
  %v3073 = vsub.f32 %v2749, %v3023
  %v3074 = vsub.f32 %v2752, %v3023
  %v3075 = vsub.f32 %v2757, %v3023
  %v3076 = vsub.f32 %v2760, %v3023
  %v3077 = vsub.f32 %v2765, %v3023
  %v3078 = vsub.f32 %v2768, %v3023
  %v3079 = vsub.f32 %v2773, %v3023
  %v3080 = vsub.f32 %v2776, %v3023
  %v3081 = vsub.f32 %v2781, %v3023
  %v3082 = vsub.f32 %v2784, %v3023
  %v3083 = vsub.f32 %v2789, %v3023
  %v3084 = vsub.f32 %v2792, %v3023
  %v3085 = vsub.f32 %v2797, %v3023
  %v3086 = vsub.f32 %v2800, %v3023
  %v3087 = vsub.f32 %v2805, %v3023
  %v3088 = vsub.f32 %v2808, %v3023
  %v3089 = vsub.f32 %v2813, %v3023
  %v3090 = vsub.f32 %v2816, %v3023
  %v3091 = vadd.f32 %v3026, 1e-05
  %v3092 = vrsqrt.pop %v3091
  %v3093 = vmul.f32 %v3027, %v3092
  %v3094 = vmul.f32 %v3028, %v3092
  %v3095 = vmul.f32 %v3029, %v3092
  %v3096 = vmul.f32 %v3030, %v3092
  %v3097 = vmul.f32 %v3031, %v3092
  %v3098 = vmul.f32 %v3032, %v3092
  %v3099 = vmul.f32 %v3033, %v3092
  %v3100 = vmul.f32 %v3034, %v3092
  %v3101 = vmul.f32 %v3035, %v3092
  %v3102 = vmul.f32 %v3036, %v3092
  %v3103 = vmul.f32 %v3037, %v3092
  %v3104 = vmul.f32 %v3038, %v3092
  %v3105 = vmul.f32 %v3039, %v3092
  %v3106 = vmul.f32 %v3040, %v3092
  %v3107 = vmul.f32 %v3041, %v3092
  %v3108 = vmul.f32 %v3042, %v3092
  %v3109 = vmul.f32 %v3043, %v3092
  %v3110 = vmul.f32 %v3044, %v3092
  %v3111 = vmul.f32 %v3045, %v3092
  %v3112 = vmul.f32 %v3046, %v3092
  %v3113 = vmul.f32 %v3047, %v3092
  %v3114 = vmul.f32 %v3048, %v3092
  %v3115 = vmul.f32 %v3049, %v3092
  %v3116 = vmul.f32 %v3050, %v3092
  %v3117 = vmul.f32 %v3051, %v3092
  %v3118 = vmul.f32 %v3052, %v3092
  %v3119 = vmul.f32 %v3053, %v3092
  %v3120 = vmul.f32 %v3054, %v3092
  %v3121 = vmul.f32 %v3055, %v3092
  %v3122 = vmul.f32 %v3056, %v3092
  %v3123 = vmul.f32 %v3057, %v3092
  %v3124 = vmul.f32 %v3058, %v3092
  %v3125 = vmul.f32 %v3059, %v3092
  %v3126 = vmul.f32 %v3060, %v3092
  %v3127 = vmul.f32 %v3061, %v3092
  %v3128 = vmul.f32 %v3062, %v3092
  %v3129 = vmul.f32 %v3063, %v3092
  %v3130 = vmul.f32 %v3064, %v3092
  %v3131 = vmul.f32 %v3065, %v3092
  %v3132 = vmul.f32 %v3066, %v3092
  %v3133 = vmul.f32 %v3067, %v3092
  %v3134 = vmul.f32 %v3068, %v3092
  %v3135 = vmul.f32 %v3069, %v3092
  %v3136 = vmul.f32 %v3070, %v3092
  %v3137 = vmul.f32 %v3071, %v3092
  %v3138 = vmul.f32 %v3072, %v3092
  %v3139 = vmul.f32 %v3073, %v3092
  %v3140 = vmul.f32 %v3074, %v3092
  %v3141 = vmul.f32 %v3075, %v3092
  %v3142 = vmul.f32 %v3076, %v3092
  %v3143 = vmul.f32 %v3077, %v3092
  %v3144 = vmul.f32 %v3078, %v3092
  %v3145 = vmul.f32 %v3079, %v3092
  %v3146 = vmul.f32 %v3080, %v3092
  %v3147 = vmul.f32 %v3081, %v3092
  %v3148 = vmul.f32 %v3082, %v3092
  %v3149 = vmul.f32 %v3083, %v3092
  %v3150 = vmul.f32 %v3084, %v3092
  %v3151 = vmul.f32 %v3085, %v3092
  %v3152 = vmul.f32 %v3086, %v3092
  %v3153 = vmul.f32 %v3087, %v3092
  %v3154 = vmul.f32 %v3088, %v3092
  %v3155 = vmul.f32 %v3089, %v3092
  %v3156 = vmul.f32 %v3090, %v3092
  %v3158 = vlaneseq
  %v3159 = vshrl.u32 %v3158, 7
  %v3160 = vsub.s32 0, %v3159
  %v3161 = vrot.slane %v2819, %v3160
  %v3163 = vmul.f32 %v3093, %v3161
  %v3164 = vmul.f32 %v3094, %v3161
  %v3165 = vmul.f32 %v3095, %v3161
  %v3166 = vmul.f32 %v3096, %v3161
  %v3167 = vmul.f32 %v3097, %v3161
  %v3168 = vmul.f32 %v3098, %v3161
  %v3169 = vmul.f32 %v3099, %v3161
  %v3170 = vmul.f32 %v3100, %v3161
  %v3171 = vmul.f32 %v3101, %v3161
  %v3172 = vmul.f32 %v3102, %v3161
  %v3173 = vmul.f32 %v3103, %v3161
  %v3174 = vmul.f32 %v3104, %v3161
  %v3175 = vmul.f32 %v3105, %v3161
  %v3176 = vmul.f32 %v3106, %v3161
  %v3177 = vmul.f32 %v3107, %v3161
  %v3178 = vmul.f32 %v3108, %v3161
  %v3179 = vmul.f32 %v3109, %v3161
  %v3180 = vmul.f32 %v3110, %v3161
  %v3181 = vmul.f32 %v3111, %v3161
  %v3182 = vmul.f32 %v3112, %v3161
  %v3183 = vmul.f32 %v3113, %v3161
  %v3184 = vmul.f32 %v3114, %v3161
  %v3185 = vmul.f32 %v3115, %v3161
  %v3186 = vmul.f32 %v3116, %v3161
  %v3187 = vmul.f32 %v3117, %v3161
  %v3188 = vmul.f32 %v3118, %v3161
  %v3189 = vmul.f32 %v3119, %v3161
  %v3190 = vmul.f32 %v3120, %v3161
  %v3191 = vmul.f32 %v3121, %v3161
  %v3192 = vmul.f32 %v3122, %v3161
  %v3193 = vmul.f32 %v3123, %v3161
  %v3194 = vmul.f32 %v3124, %v3161
  %v3195 = vmul.f32 %v3125, %v3161
  %v3196 = vmul.f32 %v3126, %v3161
  %v3197 = vmul.f32 %v3127, %v3161
  %v3198 = vmul.f32 %v3128, %v3161
  %v3199 = vmul.f32 %v3129, %v3161
  %v3200 = vmul.f32 %v3130, %v3161
  %v3201 = vmul.f32 %v3131, %v3161
  %v3202 = vmul.f32 %v3132, %v3161
  %v3203 = vmul.f32 %v3133, %v3161
  %v3204 = vmul.f32 %v3134, %v3161
  %v3205 = vmul.f32 %v3135, %v3161
  %v3206 = vmul.f32 %v3136, %v3161
  %v3207 = vmul.f32 %v3137, %v3161
  %v3208 = vmul.f32 %v3138, %v3161
  %v3209 = vmul.f32 %v3139, %v3161
  %v3210 = vmul.f32 %v3140, %v3161
  %v3211 = vmul.f32 %v3141, %v3161
  %v3212 = vmul.f32 %v3142, %v3161
  %v3213 = vmul.f32 %v3143, %v3161
  %v3214 = vmul.f32 %v3144, %v3161
  %v3215 = vmul.f32 %v3145, %v3161
  %v3216 = vmul.f32 %v3146, %v3161
  %v3217 = vmul.f32 %v3147, %v3161
  %v3218 = vmul.f32 %v3148, %v3161
  %v3219 = vmul.f32 %v3149, %v3161
  %v3220 = vmul.f32 %v3150, %v3161
  %v3221 = vmul.f32 %v3151, %v3161
  %v3222 = vmul.f32 %v3152, %v3161
  %v3223 = vmul.f32 %v3153, %v3161
  %v3224 = vmul.f32 %v3154, %v3161
  %v3225 = vmul.f32 %v3155, %v3161
  %v3226 = vmul.f32 %v3156, %v3161
  %v3228 = vlaneseq
  %v3229 = vshrl.u32 %v3228, 7
  %v3230 = vsub.s32 0, %v3229
  %v3231 = vrot.slane %v2820, %v3230
  %v3233 = vadd.f32 %v3163, %v3231
  %v3234 = vadd.f32 %v3164, %v3231
  %v3235 = vadd.f32 %v3165, %v3231
  %v3236 = vadd.f32 %v3166, %v3231
  %v3237 = vadd.f32 %v3167, %v3231
  %v3238 = vadd.f32 %v3168, %v3231
  %v3239 = vadd.f32 %v3169, %v3231
  %v3240 = vadd.f32 %v3170, %v3231
  %v3241 = vadd.f32 %v3171, %v3231
  %v3242 = vadd.f32 %v3172, %v3231
  %v3243 = vadd.f32 %v3173, %v3231
  %v3244 = vadd.f32 %v3174, %v3231
  %v3245 = vadd.f32 %v3175, %v3231
  %v3246 = vadd.f32 %v3176, %v3231
  %v3247 = vadd.f32 %v3177, %v3231
  %v3248 = vadd.f32 %v3178, %v3231
  %v3249 = vadd.f32 %v3179, %v3231
  %v3250 = vadd.f32 %v3180, %v3231
  %v3251 = vadd.f32 %v3181, %v3231
  %v3252 = vadd.f32 %v3182, %v3231
  %v3253 = vadd.f32 %v3183, %v3231
  %v3254 = vadd.f32 %v3184, %v3231
  %v3255 = vadd.f32 %v3185, %v3231
  %v3256 = vadd.f32 %v3186, %v3231
  %v3257 = vadd.f32 %v3187, %v3231
  %v3258 = vadd.f32 %v3188, %v3231
  %v3259 = vadd.f32 %v3189, %v3231
  %v3260 = vadd.f32 %v3190, %v3231
  %v3261 = vadd.f32 %v3191, %v3231
  %v3262 = vadd.f32 %v3192, %v3231
  %v3263 = vadd.f32 %v3193, %v3231
  %v3264 = vadd.f32 %v3194, %v3231
  %v3265 = vadd.f32 %v3195, %v3231
  %v3266 = vadd.f32 %v3196, %v3231
  %v3267 = vadd.f32 %v3197, %v3231
  %v3268 = vadd.f32 %v3198, %v3231
  %v3269 = vadd.f32 %v3199, %v3231
  %v3270 = vadd.f32 %v3200, %v3231
  %v3271 = vadd.f32 %v3201, %v3231
  %v3272 = vadd.f32 %v3202, %v3231
  %v3273 = vadd.f32 %v3203, %v3231
  %v3274 = vadd.f32 %v3204, %v3231
  %v3275 = vadd.f32 %v3205, %v3231
  %v3276 = vadd.f32 %v3206, %v3231
  %v3277 = vadd.f32 %v3207, %v3231
  %v3278 = vadd.f32 %v3208, %v3231
  %v3279 = vadd.f32 %v3209, %v3231
  %v3280 = vadd.f32 %v3210, %v3231
  %v3281 = vadd.f32 %v3211, %v3231
  %v3282 = vadd.f32 %v3212, %v3231
  %v3283 = vadd.f32 %v3213, %v3231
  %v3284 = vadd.f32 %v3214, %v3231
  %v3285 = vadd.f32 %v3215, %v3231
  %v3286 = vadd.f32 %v3216, %v3231
  %v3287 = vadd.f32 %v3217, %v3231
  %v3288 = vadd.f32 %v3218, %v3231
  %v3289 = vadd.f32 %v3219, %v3231
  %v3290 = vadd.f32 %v3220, %v3231
  %v3291 = vadd.f32 %v3221, %v3231
  %v3292 = vadd.f32 %v3222, %v3231
  %v3293 = vadd.f32 %v3223, %v3231
  %v3294 = vadd.f32 %v3224, %v3231
  %v3295 = vadd.f32 %v3225, %v3231
  %v3296 = vadd.f32 %v3226, %v3231
  %v3297 = vmax.f32 %v3233, 0.0
  %v3298 = vmax.f32 %v3234, 0.0
  %v3299 = vmax.f32 %v3235, 0.0
  %v3300 = vmax.f32 %v3236, 0.0
  %v3301 = vmax.f32 %v3237, 0.0
  %v3302 = vmax.f32 %v3238, 0.0
  %v3303 = vmax.f32 %v3239, 0.0
  %v3304 = vmax.f32 %v3240, 0.0
  %v3305 = vmax.f32 %v3241, 0.0
  %v3306 = vmax.f32 %v3242, 0.0
  %v3307 = vmax.f32 %v3243, 0.0
  %v3308 = vmax.f32 %v3244, 0.0
  %v3309 = vmax.f32 %v3245, 0.0
  %v3310 = vmax.f32 %v3246, 0.0
  %v3311 = vmax.f32 %v3247, 0.0
  %v3312 = vmax.f32 %v3248, 0.0
  %v3313 = vmax.f32 %v3249, 0.0
  %v3314 = vmax.f32 %v3250, 0.0
  %v3315 = vmax.f32 %v3251, 0.0
  %v3316 = vmax.f32 %v3252, 0.0
  %v3317 = vmax.f32 %v3253, 0.0
  %v3318 = vmax.f32 %v3254, 0.0
  %v3319 = vmax.f32 %v3255, 0.0
  %v3320 = vmax.f32 %v3256, 0.0
  %v3321 = vmax.f32 %v3257, 0.0
  %v3322 = vmax.f32 %v3258, 0.0
  %v3323 = vmax.f32 %v3259, 0.0
  %v3324 = vmax.f32 %v3260, 0.0
  %v3325 = vmax.f32 %v3261, 0.0
  %v3326 = vmax.f32 %v3262, 0.0
  %v3327 = vmax.f32 %v3263, 0.0
  %v3328 = vmax.f32 %v3264, 0.0
  %v3329 = vmax.f32 %v3265, 0.0
  %v3330 = vmax.f32 %v3266, 0.0
  %v3331 = vmax.f32 %v3267, 0.0
  %v3332 = vmax.f32 %v3268, 0.0
  %v3333 = vmax.f32 %v3269, 0.0
  %v3334 = vmax.f32 %v3270, 0.0
  %v3335 = vmax.f32 %v3271, 0.0
  %v3336 = vmax.f32 %v3272, 0.0
  %v3337 = vmax.f32 %v3273, 0.0
  %v3338 = vmax.f32 %v3274, 0.0
  %v3339 = vmax.f32 %v3275, 0.0
  %v3340 = vmax.f32 %v3276, 0.0
  %v3341 = vmax.f32 %v3277, 0.0
  %v3342 = vmax.f32 %v3278, 0.0
  %v3343 = vmax.f32 %v3279, 0.0
  %v3344 = vmax.f32 %v3280, 0.0
  %v3345 = vmax.f32 %v3281, 0.0
  %v3346 = vmax.f32 %v3282, 0.0
  %v3347 = vmax.f32 %v3283, 0.0
  %v3348 = vmax.f32 %v3284, 0.0
  %v3349 = vmax.f32 %v3285, 0.0
  %v3350 = vmax.f32 %v3286, 0.0
  %v3351 = vmax.f32 %v3287, 0.0
  %v3352 = vmax.f32 %v3288, 0.0
  %v3353 = vmax.f32 %v3289, 0.0
  %v3354 = vmax.f32 %v3290, 0.0
  %v3355 = vmax.f32 %v3291, 0.0
  %v3356 = vmax.f32 %v3292, 0.0
  %v3357 = vmax.f32 %v3293, 0.0
  %v3358 = vmax.f32 %v3294, 0.0
  %v3359 = vmax.f32 %v3295, 0.0
  %v3360 = vmax.f32 %v3296, 0.0
  %v3361 = vpack.c.bf16 %v3298, %v3297
  %v3362 = vpack.c.bf16 %v3300, %v3299
  %v3363 = vpack.c.bf16 %v3302, %v3301
  %v3364 = vpack.c.bf16 %v3304, %v3303
  %v3365 = vpack.c.bf16 %v3306, %v3305
  %v3366 = vpack.c.bf16 %v3308, %v3307
  %v3367 = vpack.c.bf16 %v3310, %v3309
  %v3368 = vpack.c.bf16 %v3312, %v3311
  %v3369 = vpack.c.bf16 %v3314, %v3313
  %v3370 = vpack.c.bf16 %v3316, %v3315
  %v3371 = vpack.c.bf16 %v3318, %v3317
  %v3372 = vpack.c.bf16 %v3320, %v3319
  %v3373 = vpack.c.bf16 %v3322, %v3321
  %v3374 = vpack.c.bf16 %v3324, %v3323
  %v3375 = vpack.c.bf16 %v3326, %v3325
  %v3376 = vpack.c.bf16 %v3328, %v3327
  %v3377 = vpack.c.bf16 %v3330, %v3329
  %v3378 = vpack.c.bf16 %v3332, %v3331
  %v3379 = vpack.c.bf16 %v3334, %v3333
  %v3380 = vpack.c.bf16 %v3336, %v3335
  %v3381 = vpack.c.bf16 %v3338, %v3337
  %v3382 = vpack.c.bf16 %v3340, %v3339
  %v3383 = vpack.c.bf16 %v3342, %v3341
  %v3384 = vpack.c.bf16 %v3344, %v3343
  %v3385 = vpack.c.bf16 %v3346, %v3345
  %v3386 = vpack.c.bf16 %v3348, %v3347
  %v3387 = vpack.c.bf16 %v3350, %v3349
  %v3388 = vpack.c.bf16 %v3352, %v3351
  %v3389 = vpack.c.bf16 %v3354, %v3353
  %v3390 = vpack.c.bf16 %v3356, %v3355
  %v3391 = vpack.c.bf16 %v3358, %v3357
  %v3392 = vpack.c.bf16 %v3360, %v3359
  %3393 = vmatprep.subr.bf16.mxu0 0
  %3394 = vmatpush1.bf16.msra.mxu0 %v3368
  %3395 = vmatprep.subr.bf16.mxu0 0
  %3396 = vmatpush1.bf16.msra.mxu0 %v3367
  %3397 = vmatprep.subr.bf16.mxu0 0
  %3398 = vmatpush1.bf16.msra.mxu0 %v3366
  %3399 = vmatprep.subr.bf16.mxu0 0
  %3400 = vmatpush1.bf16.msra.mxu0 %v3365
  %3401 = vmatprep.subr.bf16.mxu0 0
  %3402 = vmatpush1.bf16.msra.mxu0 %v3364
  %3403 = vmatprep.subr.bf16.mxu0 0
  %3404 = vmatpush1.bf16.msra.mxu0 %v3363
  %3405 = vmatprep.subr.bf16.mxu0 0
  %3406 = vmatpush1.bf16.msra.mxu0 %v3362
  %3407 = vmatprep.subr.bf16.mxu0 0
  %3408 = vmatpush1.bf16.msra.mxu0 %v3361
  %3409 = vmatprep.subr.bf16.mxu0 0
  %3410 = vmatpush2.bf16.msra.mxu0 %v3376
  %3411 = vmatprep.subr.bf16.mxu0 0
  %3412 = vmatpush2.bf16.msra.mxu0 %v3375
  %3413 = vmatprep.subr.bf16.mxu0 0
  %3414 = vmatpush2.bf16.msra.mxu0 %v3374
  %3415 = vmatprep.subr.bf16.mxu0 0
  %3416 = vmatpush2.bf16.msra.mxu0 %v3373
  %3417 = vmatprep.subr.bf16.mxu0 0
  %3418 = vmatpush2.bf16.msra.mxu0 %v3372
  %3419 = vmatprep.subr.bf16.mxu0 0
  %3420 = vmatpush2.bf16.msra.mxu0 %v3371
  %3421 = vmatprep.subr.bf16.mxu0 0
  %3422 = vmatpush2.bf16.msra.mxu0 %v3370
  %3423 = vmatprep.subr.bf16.mxu0 0
  %3424 = vmatpush2.bf16.msra.mxu0 %v3369
  %3425 = vmatprep.mubr.bf16.mxu0 %v660
  %3426 = vmatmul.mubr.bf16.gmra.mxu0 %v659
  %v3427 = vpop.f32.mrf.mxu0
  %v3428 = vadd.f32 %v3297, %v3427
  %v3429 = vpop.f32.mrf.mxu0
  %v3430 = vpop.f32.mrf.mxu0
  %v3431 = vadd.f32 %v3298, %v3430
  %v3432 = vpop.f32.mrf.mxu0
  %3433 = vmatprep.mubr.bf16.mxu0 %v664
  %3434 = vmatmul.mubr.bf16.gmra.mxu0 %v663
  %v3435 = vpop.f32.mrf.mxu0
  %v3436 = vadd.f32 %v3299, %v3435
  %v3437 = vpop.f32.mrf.mxu0
  %v3438 = vpop.f32.mrf.mxu0
  %v3439 = vadd.f32 %v3300, %v3438
  %v3440 = vpop.f32.mrf.mxu0
  %3441 = vmatprep.mubr.bf16.mxu0 %v668
  %3442 = vmatmul.mubr.bf16.gmra.mxu0 %v667
  %v3443 = vpop.f32.mrf.mxu0
  %v3444 = vadd.f32 %v3301, %v3443
  %v3445 = vpop.f32.mrf.mxu0
  %v3446 = vpop.f32.mrf.mxu0
  %v3447 = vadd.f32 %v3302, %v3446
  %v3448 = vpop.f32.mrf.mxu0
  %3449 = vmatprep.mubr.bf16.mxu0 %v672
  %3450 = vmatmul.mubr.bf16.gmra.mxu0 %v671
  %v3451 = vpop.f32.mrf.mxu0
  %v3452 = vadd.f32 %v3303, %v3451
  %v3453 = vpop.f32.mrf.mxu0
  %v3454 = vpop.f32.mrf.mxu0
  %v3455 = vadd.f32 %v3304, %v3454
  %v3456 = vpop.f32.mrf.mxu0
  %3457 = vmatprep.mubr.bf16.mxu0 %v676
  %3458 = vmatmul.mubr.bf16.gmra.mxu0 %v675
  %v3459 = vpop.f32.mrf.mxu0
  %v3460 = vadd.f32 %v3305, %v3459
  %v3461 = vpop.f32.mrf.mxu0
  %v3462 = vpop.f32.mrf.mxu0
  %v3463 = vadd.f32 %v3306, %v3462
  %v3464 = vpop.f32.mrf.mxu0
  %3465 = vmatprep.mubr.bf16.mxu0 %v680
  %3466 = vmatmul.mubr.bf16.gmra.mxu0 %v679
  %v3467 = vpop.f32.mrf.mxu0
  %v3468 = vadd.f32 %v3307, %v3467
  %v3469 = vpop.f32.mrf.mxu0
  %v3470 = vpop.f32.mrf.mxu0
  %v3471 = vadd.f32 %v3308, %v3470
  %v3472 = vpop.f32.mrf.mxu0
  %3473 = vmatprep.mubr.bf16.mxu0 %v684
  %3474 = vmatmul.mubr.bf16.gmra.mxu0 %v683
  %v3475 = vpop.f32.mrf.mxu0
  %v3476 = vadd.f32 %v3309, %v3475
  %v3477 = vpop.f32.mrf.mxu0
  %v3478 = vpop.f32.mrf.mxu0
  %v3479 = vadd.f32 %v3310, %v3478
  %v3480 = vpop.f32.mrf.mxu0
  %3481 = vmatprep.mubr.bf16.mxu0 %v688
  %3482 = vmatmul.mubr.bf16.gmra.mxu0 %v687
  %v3483 = vpop.f32.mrf.mxu0
  %v3484 = vadd.f32 %v3311, %v3483
  %v3485 = vpop.f32.mrf.mxu0
  %v3486 = vpop.f32.mrf.mxu0
  %v3487 = vadd.f32 %v3312, %v3486
  %v3488 = vpop.f32.mrf.mxu0
  %3489 = vmatprep.mubr.bf16.mxu0 %v692
  %3490 = vmatmul.mubr.bf16.gmra.mxu0 %v691
  %v3491 = vpop.f32.mrf.mxu0
  %v3492 = vadd.f32 %v3313, %v3491
  %v3493 = vpop.f32.mrf.mxu0
  %v3494 = vpop.f32.mrf.mxu0
  %v3495 = vadd.f32 %v3314, %v3494
  %v3496 = vpop.f32.mrf.mxu0
  %3497 = vmatprep.mubr.bf16.mxu0 %v696
  %3498 = vmatmul.mubr.bf16.gmra.mxu0 %v695
  %v3499 = vpop.f32.mrf.mxu0
  %v3500 = vadd.f32 %v3315, %v3499
  %v3501 = vpop.f32.mrf.mxu0
  %v3502 = vpop.f32.mrf.mxu0
  %v3503 = vadd.f32 %v3316, %v3502
  %v3504 = vpop.f32.mrf.mxu0
  %3505 = vmatprep.mubr.bf16.mxu0 %v700
  %3506 = vmatmul.mubr.bf16.gmra.mxu0 %v699
  %v3507 = vpop.f32.mrf.mxu0
  %v3508 = vadd.f32 %v3317, %v3507
  %v3509 = vpop.f32.mrf.mxu0
  %v3510 = vpop.f32.mrf.mxu0
  %v3511 = vadd.f32 %v3318, %v3510
  %v3512 = vpop.f32.mrf.mxu0
  %3513 = vmatprep.mubr.bf16.mxu0 %v704
  %3514 = vmatmul.mubr.bf16.gmra.mxu0 %v703
  %v3515 = vpop.f32.mrf.mxu0
  %v3516 = vadd.f32 %v3319, %v3515
  %v3517 = vpop.f32.mrf.mxu0
  %v3518 = vpop.f32.mrf.mxu0
  %v3519 = vadd.f32 %v3320, %v3518
  %v3520 = vpop.f32.mrf.mxu0
  %3521 = vmatprep.mubr.bf16.mxu0 %v708
  %3522 = vmatmul.mubr.bf16.gmra.mxu0 %v707
  %v3523 = vpop.f32.mrf.mxu0
  %v3524 = vadd.f32 %v3321, %v3523
  %v3525 = vpop.f32.mrf.mxu0
  %v3526 = vpop.f32.mrf.mxu0
  %v3527 = vadd.f32 %v3322, %v3526
  %v3528 = vpop.f32.mrf.mxu0
  %3529 = vmatprep.mubr.bf16.mxu0 %v712
  %3530 = vmatmul.mubr.bf16.gmra.mxu0 %v711
  %v3531 = vpop.f32.mrf.mxu0
  %v3532 = vadd.f32 %v3323, %v3531
  %v3533 = vpop.f32.mrf.mxu0
  %v3534 = vpop.f32.mrf.mxu0
  %v3535 = vadd.f32 %v3324, %v3534
  %v3536 = vpop.f32.mrf.mxu0
  %3537 = vmatprep.mubr.bf16.mxu0 %v716
  %3538 = vmatmul.mubr.bf16.gmra.mxu0 %v715
  %v3539 = vpop.f32.mrf.mxu0
  %v3540 = vadd.f32 %v3325, %v3539
  %v3541 = vpop.f32.mrf.mxu0
  %v3542 = vpop.f32.mrf.mxu0
  %v3543 = vadd.f32 %v3326, %v3542
  %v3544 = vpop.f32.mrf.mxu0
  %3545 = vmatprep.mubr.bf16.mxu0 %v720
  %3546 = vmatmul.mubr.bf16.gmra.mxu0 %v719
  %v3547 = vpop.f32.mrf.mxu0
  %v3548 = vadd.f32 %v3327, %v3547
  %v3549 = vpop.f32.mrf.mxu0
  %v3550 = vpop.f32.mrf.mxu0
  %v3551 = vadd.f32 %v3328, %v3550
  %v3552 = vpop.f32.mrf.mxu0
  %3553 = vmatprep.mubr.bf16.mxu0 %v724
  %3554 = vmatmul.mubr.bf16.gmra.mxu0 %v723
  %v3555 = vpop.f32.mrf.mxu0
  %v3556 = vadd.f32 %v3329, %v3555
  %v3557 = vpop.f32.mrf.mxu0
  %v3558 = vpop.f32.mrf.mxu0
  %v3559 = vadd.f32 %v3330, %v3558
  %v3560 = vpop.f32.mrf.mxu0
  %3561 = vmatprep.mubr.bf16.mxu0 %v728
  %3562 = vmatmul.mubr.bf16.gmra.mxu0 %v727
  %v3563 = vpop.f32.mrf.mxu0
  %v3564 = vadd.f32 %v3331, %v3563
  %v3565 = vpop.f32.mrf.mxu0
  %v3566 = vpop.f32.mrf.mxu0
  %v3567 = vadd.f32 %v3332, %v3566
  %v3568 = vpop.f32.mrf.mxu0
  %3569 = vmatprep.mubr.bf16.mxu0 %v732
  %3570 = vmatmul.mubr.bf16.gmra.mxu0 %v731
  %v3571 = vpop.f32.mrf.mxu0
  %v3572 = vadd.f32 %v3333, %v3571
  %v3573 = vpop.f32.mrf.mxu0
  %v3574 = vpop.f32.mrf.mxu0
  %v3575 = vadd.f32 %v3334, %v3574
  %v3576 = vpop.f32.mrf.mxu0
  %3577 = vmatprep.mubr.bf16.mxu0 %v736
  %3578 = vmatmul.mubr.bf16.gmra.mxu0 %v735
  %v3579 = vpop.f32.mrf.mxu0
  %v3580 = vadd.f32 %v3335, %v3579
  %v3581 = vpop.f32.mrf.mxu0
  %v3582 = vpop.f32.mrf.mxu0
  %v3583 = vadd.f32 %v3336, %v3582
  %v3584 = vpop.f32.mrf.mxu0
  %3585 = vmatprep.mubr.bf16.mxu0 %v740
  %3586 = vmatmul.mubr.bf16.gmra.mxu0 %v739
  %v3587 = vpop.f32.mrf.mxu0
  %v3588 = vadd.f32 %v3337, %v3587
  %v3589 = vpop.f32.mrf.mxu0
  %v3590 = vpop.f32.mrf.mxu0
  %v3591 = vadd.f32 %v3338, %v3590
  %v3592 = vpop.f32.mrf.mxu0
  %3593 = vmatprep.mubr.bf16.mxu0 %v744
  %3594 = vmatmul.mubr.bf16.gmra.mxu0 %v743
  %v3595 = vpop.f32.mrf.mxu0
  %v3596 = vadd.f32 %v3339, %v3595
  %v3597 = vpop.f32.mrf.mxu0
  %v3598 = vpop.f32.mrf.mxu0
  %v3599 = vadd.f32 %v3340, %v3598
  %v3600 = vpop.f32.mrf.mxu0
  %3601 = vmatprep.mubr.bf16.mxu0 %v748
  %3602 = vmatmul.mubr.bf16.gmra.mxu0 %v747
  %v3603 = vpop.f32.mrf.mxu0
  %v3604 = vadd.f32 %v3341, %v3603
  %v3605 = vpop.f32.mrf.mxu0
  %v3606 = vpop.f32.mrf.mxu0
  %v3607 = vadd.f32 %v3342, %v3606
  %v3608 = vpop.f32.mrf.mxu0
  %3609 = vmatprep.mubr.bf16.mxu0 %v752
  %3610 = vmatmul.mubr.bf16.gmra.mxu0 %v751
  %v3611 = vpop.f32.mrf.mxu0
  %v3612 = vadd.f32 %v3343, %v3611
  %v3613 = vpop.f32.mrf.mxu0
  %v3614 = vpop.f32.mrf.mxu0
  %v3615 = vadd.f32 %v3344, %v3614
  %v3616 = vpop.f32.mrf.mxu0
  %3617 = vmatprep.mubr.bf16.mxu0 %v756
  %3618 = vmatmul.mubr.bf16.gmra.mxu0 %v755
  %v3619 = vpop.f32.mrf.mxu0
  %v3620 = vadd.f32 %v3345, %v3619
  %v3621 = vpop.f32.mrf.mxu0
  %v3622 = vpop.f32.mrf.mxu0
  %v3623 = vadd.f32 %v3346, %v3622
  %v3624 = vpop.f32.mrf.mxu0
  %3625 = vmatprep.mubr.bf16.mxu0 %v760
  %3626 = vmatmul.mubr.bf16.gmra.mxu0 %v759
  %v3627 = vpop.f32.mrf.mxu0
  %v3628 = vadd.f32 %v3347, %v3627
  %v3629 = vpop.f32.mrf.mxu0
  %v3630 = vpop.f32.mrf.mxu0
  %v3631 = vadd.f32 %v3348, %v3630
  %v3632 = vpop.f32.mrf.mxu0
  %3633 = vmatprep.mubr.bf16.mxu0 %v764
  %3634 = vmatmul.mubr.bf16.gmra.mxu0 %v763
  %v3635 = vpop.f32.mrf.mxu0
  %v3636 = vadd.f32 %v3349, %v3635
  %v3637 = vpop.f32.mrf.mxu0
  %v3638 = vpop.f32.mrf.mxu0
  %v3639 = vadd.f32 %v3350, %v3638
  %v3640 = vpop.f32.mrf.mxu0
  %3641 = vmatprep.mubr.bf16.mxu0 %v768
  %3642 = vmatmul.mubr.bf16.gmra.mxu0 %v767
  %v3643 = vpop.f32.mrf.mxu0
  %v3644 = vadd.f32 %v3351, %v3643
  %v3645 = vpop.f32.mrf.mxu0
  %v3646 = vpop.f32.mrf.mxu0
  %v3647 = vadd.f32 %v3352, %v3646
  %v3648 = vpop.f32.mrf.mxu0
  %3649 = vmatprep.mubr.bf16.mxu0 %v772
  %3650 = vmatmul.mubr.bf16.gmra.mxu0 %v771
  %v3651 = vpop.f32.mrf.mxu0
  %v3652 = vadd.f32 %v3353, %v3651
  %v3653 = vpop.f32.mrf.mxu0
  %v3654 = vpop.f32.mrf.mxu0
  %v3655 = vadd.f32 %v3354, %v3654
  %v3656 = vpop.f32.mrf.mxu0
  %3657 = vmatprep.mubr.bf16.mxu0 %v776
  %3658 = vmatmul.mubr.bf16.gmra.mxu0 %v775
  %v3659 = vpop.f32.mrf.mxu0
  %v3660 = vadd.f32 %v3355, %v3659
  %v3661 = vpop.f32.mrf.mxu0
  %v3662 = vpop.f32.mrf.mxu0
  %v3663 = vadd.f32 %v3356, %v3662
  %v3664 = vpop.f32.mrf.mxu0
  %3665 = vmatprep.mubr.bf16.mxu0 %v780
  %3666 = vmatmul.mubr.bf16.gmra.mxu0 %v779
  %v3667 = vpop.f32.mrf.mxu0
  %v3668 = vadd.f32 %v3357, %v3667
  %v3669 = vpop.f32.mrf.mxu0
  %v3670 = vpop.f32.mrf.mxu0
  %v3671 = vadd.f32 %v3358, %v3670
  %v3672 = vpop.f32.mrf.mxu0
  %3673 = vmatprep.mubr.bf16.mxu0 %v784
  %3674 = vmatmul.mubr.bf16.gmra.mxu0 %v783
  %v3675 = vpop.f32.mrf.mxu0
  %v3676 = vadd.f32 %v3359, %v3675
  %v3677 = vpop.f32.mrf.mxu0
  %v3678 = vpop.f32.mrf.mxu0
  %v3679 = vadd.f32 %v3360, %v3678
  %v3680 = vpop.f32.mrf.mxu0
  %3681 = vdwg.mxu0
  %3682 = vmatprep.subr.bf16.mxu0 0
  %3683 = vmatpush1.bf16.msra.mxu0 %v3384
  %3684 = vmatprep.subr.bf16.mxu0 0
  %3685 = vmatpush1.bf16.msra.mxu0 %v3383
  %3686 = vmatprep.subr.bf16.mxu0 0
  %3687 = vmatpush1.bf16.msra.mxu0 %v3382
  %3688 = vmatprep.subr.bf16.mxu0 0
  %3689 = vmatpush1.bf16.msra.mxu0 %v3381
  %3690 = vmatprep.subr.bf16.mxu0 0
  %3691 = vmatpush1.bf16.msra.mxu0 %v3380
  %3692 = vmatprep.subr.bf16.mxu0 0
  %3693 = vmatpush1.bf16.msra.mxu0 %v3379
  %3694 = vmatprep.subr.bf16.mxu0 0
  %3695 = vmatpush1.bf16.msra.mxu0 %v3378
  %3696 = vmatprep.subr.bf16.mxu0 0
  %3697 = vmatpush1.bf16.msra.mxu0 %v3377
  %3698 = vmatprep.subr.bf16.mxu0 0
  %3699 = vmatpush2.bf16.msra.mxu0 %v3392
  %3700 = vmatprep.subr.bf16.mxu0 0
  %3701 = vmatpush2.bf16.msra.mxu0 %v3391
  %3702 = vmatprep.subr.bf16.mxu0 0
  %3703 = vmatpush2.bf16.msra.mxu0 %v3390
  %3704 = vmatprep.subr.bf16.mxu0 0
  %3705 = vmatpush2.bf16.msra.mxu0 %v3389
  %3706 = vmatprep.subr.bf16.mxu0 0
  %3707 = vmatpush2.bf16.msra.mxu0 %v3388
  %3708 = vmatprep.subr.bf16.mxu0 0
  %3709 = vmatpush2.bf16.msra.mxu0 %v3387
  %3710 = vmatprep.subr.bf16.mxu0 0
  %3711 = vmatpush2.bf16.msra.mxu0 %v3386
  %3712 = vmatprep.subr.bf16.mxu0 0
  %3713 = vmatpush2.bf16.msra.mxu0 %v3385
  %3714 = vmatprep.mubr.bf16.mxu0 %v662
  %3715 = vmatmul.mubr.bf16.gmra.mxu0 %v661
  %v3716 = vpop.f32.mrf.mxu0
  %v3717 = vadd.f32 %v3428, %v3716
  %v3718 = vpop.f32.mrf.mxu0
  %v3719 = vpop.f32.mrf.mxu0
  %v3720 = vadd.f32 %v3431, %v3719
  %v3721 = vpop.f32.mrf.mxu0
  %3722 = vmatprep.mubr.bf16.mxu0 %v666
  %3723 = vmatmul.mubr.bf16.gmra.mxu0 %v665
  %v3724 = vpop.f32.mrf.mxu0
  %v3725 = vadd.f32 %v3436, %v3724
  %v3726 = vpop.f32.mrf.mxu0
  %v3727 = vpop.f32.mrf.mxu0
  %v3728 = vadd.f32 %v3439, %v3727
  %v3729 = vpop.f32.mrf.mxu0
  %3730 = vmatprep.mubr.bf16.mxu0 %v670
  %3731 = vmatmul.mubr.bf16.gmra.mxu0 %v669
  %v3732 = vpop.f32.mrf.mxu0
  %v3733 = vadd.f32 %v3444, %v3732
  %v3734 = vpop.f32.mrf.mxu0
  %v3735 = vpop.f32.mrf.mxu0
  %v3736 = vadd.f32 %v3447, %v3735
  %v3737 = vpop.f32.mrf.mxu0
  %3738 = vmatprep.mubr.bf16.mxu0 %v674
  %3739 = vmatmul.mubr.bf16.gmra.mxu0 %v673
  %v3740 = vpop.f32.mrf.mxu0
  %v3741 = vadd.f32 %v3452, %v3740
  %v3742 = vpop.f32.mrf.mxu0
  %v3743 = vpop.f32.mrf.mxu0
  %v3744 = vadd.f32 %v3455, %v3743
  %v3745 = vpop.f32.mrf.mxu0
  %3746 = vmatprep.mubr.bf16.mxu0 %v678
  %3747 = vmatmul.mubr.bf16.gmra.mxu0 %v677
  %v3748 = vpop.f32.mrf.mxu0
  %v3749 = vadd.f32 %v3460, %v3748
  %v3750 = vpop.f32.mrf.mxu0
  %v3751 = vpop.f32.mrf.mxu0
  %v3752 = vadd.f32 %v3463, %v3751
  %v3753 = vpop.f32.mrf.mxu0
  %3754 = vmatprep.mubr.bf16.mxu0 %v682
  %3755 = vmatmul.mubr.bf16.gmra.mxu0 %v681
  %v3756 = vpop.f32.mrf.mxu0
  %v3757 = vadd.f32 %v3468, %v3756
  %v3758 = vpop.f32.mrf.mxu0
  %v3759 = vpop.f32.mrf.mxu0
  %v3760 = vadd.f32 %v3471, %v3759
  %v3761 = vpop.f32.mrf.mxu0
  %3762 = vmatprep.mubr.bf16.mxu0 %v686
  %3763 = vmatmul.mubr.bf16.gmra.mxu0 %v685
  %v3764 = vpop.f32.mrf.mxu0
  %v3765 = vadd.f32 %v3476, %v3764
  %v3766 = vpop.f32.mrf.mxu0
  %v3767 = vpop.f32.mrf.mxu0
  %v3768 = vadd.f32 %v3479, %v3767
  %v3769 = vpop.f32.mrf.mxu0
  %3770 = vmatprep.mubr.bf16.mxu0 %v690
  %3771 = vmatmul.mubr.bf16.gmra.mxu0 %v689
  %v3772 = vpop.f32.mrf.mxu0
  %v3773 = vadd.f32 %v3484, %v3772
  %v3774 = vpop.f32.mrf.mxu0
  %v3775 = vpop.f32.mrf.mxu0
  %v3776 = vadd.f32 %v3487, %v3775
  %v3777 = vpop.f32.mrf.mxu0
  %3778 = vmatprep.mubr.bf16.mxu0 %v694
  %3779 = vmatmul.mubr.bf16.gmra.mxu0 %v693
  %v3780 = vpop.f32.mrf.mxu0
  %v3781 = vadd.f32 %v3492, %v3780
  %v3782 = vpop.f32.mrf.mxu0
  %v3783 = vpop.f32.mrf.mxu0
  %v3784 = vadd.f32 %v3495, %v3783
  %v3785 = vpop.f32.mrf.mxu0
  %3786 = vmatprep.mubr.bf16.mxu0 %v698
  %3787 = vmatmul.mubr.bf16.gmra.mxu0 %v697
  %v3788 = vpop.f32.mrf.mxu0
  %v3789 = vadd.f32 %v3500, %v3788
  %v3790 = vpop.f32.mrf.mxu0
  %v3791 = vpop.f32.mrf.mxu0
  %v3792 = vadd.f32 %v3503, %v3791
  %v3793 = vpop.f32.mrf.mxu0
  %3794 = vmatprep.mubr.bf16.mxu0 %v702
  %3795 = vmatmul.mubr.bf16.gmra.mxu0 %v701
  %v3796 = vpop.f32.mrf.mxu0
  %v3797 = vadd.f32 %v3508, %v3796
  %v3798 = vpop.f32.mrf.mxu0
  %v3799 = vpop.f32.mrf.mxu0
  %v3800 = vadd.f32 %v3511, %v3799
  %v3801 = vpop.f32.mrf.mxu0
  %3802 = vmatprep.mubr.bf16.mxu0 %v706
  %3803 = vmatmul.mubr.bf16.gmra.mxu0 %v705
  %v3804 = vpop.f32.mrf.mxu0
  %v3805 = vadd.f32 %v3516, %v3804
  %v3806 = vpop.f32.mrf.mxu0
  %v3807 = vpop.f32.mrf.mxu0
  %v3808 = vadd.f32 %v3519, %v3807
  %v3809 = vpop.f32.mrf.mxu0
  %3810 = vmatprep.mubr.bf16.mxu0 %v710
  %3811 = vmatmul.mubr.bf16.gmra.mxu0 %v709
  %v3812 = vpop.f32.mrf.mxu0
  %v3813 = vadd.f32 %v3524, %v3812
  %v3814 = vpop.f32.mrf.mxu0
  %v3815 = vpop.f32.mrf.mxu0
  %v3816 = vadd.f32 %v3527, %v3815
  %v3817 = vpop.f32.mrf.mxu0
  %3818 = vmatprep.mubr.bf16.mxu0 %v714
  %3819 = vmatmul.mubr.bf16.gmra.mxu0 %v713
  %v3820 = vpop.f32.mrf.mxu0
  %v3821 = vadd.f32 %v3532, %v3820
  %v3822 = vpop.f32.mrf.mxu0
  %v3823 = vpop.f32.mrf.mxu0
  %v3824 = vadd.f32 %v3535, %v3823
  %v3825 = vpop.f32.mrf.mxu0
  %3826 = vmatprep.mubr.bf16.mxu0 %v718
  %3827 = vmatmul.mubr.bf16.gmra.mxu0 %v717
  %v3828 = vpop.f32.mrf.mxu0
  %v3829 = vadd.f32 %v3540, %v3828
  %v3830 = vpop.f32.mrf.mxu0
  %v3831 = vpop.f32.mrf.mxu0
  %v3832 = vadd.f32 %v3543, %v3831
  %v3833 = vpop.f32.mrf.mxu0
  %3834 = vmatprep.mubr.bf16.mxu0 %v722
  %3835 = vmatmul.mubr.bf16.gmra.mxu0 %v721
  %v3836 = vpop.f32.mrf.mxu0
  %v3837 = vadd.f32 %v3548, %v3836
  %v3838 = vpop.f32.mrf.mxu0
  %v3839 = vpop.f32.mrf.mxu0
  %v3840 = vadd.f32 %v3551, %v3839
  %v3841 = vpop.f32.mrf.mxu0
  %3842 = vmatprep.mubr.bf16.mxu0 %v726
  %3843 = vmatmul.mubr.bf16.gmra.mxu0 %v725
  %v3844 = vpop.f32.mrf.mxu0
  %v3845 = vadd.f32 %v3556, %v3844
  %v3846 = vpop.f32.mrf.mxu0
  %v3847 = vpop.f32.mrf.mxu0
  %v3848 = vadd.f32 %v3559, %v3847
  %v3849 = vpop.f32.mrf.mxu0
  %3850 = vmatprep.mubr.bf16.mxu0 %v730
  %3851 = vmatmul.mubr.bf16.gmra.mxu0 %v729
  %v3852 = vpop.f32.mrf.mxu0
  %v3853 = vadd.f32 %v3564, %v3852
  %v3854 = vpop.f32.mrf.mxu0
  %v3855 = vpop.f32.mrf.mxu0
  %v3856 = vadd.f32 %v3567, %v3855
  %v3857 = vpop.f32.mrf.mxu0
  %3858 = vmatprep.mubr.bf16.mxu0 %v734
  %3859 = vmatmul.mubr.bf16.gmra.mxu0 %v733
  %v3860 = vpop.f32.mrf.mxu0
  %v3861 = vadd.f32 %v3572, %v3860
  %v3862 = vpop.f32.mrf.mxu0
  %v3863 = vpop.f32.mrf.mxu0
  %v3864 = vadd.f32 %v3575, %v3863
  %v3865 = vpop.f32.mrf.mxu0
  %3866 = vmatprep.mubr.bf16.mxu0 %v738
  %3867 = vmatmul.mubr.bf16.gmra.mxu0 %v737
  %v3868 = vpop.f32.mrf.mxu0
  %v3869 = vadd.f32 %v3580, %v3868
  %v3870 = vpop.f32.mrf.mxu0
  %v3871 = vpop.f32.mrf.mxu0
  %v3872 = vadd.f32 %v3583, %v3871
  %v3873 = vpop.f32.mrf.mxu0
  %3874 = vmatprep.mubr.bf16.mxu0 %v742
  %3875 = vmatmul.mubr.bf16.gmra.mxu0 %v741
  %v3876 = vpop.f32.mrf.mxu0
  %v3877 = vadd.f32 %v3588, %v3876
  %v3878 = vpop.f32.mrf.mxu0
  %v3879 = vpop.f32.mrf.mxu0
  %v3880 = vadd.f32 %v3591, %v3879
  %v3881 = vpop.f32.mrf.mxu0
  %3882 = vmatprep.mubr.bf16.mxu0 %v746
  %3883 = vmatmul.mubr.bf16.gmra.mxu0 %v745
  %v3884 = vpop.f32.mrf.mxu0
  %v3885 = vadd.f32 %v3596, %v3884
  %v3886 = vpop.f32.mrf.mxu0
  %v3887 = vpop.f32.mrf.mxu0
  %v3888 = vadd.f32 %v3599, %v3887
  %v3889 = vpop.f32.mrf.mxu0
  %3890 = vmatprep.mubr.bf16.mxu0 %v750
  %3891 = vmatmul.mubr.bf16.gmra.mxu0 %v749
  %v3892 = vpop.f32.mrf.mxu0
  %v3893 = vadd.f32 %v3604, %v3892
  %v3894 = vpop.f32.mrf.mxu0
  %v3895 = vpop.f32.mrf.mxu0
  %v3896 = vadd.f32 %v3607, %v3895
  %v3897 = vpop.f32.mrf.mxu0
  %3898 = vmatprep.mubr.bf16.mxu0 %v754
  %3899 = vmatmul.mubr.bf16.gmra.mxu0 %v753
  %v3900 = vpop.f32.mrf.mxu0
  %v3901 = vadd.f32 %v3612, %v3900
  %v3902 = vpop.f32.mrf.mxu0
  %v3903 = vpop.f32.mrf.mxu0
  %v3904 = vadd.f32 %v3615, %v3903
  %v3905 = vpop.f32.mrf.mxu0
  %3906 = vmatprep.mubr.bf16.mxu0 %v758
  %3907 = vmatmul.mubr.bf16.gmra.mxu0 %v757
  %v3908 = vpop.f32.mrf.mxu0
  %v3909 = vadd.f32 %v3620, %v3908
  %v3910 = vpop.f32.mrf.mxu0
  %v3911 = vpop.f32.mrf.mxu0
  %v3912 = vadd.f32 %v3623, %v3911
  %v3913 = vpop.f32.mrf.mxu0
  %3914 = vmatprep.mubr.bf16.mxu0 %v762
  %3915 = vmatmul.mubr.bf16.gmra.mxu0 %v761
  %v3916 = vpop.f32.mrf.mxu0
  %v3917 = vadd.f32 %v3628, %v3916
  %v3918 = vpop.f32.mrf.mxu0
  %v3919 = vpop.f32.mrf.mxu0
  %v3920 = vadd.f32 %v3631, %v3919
  %v3921 = vpop.f32.mrf.mxu0
  %3922 = vmatprep.mubr.bf16.mxu0 %v766
  %3923 = vmatmul.mubr.bf16.gmra.mxu0 %v765
  %v3924 = vpop.f32.mrf.mxu0
  %v3925 = vadd.f32 %v3636, %v3924
  %v3926 = vpop.f32.mrf.mxu0
  %v3927 = vpop.f32.mrf.mxu0
  %v3928 = vadd.f32 %v3639, %v3927
  %v3929 = vpop.f32.mrf.mxu0
  %3930 = vmatprep.mubr.bf16.mxu0 %v770
  %3931 = vmatmul.mubr.bf16.gmra.mxu0 %v769
  %v3932 = vpop.f32.mrf.mxu0
  %v3933 = vadd.f32 %v3644, %v3932
  %v3934 = vpop.f32.mrf.mxu0
  %v3935 = vpop.f32.mrf.mxu0
  %v3936 = vadd.f32 %v3647, %v3935
  %v3937 = vpop.f32.mrf.mxu0
  %3938 = vmatprep.mubr.bf16.mxu0 %v774
  %3939 = vmatmul.mubr.bf16.gmra.mxu0 %v773
  %v3940 = vpop.f32.mrf.mxu0
  %v3941 = vadd.f32 %v3652, %v3940
  %v3942 = vpop.f32.mrf.mxu0
  %v3943 = vpop.f32.mrf.mxu0
  %v3944 = vadd.f32 %v3655, %v3943
  %v3945 = vpop.f32.mrf.mxu0
  %3946 = vmatprep.mubr.bf16.mxu0 %v778
  %3947 = vmatmul.mubr.bf16.gmra.mxu0 %v777
  %v3948 = vpop.f32.mrf.mxu0
  %v3949 = vadd.f32 %v3660, %v3948
  %v3950 = vpop.f32.mrf.mxu0
  %v3951 = vpop.f32.mrf.mxu0
  %v3952 = vadd.f32 %v3663, %v3951
  %v3953 = vpop.f32.mrf.mxu0
  %3954 = vmatprep.mubr.bf16.mxu0 %v782
  %3955 = vmatmul.mubr.bf16.gmra.mxu0 %v781
  %v3956 = vpop.f32.mrf.mxu0
  %v3957 = vadd.f32 %v3668, %v3956
  %v3958 = vpop.f32.mrf.mxu0
  %v3959 = vpop.f32.mrf.mxu0
  %v3960 = vadd.f32 %v3671, %v3959
  %v3961 = vpop.f32.mrf.mxu0
  %3962 = vmatprep.mubr.bf16.mxu0 %v786
  %3963 = vmatmul.mubr.bf16.gmra.mxu0 %v785
  %v3964 = vpop.f32.mrf.mxu0
  %v3965 = vadd.f32 %v3676, %v3964
  %v3966 = vpop.f32.mrf.mxu0
  %v3967 = vpop.f32.mrf.mxu0
  %v3968 = vadd.f32 %v3679, %v3967
  %v3969 = vpop.f32.mrf.mxu0
  %3970 = vdwg.mxu0
  %v3971 = vpack.c.bf16 %v3720, %v3717
  %v3972 = vpack.c.bf16 %v3728, %v3725
  %v3973 = vpack.c.bf16 %v3736, %v3733
  %v3974 = vpack.c.bf16 %v3744, %v3741
  %v3975 = vpack.c.bf16 %v3752, %v3749
  %v3976 = vpack.c.bf16 %v3760, %v3757
  %v3977 = vpack.c.bf16 %v3768, %v3765
  %v3978 = vpack.c.bf16 %v3776, %v3773
  %v3979 = vpack.c.bf16 %v3784, %v3781
  %v3980 = vpack.c.bf16 %v3792, %v3789
  %v3981 = vpack.c.bf16 %v3800, %v3797
  %v3982 = vpack.c.bf16 %v3808, %v3805
  %v3983 = vpack.c.bf16 %v3816, %v3813
  %v3984 = vpack.c.bf16 %v3824, %v3821
  %v3985 = vpack.c.bf16 %v3832, %v3829
  %v3986 = vpack.c.bf16 %v3840, %v3837
  %v3987 = vpack.c.bf16 %v3848, %v3845
  %v3988 = vpack.c.bf16 %v3856, %v3853
  %v3989 = vpack.c.bf16 %v3864, %v3861
  %v3990 = vpack.c.bf16 %v3872, %v3869
  %v3991 = vpack.c.bf16 %v3880, %v3877
  %v3992 = vpack.c.bf16 %v3888, %v3885
  %v3993 = vpack.c.bf16 %v3896, %v3893
  %v3994 = vpack.c.bf16 %v3904, %v3901
  %v3995 = vpack.c.bf16 %v3912, %v3909
  %v3996 = vpack.c.bf16 %v3920, %v3917
  %v3997 = vpack.c.bf16 %v3928, %v3925
  %v3998 = vpack.c.bf16 %v3936, %v3933
  %v3999 = vpack.c.bf16 %v3944, %v3941
  %v4000 = vpack.c.bf16 %v3952, %v3949
  %v4001 = vpack.c.bf16 %v3960, %v3957
  %v4002 = vpack.c.bf16 %v3968, %v3965
  %s4003 = scalar_lea.vmem %s3, 64
  %v4004 = vld [vmem:[%s4003] sm:$0xf]
  %v4005 = vld [vmem:[%s4003 + $0x4] sm:$0xf]
  %v4006 = vld [vmem:[%s4003 + $0x8] sm:$0xf]
  %v4007 = vld [vmem:[%s4003 + $0xc] sm:$0xf]
  %v4008 = vld [vmem:[%s4003 + $0x10] sm:$0xf]
  %v4009 = vld [vmem:[%s4003 + $0x14] sm:$0xf]
  %v4010 = vld [vmem:[%s4003 + $0x18] sm:$0xf]
  %v4011 = vld [vmem:[%s4003 + $0x1c] sm:$0xf]
  %v4012 = vld [vmem:[%s4003 + $0x20] sm:$0xf]
  %v4013 = vld [vmem:[%s4003 + $0x24] sm:$0xf]
  %v4014 = vld [vmem:[%s4003 + $0x28] sm:$0xf]
  %v4015 = vld [vmem:[%s4003 + $0x2c] sm:$0xf]
  %v4016 = vld [vmem:[%s4003 + $0x30] sm:$0xf]
  %v4017 = vld [vmem:[%s4003 + $0x34] sm:$0xf]
  %v4018 = vld [vmem:[%s4003 + $0x38] sm:$0xf]
  %v4019 = vld [vmem:[%s4003 + $0x3c] sm:$0xf]
  %s4020 = scalar_lea.vmem %s4, 1
  %v4021 = vld [vmem:[%s4020] sm:$0x1]
  %v4023 = vlaneseq
  %v4024 = vshrl.u32 %v4023, 7
  %v4025 = vsub.s32 0, %v4024
  %v4026 = vrot.slane %v4021, %v4025
  %v4044 = vunpack.c.l.b16 %v4004
  %v4045 = vunpack.c.l.b16 %v4005
  %v4046 = vunpack.c.l.b16 %v4006
  %v4047 = vunpack.c.l.b16 %v4007
  %v4048 = vunpack.c.l.b16 %v4008
  %v4049 = vunpack.c.l.b16 %v4009
  %v4050 = vunpack.c.l.b16 %v4010
  %v4051 = vunpack.c.l.b16 %v4011
  %v4052 = vunpack.c.l.b16 %v4012
  %v4053 = vunpack.c.l.b16 %v4013
  %v4054 = vunpack.c.l.b16 %v4014
  %v4055 = vunpack.c.l.b16 %v4015
  %v4056 = vunpack.c.l.b16 %v4016
  %v4057 = vunpack.c.l.b16 %v4017
  %v4058 = vunpack.c.l.b16 %v4018
  %v4059 = vunpack.c.l.b16 %v4019
  %v4060 = vpack.c.b16 %v4045, %v4044
  %v4061 = vpack.c.b16 %v4047, %v4046
  %v4062 = vpack.c.b16 %v4049, %v4048
  %v4063 = vpack.c.b16 %v4051, %v4050
  %v4064 = vpack.c.b16 %v4053, %v4052
  %v4065 = vpack.c.b16 %v4055, %v4054
  %v4066 = vpack.c.b16 %v4057, %v4056
  %v4067 = vpack.c.b16 %v4059, %v4058
  %4076 = vmatprep.subr.bf16.mxu0 0
  %4077 = vmatpush1.bf16.msra.mxu0 %v4067
  %4078 = vmatprep.subr.bf16.mxu0 0
  %4079 = vmatpush1.bf16.msra.mxu0 %v4066
  %4080 = vmatprep.subr.bf16.mxu0 0
  %4081 = vmatpush1.bf16.msra.mxu0 %v4065
  %4082 = vmatprep.subr.bf16.mxu0 0
  %4083 = vmatpush1.bf16.msra.mxu0 %v4064
  %4084 = vmatprep.subr.bf16.mxu0 0
  %4085 = vmatpush1.bf16.msra.mxu0 %v4063
  %4086 = vmatprep.subr.bf16.mxu0 0
  %4087 = vmatpush1.bf16.msra.mxu0 %v4062
  %4088 = vmatprep.subr.bf16.mxu0 0
  %4089 = vmatpush1.bf16.msra.mxu0 %v4061
  %4090 = vmatprep.subr.bf16.mxu0 0
  %4091 = vmatpush1.bf16.msra.mxu0 %v4060
  %4092 = vmatprep.subr.bf16.mxu0 0
  %4093 = vmatpush2.bf16.msra.mxu0 0
  %4094 = vmatprep.subr.bf16.mxu0 0
  %4095 = vmatpush2.bf16.msra.mxu0 0
  %4096 = vmatprep.subr.bf16.mxu0 0
  %4097 = vmatpush2.bf16.msra.mxu0 0
  %4098 = vmatprep.subr.bf16.mxu0 0
  %4099 = vmatpush2.bf16.msra.mxu0 0
  %4100 = vmatprep.subr.bf16.mxu0 0
  %4101 = vmatpush2.bf16.msra.mxu0 0
  %4102 = vmatprep.subr.bf16.mxu0 0
  %4103 = vmatpush2.bf16.msra.mxu0 0
  %4104 = vmatprep.subr.bf16.mxu0 0
  %4105 = vmatpush2.bf16.msra.mxu0 0
  %4106 = vmatprep.subr.bf16.mxu0 0
  %4107 = vmatpush2.bf16.msra.mxu0 0
  %4108 = vmatprep.mubr.bf16.mxu0 0
  %4109 = vmatmul.mubr.bf16.gmra.mxu0 %v3971
  %v4110 = vpop.f32.mrf.mxu0
  %v4111 = vadd.f32 %v4026, %v4110
  %v4112 = vpop.f32.mrf.mxu0
  %v4113 = vpop.f32.mrf.mxu0
  %v4114 = vadd.f32 %v4026, %v4113
  %v4115 = vpop.f32.mrf.mxu0
  %4116 = vmatprep.mubr.bf16.mxu0 0
  %4117 = vmatmul.mubr.bf16.gmra.mxu0 %v3972
  %v4118 = vpop.f32.mrf.mxu0
  %v4119 = vadd.f32 %v4026, %v4118
  %v4120 = vpop.f32.mrf.mxu0
  %v4121 = vpop.f32.mrf.mxu0
  %v4122 = vadd.f32 %v4026, %v4121
  %v4123 = vpop.f32.mrf.mxu0
  %4124 = vmatprep.mubr.bf16.mxu0 0
  %4125 = vmatmul.mubr.bf16.gmra.mxu0 %v3973
  %v4126 = vpop.f32.mrf.mxu0
  %v4127 = vadd.f32 %v4026, %v4126
  %v4128 = vpop.f32.mrf.mxu0
  %v4129 = vpop.f32.mrf.mxu0
  %v4130 = vadd.f32 %v4026, %v4129
  %v4131 = vpop.f32.mrf.mxu0
  %4132 = vmatprep.mubr.bf16.mxu0 0
  %4133 = vmatmul.mubr.bf16.gmra.mxu0 %v3974
  %v4134 = vpop.f32.mrf.mxu0
  %v4135 = vadd.f32 %v4026, %v4134
  %v4136 = vpop.f32.mrf.mxu0
  %v4137 = vpop.f32.mrf.mxu0
  %v4138 = vadd.f32 %v4026, %v4137
  %v4139 = vpop.f32.mrf.mxu0
  %4140 = vmatprep.mubr.bf16.mxu0 0
  %4141 = vmatmul.mubr.bf16.gmra.mxu0 %v3975
  %v4142 = vpop.f32.mrf.mxu0
  %v4143 = vadd.f32 %v4026, %v4142
  %v4144 = vpop.f32.mrf.mxu0
  %v4145 = vpop.f32.mrf.mxu0
  %v4146 = vadd.f32 %v4026, %v4145
  %v4147 = vpop.f32.mrf.mxu0
  %4148 = vmatprep.mubr.bf16.mxu0 0
  %4149 = vmatmul.mubr.bf16.gmra.mxu0 %v3976
  %v4150 = vpop.f32.mrf.mxu0
  %v4151 = vadd.f32 %v4026, %v4150
  %v4152 = vpop.f32.mrf.mxu0
  %v4153 = vpop.f32.mrf.mxu0
  %v4154 = vadd.f32 %v4026, %v4153
  %v4155 = vpop.f32.mrf.mxu0
  %4156 = vmatprep.mubr.bf16.mxu0 0
  %4157 = vmatmul.mubr.bf16.gmra.mxu0 %v3977
  %v4158 = vpop.f32.mrf.mxu0
  %v4159 = vadd.f32 %v4026, %v4158
  %v4160 = vpop.f32.mrf.mxu0
  %v4161 = vpop.f32.mrf.mxu0
  %v4162 = vadd.f32 %v4026, %v4161
  %v4163 = vpop.f32.mrf.mxu0
  %4164 = vmatprep.mubr.bf16.mxu0 0
  %4165 = vmatmul.mubr.bf16.gmra.mxu0 %v3978
  %v4166 = vpop.f32.mrf.mxu0
  %v4167 = vadd.f32 %v4026, %v4166
  %v4168 = vpop.f32.mrf.mxu0
  %v4169 = vpop.f32.mrf.mxu0
  %v4170 = vadd.f32 %v4026, %v4169
  %v4171 = vpop.f32.mrf.mxu0
  %4172 = vmatprep.mubr.bf16.mxu0 0
  %4173 = vmatmul.mubr.bf16.gmra.mxu0 %v3979
  %v4174 = vpop.f32.mrf.mxu0
  %v4175 = vadd.f32 %v4026, %v4174
  %v4176 = vpop.f32.mrf.mxu0
  %v4177 = vpop.f32.mrf.mxu0
  %v4178 = vadd.f32 %v4026, %v4177
  %v4179 = vpop.f32.mrf.mxu0
  %4180 = vmatprep.mubr.bf16.mxu0 0
  %4181 = vmatmul.mubr.bf16.gmra.mxu0 %v3980
  %v4182 = vpop.f32.mrf.mxu0
  %v4183 = vadd.f32 %v4026, %v4182
  %v4184 = vpop.f32.mrf.mxu0
  %v4185 = vpop.f32.mrf.mxu0
  %v4186 = vadd.f32 %v4026, %v4185
  %v4187 = vpop.f32.mrf.mxu0
  %4188 = vmatprep.mubr.bf16.mxu0 0
  %4189 = vmatmul.mubr.bf16.gmra.mxu0 %v3981
  %v4190 = vpop.f32.mrf.mxu0
  %v4191 = vadd.f32 %v4026, %v4190
  %v4192 = vpop.f32.mrf.mxu0
  %v4193 = vpop.f32.mrf.mxu0
  %v4194 = vadd.f32 %v4026, %v4193
  %v4195 = vpop.f32.mrf.mxu0
  %4196 = vmatprep.mubr.bf16.mxu0 0
  %4197 = vmatmul.mubr.bf16.gmra.mxu0 %v3982
  %v4198 = vpop.f32.mrf.mxu0
  %v4199 = vadd.f32 %v4026, %v4198
  %v4200 = vpop.f32.mrf.mxu0
  %v4201 = vpop.f32.mrf.mxu0
  %v4202 = vadd.f32 %v4026, %v4201
  %v4203 = vpop.f32.mrf.mxu0
  %4204 = vmatprep.mubr.bf16.mxu0 0
  %4205 = vmatmul.mubr.bf16.gmra.mxu0 %v3983
  %v4206 = vpop.f32.mrf.mxu0
  %v4207 = vadd.f32 %v4026, %v4206
  %v4208 = vpop.f32.mrf.mxu0
  %v4209 = vpop.f32.mrf.mxu0
  %v4210 = vadd.f32 %v4026, %v4209
  %v4211 = vpop.f32.mrf.mxu0
  %4212 = vmatprep.mubr.bf16.mxu0 0
  %4213 = vmatmul.mubr.bf16.gmra.mxu0 %v3984
  %v4214 = vpop.f32.mrf.mxu0
  %v4215 = vadd.f32 %v4026, %v4214
  %v4216 = vpop.f32.mrf.mxu0
  %v4217 = vpop.f32.mrf.mxu0
  %v4218 = vadd.f32 %v4026, %v4217
  %v4219 = vpop.f32.mrf.mxu0
  %4220 = vmatprep.mubr.bf16.mxu0 0
  %4221 = vmatmul.mubr.bf16.gmra.mxu0 %v3985
  %v4222 = vpop.f32.mrf.mxu0
  %v4223 = vadd.f32 %v4026, %v4222
  %v4224 = vpop.f32.mrf.mxu0
  %v4225 = vpop.f32.mrf.mxu0
  %v4226 = vadd.f32 %v4026, %v4225
  %v4227 = vpop.f32.mrf.mxu0
  %4228 = vmatprep.mubr.bf16.mxu0 0
  %4229 = vmatmul.mubr.bf16.gmra.mxu0 %v3986
  %v4230 = vpop.f32.mrf.mxu0
  %v4231 = vadd.f32 %v4026, %v4230
  %v4232 = vpop.f32.mrf.mxu0
  %v4233 = vpop.f32.mrf.mxu0
  %v4234 = vadd.f32 %v4026, %v4233
  %v4235 = vpop.f32.mrf.mxu0
  %4236 = vmatprep.mubr.bf16.mxu0 0
  %4237 = vmatmul.mubr.bf16.gmra.mxu0 %v3987
  %v4238 = vpop.f32.mrf.mxu0
  %v4239 = vadd.f32 %v4026, %v4238
  %v4240 = vpop.f32.mrf.mxu0
  %v4241 = vpop.f32.mrf.mxu0
  %v4242 = vadd.f32 %v4026, %v4241
  %v4243 = vpop.f32.mrf.mxu0
  %4244 = vmatprep.mubr.bf16.mxu0 0
  %4245 = vmatmul.mubr.bf16.gmra.mxu0 %v3988
  %v4246 = vpop.f32.mrf.mxu0
  %v4247 = vadd.f32 %v4026, %v4246
  %v4248 = vpop.f32.mrf.mxu0
  %v4249 = vpop.f32.mrf.mxu0
  %v4250 = vadd.f32 %v4026, %v4249
  %v4251 = vpop.f32.mrf.mxu0
  %4252 = vmatprep.mubr.bf16.mxu0 0
  %4253 = vmatmul.mubr.bf16.gmra.mxu0 %v3989
  %v4254 = vpop.f32.mrf.mxu0
  %v4255 = vadd.f32 %v4026, %v4254
  %v4256 = vpop.f32.mrf.mxu0
  %v4257 = vpop.f32.mrf.mxu0
  %v4258 = vadd.f32 %v4026, %v4257
  %v4259 = vpop.f32.mrf.mxu0
  %4260 = vmatprep.mubr.bf16.mxu0 0
  %4261 = vmatmul.mubr.bf16.gmra.mxu0 %v3990
  %v4262 = vpop.f32.mrf.mxu0
  %v4263 = vadd.f32 %v4026, %v4262
  %v4264 = vpop.f32.mrf.mxu0
  %v4265 = vpop.f32.mrf.mxu0
  %v4266 = vadd.f32 %v4026, %v4265
  %v4267 = vpop.f32.mrf.mxu0
  %4268 = vmatprep.mubr.bf16.mxu0 0
  %4269 = vmatmul.mubr.bf16.gmra.mxu0 %v3991
  %v4270 = vpop.f32.mrf.mxu0
  %v4271 = vadd.f32 %v4026, %v4270
  %v4272 = vpop.f32.mrf.mxu0
  %v4273 = vpop.f32.mrf.mxu0
  %v4274 = vadd.f32 %v4026, %v4273
  %v4275 = vpop.f32.mrf.mxu0
  %4276 = vmatprep.mubr.bf16.mxu0 0
  %4277 = vmatmul.mubr.bf16.gmra.mxu0 %v3992
  %v4278 = vpop.f32.mrf.mxu0
  %v4279 = vadd.f32 %v4026, %v4278
  %v4280 = vpop.f32.mrf.mxu0
  %v4281 = vpop.f32.mrf.mxu0
  %v4282 = vadd.f32 %v4026, %v4281
  %v4283 = vpop.f32.mrf.mxu0
  %4284 = vmatprep.mubr.bf16.mxu0 0
  %4285 = vmatmul.mubr.bf16.gmra.mxu0 %v3993
  %v4286 = vpop.f32.mrf.mxu0
  %v4287 = vadd.f32 %v4026, %v4286
  %v4288 = vpop.f32.mrf.mxu0
  %v4289 = vpop.f32.mrf.mxu0
  %v4290 = vadd.f32 %v4026, %v4289
  %v4291 = vpop.f32.mrf.mxu0
  %4292 = vmatprep.mubr.bf16.mxu0 0
  %4293 = vmatmul.mubr.bf16.gmra.mxu0 %v3994
  %v4294 = vpop.f32.mrf.mxu0
  %v4295 = vadd.f32 %v4026, %v4294
  %v4296 = vpop.f32.mrf.mxu0
  %v4297 = vpop.f32.mrf.mxu0
  %v4298 = vadd.f32 %v4026, %v4297
  %v4299 = vpop.f32.mrf.mxu0
  %4300 = vmatprep.mubr.bf16.mxu0 0
  %4301 = vmatmul.mubr.bf16.gmra.mxu0 %v3995
  %v4302 = vpop.f32.mrf.mxu0
  %v4303 = vadd.f32 %v4026, %v4302
  %v4304 = vpop.f32.mrf.mxu0
  %v4305 = vpop.f32.mrf.mxu0
  %v4306 = vadd.f32 %v4026, %v4305
  %v4307 = vpop.f32.mrf.mxu0
  %4308 = vmatprep.mubr.bf16.mxu0 0
  %4309 = vmatmul.mubr.bf16.gmra.mxu0 %v3996
  %v4310 = vpop.f32.mrf.mxu0
  %v4311 = vadd.f32 %v4026, %v4310
  %v4312 = vpop.f32.mrf.mxu0
  %v4313 = vpop.f32.mrf.mxu0
  %v4314 = vadd.f32 %v4026, %v4313
  %v4315 = vpop.f32.mrf.mxu0
  %4316 = vmatprep.mubr.bf16.mxu0 0
  %4317 = vmatmul.mubr.bf16.gmra.mxu0 %v3997
  %v4318 = vpop.f32.mrf.mxu0
  %v4319 = vadd.f32 %v4026, %v4318
  %v4320 = vpop.f32.mrf.mxu0
  %v4321 = vpop.f32.mrf.mxu0
  %v4322 = vadd.f32 %v4026, %v4321
  %v4323 = vpop.f32.mrf.mxu0
  %4324 = vmatprep.mubr.bf16.mxu0 0
  %4325 = vmatmul.mubr.bf16.gmra.mxu0 %v3998
  %v4326 = vpop.f32.mrf.mxu0
  %v4327 = vadd.f32 %v4026, %v4326
  %v4328 = vpop.f32.mrf.mxu0
  %v4329 = vpop.f32.mrf.mxu0
  %v4330 = vadd.f32 %v4026, %v4329
  %v4331 = vpop.f32.mrf.mxu0
  %4332 = vmatprep.mubr.bf16.mxu0 0
  %4333 = vmatmul.mubr.bf16.gmra.mxu0 %v3999
  %v4334 = vpop.f32.mrf.mxu0
  %v4335 = vadd.f32 %v4026, %v4334
  %v4336 = vpop.f32.mrf.mxu0
  %v4337 = vpop.f32.mrf.mxu0
  %v4338 = vadd.f32 %v4026, %v4337
  %v4339 = vpop.f32.mrf.mxu0
  %4340 = vmatprep.mubr.bf16.mxu0 0
  %4341 = vmatmul.mubr.bf16.gmra.mxu0 %v4000
  %v4342 = vpop.f32.mrf.mxu0
  %v4343 = vadd.f32 %v4026, %v4342
  %v4344 = vpop.f32.mrf.mxu0
  %v4345 = vpop.f32.mrf.mxu0
  %v4346 = vadd.f32 %v4026, %v4345
  %v4347 = vpop.f32.mrf.mxu0
  %4348 = vmatprep.mubr.bf16.mxu0 0
  %4349 = vmatmul.mubr.bf16.gmra.mxu0 %v4001
  %v4350 = vpop.f32.mrf.mxu0
  %v4351 = vadd.f32 %v4026, %v4350
  %v4352 = vpop.f32.mrf.mxu0
  %v4353 = vpop.f32.mrf.mxu0
  %v4354 = vadd.f32 %v4026, %v4353
  %v4355 = vpop.f32.mrf.mxu0
  %4356 = vmatprep.mubr.bf16.mxu0 0
  %4357 = vmatmul.mubr.bf16.gmra.mxu0 %v4002
  %v4358 = vpop.f32.mrf.mxu0
  %v4359 = vadd.f32 %v4026, %v4358
  %v4360 = vpop.f32.mrf.mxu0
  %v4361 = vpop.f32.mrf.mxu0
  %v4362 = vadd.f32 %v4026, %v4361
  %v4363 = vpop.f32.mrf.mxu0
  %4364 = vdwg.mxu0
  %s4365 = scalar_lea.vmem %s5, 1
  %v4366 = vld [vmem:[%s4365] sm:$0x1]
  %s4367 = scalar_lea.vmem %s6, 1
  %v4368 = vld [vmem:[%s4367] sm:$0x1]
  %v4369 = vadd.f32 %v4111, %v4114
  %v4370 = vadd.f32 %v4369, %v4119
  %v4371 = vadd.f32 %v4370, %v4122
  %v4372 = vadd.f32 %v4371, %v4127
  %v4373 = vadd.f32 %v4372, %v4130
  %v4374 = vadd.f32 %v4373, %v4135
  %v4375 = vadd.f32 %v4374, %v4138
  %v4376 = vadd.f32 %v4375, %v4143
  %v4377 = vadd.f32 %v4376, %v4146
  %v4378 = vadd.f32 %v4377, %v4151
  %v4379 = vadd.f32 %v4378, %v4154
  %v4380 = vadd.f32 %v4379, %v4159
  %v4381 = vadd.f32 %v4380, %v4162
  %v4382 = vadd.f32 %v4381, %v4167
  %v4383 = vadd.f32 %v4382, %v4170
  %v4384 = vadd.f32 %v4383, %v4175
  %v4385 = vadd.f32 %v4384, %v4178
  %v4386 = vadd.f32 %v4385, %v4183
  %v4387 = vadd.f32 %v4386, %v4186
  %v4388 = vadd.f32 %v4387, %v4191
  %v4389 = vadd.f32 %v4388, %v4194
  %v4390 = vadd.f32 %v4389, %v4199
  %v4391 = vadd.f32 %v4390, %v4202
  %v4392 = vadd.f32 %v4391, %v4207
  %v4393 = vadd.f32 %v4392, %v4210
  %v4394 = vadd.f32 %v4393, %v4215
  %v4395 = vadd.f32 %v4394, %v4218
  %v4396 = vadd.f32 %v4395, %v4223
  %v4397 = vadd.f32 %v4396, %v4226
  %v4398 = vadd.f32 %v4397, %v4231
  %v4399 = vadd.f32 %v4398, %v4234
  %v4400 = vadd.f32 %v4399, %v4239
  %v4401 = vadd.f32 %v4400, %v4242
  %v4402 = vadd.f32 %v4401, %v4247
  %v4403 = vadd.f32 %v4402, %v4250
  %v4404 = vadd.f32 %v4403, %v4255
  %v4405 = vadd.f32 %v4404, %v4258
  %v4406 = vadd.f32 %v4405, %v4263
  %v4407 = vadd.f32 %v4406, %v4266
  %v4408 = vadd.f32 %v4407, %v4271
  %v4409 = vadd.f32 %v4408, %v4274
  %v4410 = vadd.f32 %v4409, %v4279
  %v4411 = vadd.f32 %v4410, %v4282
  %v4412 = vadd.f32 %v4411, %v4287
  %v4413 = vadd.f32 %v4412, %v4290
  %v4414 = vadd.f32 %v4413, %v4295
  %v4415 = vadd.f32 %v4414, %v4298
  %v4416 = vadd.f32 %v4415, %v4303
  %v4417 = vadd.f32 %v4416, %v4306
  %v4418 = vadd.f32 %v4417, %v4311
  %v4419 = vadd.f32 %v4418, %v4314
  %v4420 = vadd.f32 %v4419, %v4319
  %v4421 = vadd.f32 %v4420, %v4322
  %v4422 = vadd.f32 %v4421, %v4327
  %v4423 = vadd.f32 %v4422, %v4330
  %v4424 = vadd.f32 %v4423, %v4335
  %v4425 = vadd.f32 %v4424, %v4338
  %v4426 = vadd.f32 %v4425, %v4343
  %v4427 = vadd.f32 %v4426, %v4346
  %v4428 = vadd.f32 %v4427, %v4351
  %v4429 = vadd.f32 %v4428, %v4354
  %v4430 = vadd.f32 %v4429, %v4359
  %v4431 = vadd.f32 %v4430, %v4362
  %v4432 = vrot.slane %v4431, 4
  %v4433 = vadd.f32 %v4431, %v4432
  %v4434 = vrot.slane %v4433, 2
  %v4435 = vadd.f32 %v4433, %v4434
  %v4436 = vrot.slane %v4435, 1
  %v4437 = vadd.f32 %v4435, %v4436
  %v4438 = vmul.f32 %v4111, %v4111
  %v4439 = vmul.f32 %v4114, %v4114
  %v4440 = vmul.f32 %v4119, %v4119
  %v4441 = vmul.f32 %v4122, %v4122
  %v4442 = vmul.f32 %v4127, %v4127
  %v4443 = vmul.f32 %v4130, %v4130
  %v4444 = vmul.f32 %v4135, %v4135
  %v4445 = vmul.f32 %v4138, %v4138
  %v4446 = vmul.f32 %v4143, %v4143
  %v4447 = vmul.f32 %v4146, %v4146
  %v4448 = vmul.f32 %v4151, %v4151
  %v4449 = vmul.f32 %v4154, %v4154
  %v4450 = vmul.f32 %v4159, %v4159
  %v4451 = vmul.f32 %v4162, %v4162
  %v4452 = vmul.f32 %v4167, %v4167
  %v4453 = vmul.f32 %v4170, %v4170
  %v4454 = vmul.f32 %v4175, %v4175
  %v4455 = vmul.f32 %v4178, %v4178
  %v4456 = vmul.f32 %v4183, %v4183
  %v4457 = vmul.f32 %v4186, %v4186
  %v4458 = vmul.f32 %v4191, %v4191
  %v4459 = vmul.f32 %v4194, %v4194
  %v4460 = vmul.f32 %v4199, %v4199
  %v4461 = vmul.f32 %v4202, %v4202
  %v4462 = vmul.f32 %v4207, %v4207
  %v4463 = vmul.f32 %v4210, %v4210
  %v4464 = vmul.f32 %v4215, %v4215
  %v4465 = vmul.f32 %v4218, %v4218
  %v4466 = vmul.f32 %v4223, %v4223
  %v4467 = vmul.f32 %v4226, %v4226
  %v4468 = vmul.f32 %v4231, %v4231
  %v4469 = vmul.f32 %v4234, %v4234
  %v4470 = vmul.f32 %v4239, %v4239
  %v4471 = vmul.f32 %v4242, %v4242
  %v4472 = vmul.f32 %v4247, %v4247
  %v4473 = vmul.f32 %v4250, %v4250
  %v4474 = vmul.f32 %v4255, %v4255
  %v4475 = vmul.f32 %v4258, %v4258
  %v4476 = vmul.f32 %v4263, %v4263
  %v4477 = vmul.f32 %v4266, %v4266
  %v4478 = vmul.f32 %v4271, %v4271
  %v4479 = vmul.f32 %v4274, %v4274
  %v4480 = vmul.f32 %v4279, %v4279
  %v4481 = vmul.f32 %v4282, %v4282
  %v4482 = vmul.f32 %v4287, %v4287
  %v4483 = vmul.f32 %v4290, %v4290
  %v4484 = vmul.f32 %v4295, %v4295
  %v4485 = vmul.f32 %v4298, %v4298
  %v4486 = vmul.f32 %v4303, %v4303
  %v4487 = vmul.f32 %v4306, %v4306
  %v4488 = vmul.f32 %v4311, %v4311
  %v4489 = vmul.f32 %v4314, %v4314
  %v4490 = vmul.f32 %v4319, %v4319
  %v4491 = vmul.f32 %v4322, %v4322
  %v4492 = vmul.f32 %v4327, %v4327
  %v4493 = vmul.f32 %v4330, %v4330
  %v4494 = vmul.f32 %v4335, %v4335
  %v4495 = vmul.f32 %v4338, %v4338
  %v4496 = vmul.f32 %v4343, %v4343
  %v4497 = vmul.f32 %v4346, %v4346
  %v4498 = vmul.f32 %v4351, %v4351
  %v4499 = vmul.f32 %v4354, %v4354
  %v4500 = vmul.f32 %v4359, %v4359
  %v4501 = vmul.f32 %v4362, %v4362
  %v4502 = vadd.f32 %v4438, %v4439
  %v4503 = vadd.f32 %v4502, %v4440
  %v4504 = vadd.f32 %v4503, %v4441
  %v4505 = vadd.f32 %v4504, %v4442
  %v4506 = vadd.f32 %v4505, %v4443
  %v4507 = vadd.f32 %v4506, %v4444
  %v4508 = vadd.f32 %v4507, %v4445
  %v4509 = vadd.f32 %v4508, %v4446
  %v4510 = vadd.f32 %v4509, %v4447
  %v4511 = vadd.f32 %v4510, %v4448
  %v4512 = vadd.f32 %v4511, %v4449
  %v4513 = vadd.f32 %v4512, %v4450
  %v4514 = vadd.f32 %v4513, %v4451
  %v4515 = vadd.f32 %v4514, %v4452
  %v4516 = vadd.f32 %v4515, %v4453
  %v4517 = vadd.f32 %v4516, %v4454
  %v4518 = vadd.f32 %v4517, %v4455
  %v4519 = vadd.f32 %v4518, %v4456
  %v4520 = vadd.f32 %v4519, %v4457
  %v4521 = vadd.f32 %v4520, %v4458
  %v4522 = vadd.f32 %v4521, %v4459
  %v4523 = vadd.f32 %v4522, %v4460
  %v4524 = vadd.f32 %v4523, %v4461
  %v4525 = vadd.f32 %v4524, %v4462
  %v4526 = vadd.f32 %v4525, %v4463
  %v4527 = vadd.f32 %v4526, %v4464
  %v4528 = vadd.f32 %v4527, %v4465
  %v4529 = vadd.f32 %v4528, %v4466
  %v4530 = vadd.f32 %v4529, %v4467
  %v4531 = vadd.f32 %v4530, %v4468
  %v4532 = vadd.f32 %v4531, %v4469
  %v4533 = vadd.f32 %v4532, %v4470
  %v4534 = vadd.f32 %v4533, %v4471
  %v4535 = vadd.f32 %v4534, %v4472
  %v4536 = vadd.f32 %v4535, %v4473
  %v4537 = vadd.f32 %v4536, %v4474
  %v4538 = vadd.f32 %v4537, %v4475
  %v4539 = vadd.f32 %v4538, %v4476
  %v4540 = vadd.f32 %v4539, %v4477
  %v4541 = vadd.f32 %v4540, %v4478
  %v4542 = vadd.f32 %v4541, %v4479
  %v4543 = vadd.f32 %v4542, %v4480
  %v4544 = vadd.f32 %v4543, %v4481
  %v4545 = vadd.f32 %v4544, %v4482
  %v4546 = vadd.f32 %v4545, %v4483
  %v4547 = vadd.f32 %v4546, %v4484
  %v4548 = vadd.f32 %v4547, %v4485
  %v4549 = vadd.f32 %v4548, %v4486
  %v4550 = vadd.f32 %v4549, %v4487
  %v4551 = vadd.f32 %v4550, %v4488
  %v4552 = vadd.f32 %v4551, %v4489
  %v4553 = vadd.f32 %v4552, %v4490
  %v4554 = vadd.f32 %v4553, %v4491
  %v4555 = vadd.f32 %v4554, %v4492
  %v4556 = vadd.f32 %v4555, %v4493
  %v4557 = vadd.f32 %v4556, %v4494
  %v4558 = vadd.f32 %v4557, %v4495
  %v4559 = vadd.f32 %v4558, %v4496
  %v4560 = vadd.f32 %v4559, %v4497
  %v4561 = vadd.f32 %v4560, %v4498
  %v4562 = vadd.f32 %v4561, %v4499
  %v4563 = vadd.f32 %v4562, %v4500
  %v4564 = vadd.f32 %v4563, %v4501
  %v4565 = vrot.slane %v4564, 4
  %v4566 = vadd.f32 %v4564, %v4565
  %v4567 = vrot.slane %v4566, 2
  %v4568 = vadd.f32 %v4566, %v4567
  %v4569 = vrot.slane %v4568, 1
  %v4570 = vadd.f32 %v4568, %v4569
  %v4571 = vmul.f32 %v4437, 0.001953125
  %v4572 = vmul.f32 %v4570, 0.001953125
  %v4573 = vmul.f32 %v4571, %v4571
  %v4574 = vsub.f32 %v4572, %v4573
  %v4575 = vsub.f32 %v4111, %v4571
  %v4576 = vsub.f32 %v4114, %v4571
  %v4577 = vsub.f32 %v4119, %v4571
  %v4578 = vsub.f32 %v4122, %v4571
  %v4579 = vsub.f32 %v4127, %v4571
  %v4580 = vsub.f32 %v4130, %v4571
  %v4581 = vsub.f32 %v4135, %v4571
  %v4582 = vsub.f32 %v4138, %v4571
  %v4583 = vsub.f32 %v4143, %v4571
  %v4584 = vsub.f32 %v4146, %v4571
  %v4585 = vsub.f32 %v4151, %v4571
  %v4586 = vsub.f32 %v4154, %v4571
  %v4587 = vsub.f32 %v4159, %v4571
  %v4588 = vsub.f32 %v4162, %v4571
  %v4589 = vsub.f32 %v4167, %v4571
  %v4590 = vsub.f32 %v4170, %v4571
  %v4591 = vsub.f32 %v4175, %v4571
  %v4592 = vsub.f32 %v4178, %v4571
  %v4593 = vsub.f32 %v4183, %v4571
  %v4594 = vsub.f32 %v4186, %v4571
  %v4595 = vsub.f32 %v4191, %v4571
  %v4596 = vsub.f32 %v4194, %v4571
  %v4597 = vsub.f32 %v4199, %v4571
  %v4598 = vsub.f32 %v4202, %v4571
  %v4599 = vsub.f32 %v4207, %v4571
  %v4600 = vsub.f32 %v4210, %v4571
  %v4601 = vsub.f32 %v4215, %v4571
  %v4602 = vsub.f32 %v4218, %v4571
  %v4603 = vsub.f32 %v4223, %v4571
  %v4604 = vsub.f32 %v4226, %v4571
  %v4605 = vsub.f32 %v4231, %v4571
  %v4606 = vsub.f32 %v4234, %v4571
  %v4607 = vsub.f32 %v4239, %v4571
  %v4608 = vsub.f32 %v4242, %v4571
  %v4609 = vsub.f32 %v4247, %v4571
  %v4610 = vsub.f32 %v4250, %v4571
  %v4611 = vsub.f32 %v4255, %v4571
  %v4612 = vsub.f32 %v4258, %v4571
  %v4613 = vsub.f32 %v4263, %v4571
  %v4614 = vsub.f32 %v4266, %v4571
  %v4615 = vsub.f32 %v4271, %v4571
  %v4616 = vsub.f32 %v4274, %v4571
  %v4617 = vsub.f32 %v4279, %v4571
  %v4618 = vsub.f32 %v4282, %v4571
  %v4619 = vsub.f32 %v4287, %v4571
  %v4620 = vsub.f32 %v4290, %v4571
  %v4621 = vsub.f32 %v4295, %v4571
  %v4622 = vsub.f32 %v4298, %v4571
  %v4623 = vsub.f32 %v4303, %v4571
  %v4624 = vsub.f32 %v4306, %v4571
  %v4625 = vsub.f32 %v4311, %v4571
  %v4626 = vsub.f32 %v4314, %v4571
  %v4627 = vsub.f32 %v4319, %v4571
  %v4628 = vsub.f32 %v4322, %v4571
  %v4629 = vsub.f32 %v4327, %v4571
  %v4630 = vsub.f32 %v4330, %v4571
  %v4631 = vsub.f32 %v4335, %v4571
  %v4632 = vsub.f32 %v4338, %v4571
  %v4633 = vsub.f32 %v4343, %v4571
  %v4634 = vsub.f32 %v4346, %v4571
  %v4635 = vsub.f32 %v4351, %v4571
  %v4636 = vsub.f32 %v4354, %v4571
  %v4637 = vsub.f32 %v4359, %v4571
  %v4638 = vsub.f32 %v4362, %v4571
  %v4639 = vadd.f32 %v4574, 1e-05
  %v4640 = vrsqrt.pop %v4639
  %v4641 = vmul.f32 %v4575, %v4640
  %v4642 = vmul.f32 %v4576, %v4640
  %v4643 = vmul.f32 %v4577, %v4640
  %v4644 = vmul.f32 %v4578, %v4640
  %v4645 = vmul.f32 %v4579, %v4640
  %v4646 = vmul.f32 %v4580, %v4640
  %v4647 = vmul.f32 %v4581, %v4640
  %v4648 = vmul.f32 %v4582, %v4640
  %v4649 = vmul.f32 %v4583, %v4640
  %v4650 = vmul.f32 %v4584, %v4640
  %v4651 = vmul.f32 %v4585, %v4640
  %v4652 = vmul.f32 %v4586, %v4640
  %v4653 = vmul.f32 %v4587, %v4640
  %v4654 = vmul.f32 %v4588, %v4640
  %v4655 = vmul.f32 %v4589, %v4640
  %v4656 = vmul.f32 %v4590, %v4640
  %v4657 = vmul.f32 %v4591, %v4640
  %v4658 = vmul.f32 %v4592, %v4640
  %v4659 = vmul.f32 %v4593, %v4640
  %v4660 = vmul.f32 %v4594, %v4640
  %v4661 = vmul.f32 %v4595, %v4640
  %v4662 = vmul.f32 %v4596, %v4640
  %v4663 = vmul.f32 %v4597, %v4640
  %v4664 = vmul.f32 %v4598, %v4640
  %v4665 = vmul.f32 %v4599, %v4640
  %v4666 = vmul.f32 %v4600, %v4640
  %v4667 = vmul.f32 %v4601, %v4640
  %v4668 = vmul.f32 %v4602, %v4640
  %v4669 = vmul.f32 %v4603, %v4640
  %v4670 = vmul.f32 %v4604, %v4640
  %v4671 = vmul.f32 %v4605, %v4640
  %v4672 = vmul.f32 %v4606, %v4640
  %v4673 = vmul.f32 %v4607, %v4640
  %v4674 = vmul.f32 %v4608, %v4640
  %v4675 = vmul.f32 %v4609, %v4640
  %v4676 = vmul.f32 %v4610, %v4640
  %v4677 = vmul.f32 %v4611, %v4640
  %v4678 = vmul.f32 %v4612, %v4640
  %v4679 = vmul.f32 %v4613, %v4640
  %v4680 = vmul.f32 %v4614, %v4640
  %v4681 = vmul.f32 %v4615, %v4640
  %v4682 = vmul.f32 %v4616, %v4640
  %v4683 = vmul.f32 %v4617, %v4640
  %v4684 = vmul.f32 %v4618, %v4640
  %v4685 = vmul.f32 %v4619, %v4640
  %v4686 = vmul.f32 %v4620, %v4640
  %v4687 = vmul.f32 %v4621, %v4640
  %v4688 = vmul.f32 %v4622, %v4640
  %v4689 = vmul.f32 %v4623, %v4640
  %v4690 = vmul.f32 %v4624, %v4640
  %v4691 = vmul.f32 %v4625, %v4640
  %v4692 = vmul.f32 %v4626, %v4640
  %v4693 = vmul.f32 %v4627, %v4640
  %v4694 = vmul.f32 %v4628, %v4640
  %v4695 = vmul.f32 %v4629, %v4640
  %v4696 = vmul.f32 %v4630, %v4640
  %v4697 = vmul.f32 %v4631, %v4640
  %v4698 = vmul.f32 %v4632, %v4640
  %v4699 = vmul.f32 %v4633, %v4640
  %v4700 = vmul.f32 %v4634, %v4640
  %v4701 = vmul.f32 %v4635, %v4640
  %v4702 = vmul.f32 %v4636, %v4640
  %v4703 = vmul.f32 %v4637, %v4640
  %v4704 = vmul.f32 %v4638, %v4640
  %v4706 = vlaneseq
  %v4707 = vshrl.u32 %v4706, 7
  %v4708 = vsub.s32 0, %v4707
  %v4709 = vrot.slane %v4366, %v4708
  %v4711 = vmul.f32 %v4641, %v4709
  %v4712 = vmul.f32 %v4642, %v4709
  %v4713 = vmul.f32 %v4643, %v4709
  %v4714 = vmul.f32 %v4644, %v4709
  %v4715 = vmul.f32 %v4645, %v4709
  %v4716 = vmul.f32 %v4646, %v4709
  %v4717 = vmul.f32 %v4647, %v4709
  %v4718 = vmul.f32 %v4648, %v4709
  %v4719 = vmul.f32 %v4649, %v4709
  %v4720 = vmul.f32 %v4650, %v4709
  %v4721 = vmul.f32 %v4651, %v4709
  %v4722 = vmul.f32 %v4652, %v4709
  %v4723 = vmul.f32 %v4653, %v4709
  %v4724 = vmul.f32 %v4654, %v4709
  %v4725 = vmul.f32 %v4655, %v4709
  %v4726 = vmul.f32 %v4656, %v4709
  %v4727 = vmul.f32 %v4657, %v4709
  %v4728 = vmul.f32 %v4658, %v4709
  %v4729 = vmul.f32 %v4659, %v4709
  %v4730 = vmul.f32 %v4660, %v4709
  %v4731 = vmul.f32 %v4661, %v4709
  %v4732 = vmul.f32 %v4662, %v4709
  %v4733 = vmul.f32 %v4663, %v4709
  %v4734 = vmul.f32 %v4664, %v4709
  %v4735 = vmul.f32 %v4665, %v4709
  %v4736 = vmul.f32 %v4666, %v4709
  %v4737 = vmul.f32 %v4667, %v4709
  %v4738 = vmul.f32 %v4668, %v4709
  %v4739 = vmul.f32 %v4669, %v4709
  %v4740 = vmul.f32 %v4670, %v4709
  %v4741 = vmul.f32 %v4671, %v4709
  %v4742 = vmul.f32 %v4672, %v4709
  %v4743 = vmul.f32 %v4673, %v4709
  %v4744 = vmul.f32 %v4674, %v4709
  %v4745 = vmul.f32 %v4675, %v4709
  %v4746 = vmul.f32 %v4676, %v4709
  %v4747 = vmul.f32 %v4677, %v4709
  %v4748 = vmul.f32 %v4678, %v4709
  %v4749 = vmul.f32 %v4679, %v4709
  %v4750 = vmul.f32 %v4680, %v4709
  %v4751 = vmul.f32 %v4681, %v4709
  %v4752 = vmul.f32 %v4682, %v4709
  %v4753 = vmul.f32 %v4683, %v4709
  %v4754 = vmul.f32 %v4684, %v4709
  %v4755 = vmul.f32 %v4685, %v4709
  %v4756 = vmul.f32 %v4686, %v4709
  %v4757 = vmul.f32 %v4687, %v4709
  %v4758 = vmul.f32 %v4688, %v4709
  %v4759 = vmul.f32 %v4689, %v4709
  %v4760 = vmul.f32 %v4690, %v4709
  %v4761 = vmul.f32 %v4691, %v4709
  %v4762 = vmul.f32 %v4692, %v4709
  %v4763 = vmul.f32 %v4693, %v4709
  %v4764 = vmul.f32 %v4694, %v4709
  %v4765 = vmul.f32 %v4695, %v4709
  %v4766 = vmul.f32 %v4696, %v4709
  %v4767 = vmul.f32 %v4697, %v4709
  %v4768 = vmul.f32 %v4698, %v4709
  %v4769 = vmul.f32 %v4699, %v4709
  %v4770 = vmul.f32 %v4700, %v4709
  %v4771 = vmul.f32 %v4701, %v4709
  %v4772 = vmul.f32 %v4702, %v4709
  %v4773 = vmul.f32 %v4703, %v4709
  %v4774 = vmul.f32 %v4704, %v4709
  %v4776 = vlaneseq
  %v4777 = vshrl.u32 %v4776, 7
  %v4778 = vsub.s32 0, %v4777
  %v4779 = vrot.slane %v4368, %v4778
  %v4781 = vadd.f32 %v4711, %v4779
  %v4782 = vadd.f32 %v4712, %v4779
  %v4783 = vadd.f32 %v4713, %v4779
  %v4784 = vadd.f32 %v4714, %v4779
  %v4785 = vadd.f32 %v4715, %v4779
  %v4786 = vadd.f32 %v4716, %v4779
  %v4787 = vadd.f32 %v4717, %v4779
  %v4788 = vadd.f32 %v4718, %v4779
  %v4789 = vadd.f32 %v4719, %v4779
  %v4790 = vadd.f32 %v4720, %v4779
  %v4791 = vadd.f32 %v4721, %v4779
  %v4792 = vadd.f32 %v4722, %v4779
  %v4793 = vadd.f32 %v4723, %v4779
  %v4794 = vadd.f32 %v4724, %v4779
  %v4795 = vadd.f32 %v4725, %v4779
  %v4796 = vadd.f32 %v4726, %v4779
  %v4797 = vadd.f32 %v4727, %v4779
  %v4798 = vadd.f32 %v4728, %v4779
  %v4799 = vadd.f32 %v4729, %v4779
  %v4800 = vadd.f32 %v4730, %v4779
  %v4801 = vadd.f32 %v4731, %v4779
  %v4802 = vadd.f32 %v4732, %v4779
  %v4803 = vadd.f32 %v4733, %v4779
  %v4804 = vadd.f32 %v4734, %v4779
  %v4805 = vadd.f32 %v4735, %v4779
  %v4806 = vadd.f32 %v4736, %v4779
  %v4807 = vadd.f32 %v4737, %v4779
  %v4808 = vadd.f32 %v4738, %v4779
  %v4809 = vadd.f32 %v4739, %v4779
  %v4810 = vadd.f32 %v4740, %v4779
  %v4811 = vadd.f32 %v4741, %v4779
  %v4812 = vadd.f32 %v4742, %v4779
  %v4813 = vadd.f32 %v4743, %v4779
  %v4814 = vadd.f32 %v4744, %v4779
  %v4815 = vadd.f32 %v4745, %v4779
  %v4816 = vadd.f32 %v4746, %v4779
  %v4817 = vadd.f32 %v4747, %v4779
  %v4818 = vadd.f32 %v4748, %v4779
  %v4819 = vadd.f32 %v4749, %v4779
  %v4820 = vadd.f32 %v4750, %v4779
  %v4821 = vadd.f32 %v4751, %v4779
  %v4822 = vadd.f32 %v4752, %v4779
  %v4823 = vadd.f32 %v4753, %v4779
  %v4824 = vadd.f32 %v4754, %v4779
  %v4825 = vadd.f32 %v4755, %v4779
  %v4826 = vadd.f32 %v4756, %v4779
  %v4827 = vadd.f32 %v4757, %v4779
  %v4828 = vadd.f32 %v4758, %v4779
  %v4829 = vadd.f32 %v4759, %v4779
  %v4830 = vadd.f32 %v4760, %v4779
  %v4831 = vadd.f32 %v4761, %v4779
  %v4832 = vadd.f32 %v4762, %v4779
  %v4833 = vadd.f32 %v4763, %v4779
  %v4834 = vadd.f32 %v4764, %v4779
  %v4835 = vadd.f32 %v4765, %v4779
  %v4836 = vadd.f32 %v4766, %v4779
  %v4837 = vadd.f32 %v4767, %v4779
  %v4838 = vadd.f32 %v4768, %v4779
  %v4839 = vadd.f32 %v4769, %v4779
  %v4840 = vadd.f32 %v4770, %v4779
  %v4841 = vadd.f32 %v4771, %v4779
  %v4842 = vadd.f32 %v4772, %v4779
  %v4843 = vadd.f32 %v4773, %v4779
  %v4844 = vadd.f32 %v4774, %v4779
  %v4845 = vmax.f32 %v4781, 0.0
  %v4846 = vmax.f32 %v4782, 0.0
  %v4847 = vmax.f32 %v4783, 0.0
  %v4848 = vmax.f32 %v4784, 0.0
  %v4849 = vmax.f32 %v4785, 0.0
  %v4850 = vmax.f32 %v4786, 0.0
  %v4851 = vmax.f32 %v4787, 0.0
  %v4852 = vmax.f32 %v4788, 0.0
  %v4853 = vmax.f32 %v4789, 0.0
  %v4854 = vmax.f32 %v4790, 0.0
  %v4855 = vmax.f32 %v4791, 0.0
  %v4856 = vmax.f32 %v4792, 0.0
  %v4857 = vmax.f32 %v4793, 0.0
  %v4858 = vmax.f32 %v4794, 0.0
  %v4859 = vmax.f32 %v4795, 0.0
  %v4860 = vmax.f32 %v4796, 0.0
  %v4861 = vmax.f32 %v4797, 0.0
  %v4862 = vmax.f32 %v4798, 0.0
  %v4863 = vmax.f32 %v4799, 0.0
  %v4864 = vmax.f32 %v4800, 0.0
  %v4865 = vmax.f32 %v4801, 0.0
  %v4866 = vmax.f32 %v4802, 0.0
  %v4867 = vmax.f32 %v4803, 0.0
  %v4868 = vmax.f32 %v4804, 0.0
  %v4869 = vmax.f32 %v4805, 0.0
  %v4870 = vmax.f32 %v4806, 0.0
  %v4871 = vmax.f32 %v4807, 0.0
  %v4872 = vmax.f32 %v4808, 0.0
  %v4873 = vmax.f32 %v4809, 0.0
  %v4874 = vmax.f32 %v4810, 0.0
  %v4875 = vmax.f32 %v4811, 0.0
  %v4876 = vmax.f32 %v4812, 0.0
  %v4877 = vmax.f32 %v4813, 0.0
  %v4878 = vmax.f32 %v4814, 0.0
  %v4879 = vmax.f32 %v4815, 0.0
  %v4880 = vmax.f32 %v4816, 0.0
  %v4881 = vmax.f32 %v4817, 0.0
  %v4882 = vmax.f32 %v4818, 0.0
  %v4883 = vmax.f32 %v4819, 0.0
  %v4884 = vmax.f32 %v4820, 0.0
  %v4885 = vmax.f32 %v4821, 0.0
  %v4886 = vmax.f32 %v4822, 0.0
  %v4887 = vmax.f32 %v4823, 0.0
  %v4888 = vmax.f32 %v4824, 0.0
  %v4889 = vmax.f32 %v4825, 0.0
  %v4890 = vmax.f32 %v4826, 0.0
  %v4891 = vmax.f32 %v4827, 0.0
  %v4892 = vmax.f32 %v4828, 0.0
  %v4893 = vmax.f32 %v4829, 0.0
  %v4894 = vmax.f32 %v4830, 0.0
  %v4895 = vmax.f32 %v4831, 0.0
  %v4896 = vmax.f32 %v4832, 0.0
  %v4897 = vmax.f32 %v4833, 0.0
  %v4898 = vmax.f32 %v4834, 0.0
  %v4899 = vmax.f32 %v4835, 0.0
  %v4900 = vmax.f32 %v4836, 0.0
  %v4901 = vmax.f32 %v4837, 0.0
  %v4902 = vmax.f32 %v4838, 0.0
  %v4903 = vmax.f32 %v4839, 0.0
  %v4904 = vmax.f32 %v4840, 0.0
  %v4905 = vmax.f32 %v4841, 0.0
  %v4906 = vmax.f32 %v4842, 0.0
  %v4907 = vmax.f32 %v4843, 0.0
  %v4908 = vmax.f32 %v4844, 0.0
  %v4909 = vpack.c.bf16 %v4846, %v4845
  %v4910 = vpack.c.bf16 %v4848, %v4847
  %v4911 = vpack.c.bf16 %v4850, %v4849
  %v4912 = vpack.c.bf16 %v4852, %v4851
  %v4913 = vpack.c.bf16 %v4854, %v4853
  %v4914 = vpack.c.bf16 %v4856, %v4855
  %v4915 = vpack.c.bf16 %v4858, %v4857
  %v4916 = vpack.c.bf16 %v4860, %v4859
  %v4917 = vpack.c.bf16 %v4862, %v4861
  %v4918 = vpack.c.bf16 %v4864, %v4863
  %v4919 = vpack.c.bf16 %v4866, %v4865
  %v4920 = vpack.c.bf16 %v4868, %v4867
  %v4921 = vpack.c.bf16 %v4870, %v4869
  %v4922 = vpack.c.bf16 %v4872, %v4871
  %v4923 = vpack.c.bf16 %v4874, %v4873
  %v4924 = vpack.c.bf16 %v4876, %v4875
  %v4925 = vpack.c.bf16 %v4878, %v4877
  %v4926 = vpack.c.bf16 %v4880, %v4879
  %v4927 = vpack.c.bf16 %v4882, %v4881
  %v4928 = vpack.c.bf16 %v4884, %v4883
  %v4929 = vpack.c.bf16 %v4886, %v4885
  %v4930 = vpack.c.bf16 %v4888, %v4887
  %v4931 = vpack.c.bf16 %v4890, %v4889
  %v4932 = vpack.c.bf16 %v4892, %v4891
  %v4933 = vpack.c.bf16 %v4894, %v4893
  %v4934 = vpack.c.bf16 %v4896, %v4895
  %v4935 = vpack.c.bf16 %v4898, %v4897
  %v4936 = vpack.c.bf16 %v4900, %v4899
  %v4937 = vpack.c.bf16 %v4902, %v4901
  %v4938 = vpack.c.bf16 %v4904, %v4903
  %v4939 = vpack.c.bf16 %v4906, %v4905
  %v4940 = vpack.c.bf16 %v4908, %v4907
  %s4941 = scalar_lea.vmem %s7, 64
  %v4942 = vld [vmem:[%s4941] sm:$0xf]
  %v4943 = vld [vmem:[%s4941 + $0x4] sm:$0xf]
  %v4944 = vld [vmem:[%s4941 + $0x8] sm:$0xf]
  %v4945 = vld [vmem:[%s4941 + $0xc] sm:$0xf]
  %v4946 = vld [vmem:[%s4941 + $0x10] sm:$0xf]
  %v4947 = vld [vmem:[%s4941 + $0x14] sm:$0xf]
  %v4948 = vld [vmem:[%s4941 + $0x18] sm:$0xf]
  %v4949 = vld [vmem:[%s4941 + $0x1c] sm:$0xf]
  %v4950 = vld [vmem:[%s4941 + $0x20] sm:$0xf]
  %v4951 = vld [vmem:[%s4941 + $0x24] sm:$0xf]
  %v4952 = vld [vmem:[%s4941 + $0x28] sm:$0xf]
  %v4953 = vld [vmem:[%s4941 + $0x2c] sm:$0xf]
  %v4954 = vld [vmem:[%s4941 + $0x30] sm:$0xf]
  %v4955 = vld [vmem:[%s4941 + $0x34] sm:$0xf]
  %v4956 = vld [vmem:[%s4941 + $0x38] sm:$0xf]
  %v4957 = vld [vmem:[%s4941 + $0x3c] sm:$0xf]
  %s4958 = scalar_lea.vmem %s8, 1
  %v4959 = vld [vmem:[%s4958] sm:$0x1]
  %v4961 = vlaneseq
  %v4962 = vshrl.u32 %v4961, 7
  %v4963 = vsub.s32 0, %v4962
  %v4964 = vrot.slane %v4959, %v4963
  %v4982 = vunpack.c.l.b16 %v4942
  %v4983 = vunpack.c.l.b16 %v4943
  %v4984 = vunpack.c.l.b16 %v4944
  %v4985 = vunpack.c.l.b16 %v4945
  %v4986 = vunpack.c.l.b16 %v4946
  %v4987 = vunpack.c.l.b16 %v4947
  %v4988 = vunpack.c.l.b16 %v4948
  %v4989 = vunpack.c.l.b16 %v4949
  %v4990 = vunpack.c.l.b16 %v4950
  %v4991 = vunpack.c.l.b16 %v4951
  %v4992 = vunpack.c.l.b16 %v4952
  %v4993 = vunpack.c.l.b16 %v4953
  %v4994 = vunpack.c.l.b16 %v4954
  %v4995 = vunpack.c.l.b16 %v4955
  %v4996 = vunpack.c.l.b16 %v4956
  %v4997 = vunpack.c.l.b16 %v4957
  %v4998 = vpack.c.b16 %v4983, %v4982
  %v4999 = vpack.c.b16 %v4985, %v4984
  %v5000 = vpack.c.b16 %v4987, %v4986
  %v5001 = vpack.c.b16 %v4989, %v4988
  %v5002 = vpack.c.b16 %v4991, %v4990
  %v5003 = vpack.c.b16 %v4993, %v4992
  %v5004 = vpack.c.b16 %v4995, %v4994
  %v5005 = vpack.c.b16 %v4997, %v4996
  %5014 = vmatprep.subr.bf16.mxu0 0
  %5015 = vmatpush1.bf16.msra.mxu0 %v5005
  %5016 = vmatprep.subr.bf16.mxu0 0
  %5017 = vmatpush1.bf16.msra.mxu0 %v5004
  %5018 = vmatprep.subr.bf16.mxu0 0
  %5019 = vmatpush1.bf16.msra.mxu0 %v5003
  %5020 = vmatprep.subr.bf16.mxu0 0
  %5021 = vmatpush1.bf16.msra.mxu0 %v5002
  %5022 = vmatprep.subr.bf16.mxu0 0
  %5023 = vmatpush1.bf16.msra.mxu0 %v5001
  %5024 = vmatprep.subr.bf16.mxu0 0
  %5025 = vmatpush1.bf16.msra.mxu0 %v5000
  %5026 = vmatprep.subr.bf16.mxu0 0
  %5027 = vmatpush1.bf16.msra.mxu0 %v4999
  %5028 = vmatprep.subr.bf16.mxu0 0
  %5029 = vmatpush1.bf16.msra.mxu0 %v4998
  %5030 = vmatprep.subr.bf16.mxu0 0
  %5031 = vmatpush2.bf16.msra.mxu0 0
  %5032 = vmatprep.subr.bf16.mxu0 0
  %5033 = vmatpush2.bf16.msra.mxu0 0
  %5034 = vmatprep.subr.bf16.mxu0 0
  %5035 = vmatpush2.bf16.msra.mxu0 0
  %5036 = vmatprep.subr.bf16.mxu0 0
  %5037 = vmatpush2.bf16.msra.mxu0 0
  %5038 = vmatprep.subr.bf16.mxu0 0
  %5039 = vmatpush2.bf16.msra.mxu0 0
  %5040 = vmatprep.subr.bf16.mxu0 0
  %5041 = vmatpush2.bf16.msra.mxu0 0
  %5042 = vmatprep.subr.bf16.mxu0 0
  %5043 = vmatpush2.bf16.msra.mxu0 0
  %5044 = vmatprep.subr.bf16.mxu0 0
  %5045 = vmatpush2.bf16.msra.mxu0 0
  %5046 = vmatprep.mubr.bf16.mxu0 0
  %5047 = vmatmul.mubr.bf16.gmra.mxu0 %v4909
  %v5048 = vpop.f32.mrf.mxu0
  %v5049 = vadd.f32 %v4964, %v5048
  %v5050 = vpop.f32.mrf.mxu0
  %v5051 = vpop.f32.mrf.mxu0
  %v5052 = vadd.f32 %v4964, %v5051
  %v5053 = vpop.f32.mrf.mxu0
  %5054 = vmatprep.mubr.bf16.mxu0 0
  %5055 = vmatmul.mubr.bf16.gmra.mxu0 %v4910
  %v5056 = vpop.f32.mrf.mxu0
  %v5057 = vadd.f32 %v4964, %v5056
  %v5058 = vpop.f32.mrf.mxu0
  %v5059 = vpop.f32.mrf.mxu0
  %v5060 = vadd.f32 %v4964, %v5059
  %v5061 = vpop.f32.mrf.mxu0
  %5062 = vmatprep.mubr.bf16.mxu0 0
  %5063 = vmatmul.mubr.bf16.gmra.mxu0 %v4911
  %v5064 = vpop.f32.mrf.mxu0
  %v5065 = vadd.f32 %v4964, %v5064
  %v5066 = vpop.f32.mrf.mxu0
  %v5067 = vpop.f32.mrf.mxu0
  %v5068 = vadd.f32 %v4964, %v5067
  %v5069 = vpop.f32.mrf.mxu0
  %5070 = vmatprep.mubr.bf16.mxu0 0
  %5071 = vmatmul.mubr.bf16.gmra.mxu0 %v4912
  %v5072 = vpop.f32.mrf.mxu0
  %v5073 = vadd.f32 %v4964, %v5072
  %v5074 = vpop.f32.mrf.mxu0
  %v5075 = vpop.f32.mrf.mxu0
  %v5076 = vadd.f32 %v4964, %v5075
  %v5077 = vpop.f32.mrf.mxu0
  %5078 = vmatprep.mubr.bf16.mxu0 0
  %5079 = vmatmul.mubr.bf16.gmra.mxu0 %v4913
  %v5080 = vpop.f32.mrf.mxu0
  %v5081 = vadd.f32 %v4964, %v5080
  %v5082 = vpop.f32.mrf.mxu0
  %v5083 = vpop.f32.mrf.mxu0
  %v5084 = vadd.f32 %v4964, %v5083
  %v5085 = vpop.f32.mrf.mxu0
  %5086 = vmatprep.mubr.bf16.mxu0 0
  %5087 = vmatmul.mubr.bf16.gmra.mxu0 %v4914
  %v5088 = vpop.f32.mrf.mxu0
  %v5089 = vadd.f32 %v4964, %v5088
  %v5090 = vpop.f32.mrf.mxu0
  %v5091 = vpop.f32.mrf.mxu0
  %v5092 = vadd.f32 %v4964, %v5091
  %v5093 = vpop.f32.mrf.mxu0
  %5094 = vmatprep.mubr.bf16.mxu0 0
  %5095 = vmatmul.mubr.bf16.gmra.mxu0 %v4915
  %v5096 = vpop.f32.mrf.mxu0
  %v5097 = vadd.f32 %v4964, %v5096
  %v5098 = vpop.f32.mrf.mxu0
  %v5099 = vpop.f32.mrf.mxu0
  %v5100 = vadd.f32 %v4964, %v5099
  %v5101 = vpop.f32.mrf.mxu0
  %5102 = vmatprep.mubr.bf16.mxu0 0
  %5103 = vmatmul.mubr.bf16.gmra.mxu0 %v4916
  %v5104 = vpop.f32.mrf.mxu0
  %v5105 = vadd.f32 %v4964, %v5104
  %v5106 = vpop.f32.mrf.mxu0
  %v5107 = vpop.f32.mrf.mxu0
  %v5108 = vadd.f32 %v4964, %v5107
  %v5109 = vpop.f32.mrf.mxu0
  %5110 = vmatprep.mubr.bf16.mxu0 0
  %5111 = vmatmul.mubr.bf16.gmra.mxu0 %v4917
  %v5112 = vpop.f32.mrf.mxu0
  %v5113 = vadd.f32 %v4964, %v5112
  %v5114 = vpop.f32.mrf.mxu0
  %v5115 = vpop.f32.mrf.mxu0
  %v5116 = vadd.f32 %v4964, %v5115
  %v5117 = vpop.f32.mrf.mxu0
  %5118 = vmatprep.mubr.bf16.mxu0 0
  %5119 = vmatmul.mubr.bf16.gmra.mxu0 %v4918
  %v5120 = vpop.f32.mrf.mxu0
  %v5121 = vadd.f32 %v4964, %v5120
  %v5122 = vpop.f32.mrf.mxu0
  %v5123 = vpop.f32.mrf.mxu0
  %v5124 = vadd.f32 %v4964, %v5123
  %v5125 = vpop.f32.mrf.mxu0
  %5126 = vmatprep.mubr.bf16.mxu0 0
  %5127 = vmatmul.mubr.bf16.gmra.mxu0 %v4919
  %v5128 = vpop.f32.mrf.mxu0
  %v5129 = vadd.f32 %v4964, %v5128
  %v5130 = vpop.f32.mrf.mxu0
  %v5131 = vpop.f32.mrf.mxu0
  %v5132 = vadd.f32 %v4964, %v5131
  %v5133 = vpop.f32.mrf.mxu0
  %5134 = vmatprep.mubr.bf16.mxu0 0
  %5135 = vmatmul.mubr.bf16.gmra.mxu0 %v4920
  %v5136 = vpop.f32.mrf.mxu0
  %v5137 = vadd.f32 %v4964, %v5136
  %v5138 = vpop.f32.mrf.mxu0
  %v5139 = vpop.f32.mrf.mxu0
  %v5140 = vadd.f32 %v4964, %v5139
  %v5141 = vpop.f32.mrf.mxu0
  %5142 = vmatprep.mubr.bf16.mxu0 0
  %5143 = vmatmul.mubr.bf16.gmra.mxu0 %v4921
  %v5144 = vpop.f32.mrf.mxu0
  %v5145 = vadd.f32 %v4964, %v5144
  %v5146 = vpop.f32.mrf.mxu0
  %v5147 = vpop.f32.mrf.mxu0
  %v5148 = vadd.f32 %v4964, %v5147
  %v5149 = vpop.f32.mrf.mxu0
  %5150 = vmatprep.mubr.bf16.mxu0 0
  %5151 = vmatmul.mubr.bf16.gmra.mxu0 %v4922
  %v5152 = vpop.f32.mrf.mxu0
  %v5153 = vadd.f32 %v4964, %v5152
  %v5154 = vpop.f32.mrf.mxu0
  %v5155 = vpop.f32.mrf.mxu0
  %v5156 = vadd.f32 %v4964, %v5155
  %v5157 = vpop.f32.mrf.mxu0
  %5158 = vmatprep.mubr.bf16.mxu0 0
  %5159 = vmatmul.mubr.bf16.gmra.mxu0 %v4923
  %v5160 = vpop.f32.mrf.mxu0
  %v5161 = vadd.f32 %v4964, %v5160
  %v5162 = vpop.f32.mrf.mxu0
  %v5163 = vpop.f32.mrf.mxu0
  %v5164 = vadd.f32 %v4964, %v5163
  %v5165 = vpop.f32.mrf.mxu0
  %5166 = vmatprep.mubr.bf16.mxu0 0
  %5167 = vmatmul.mubr.bf16.gmra.mxu0 %v4924
  %v5168 = vpop.f32.mrf.mxu0
  %v5169 = vadd.f32 %v4964, %v5168
  %v5170 = vpop.f32.mrf.mxu0
  %v5171 = vpop.f32.mrf.mxu0
  %v5172 = vadd.f32 %v4964, %v5171
  %v5173 = vpop.f32.mrf.mxu0
  %5174 = vmatprep.mubr.bf16.mxu0 0
  %5175 = vmatmul.mubr.bf16.gmra.mxu0 %v4925
  %v5176 = vpop.f32.mrf.mxu0
  %v5177 = vadd.f32 %v4964, %v5176
  %v5178 = vpop.f32.mrf.mxu0
  %v5179 = vpop.f32.mrf.mxu0
  %v5180 = vadd.f32 %v4964, %v5179
  %v5181 = vpop.f32.mrf.mxu0
  %5182 = vmatprep.mubr.bf16.mxu0 0
  %5183 = vmatmul.mubr.bf16.gmra.mxu0 %v4926
  %v5184 = vpop.f32.mrf.mxu0
  %v5185 = vadd.f32 %v4964, %v5184
  %v5186 = vpop.f32.mrf.mxu0
  %v5187 = vpop.f32.mrf.mxu0
  %v5188 = vadd.f32 %v4964, %v5187
  %v5189 = vpop.f32.mrf.mxu0
  %5190 = vmatprep.mubr.bf16.mxu0 0
  %5191 = vmatmul.mubr.bf16.gmra.mxu0 %v4927
  %v5192 = vpop.f32.mrf.mxu0
  %v5193 = vadd.f32 %v4964, %v5192
  %v5194 = vpop.f32.mrf.mxu0
  %v5195 = vpop.f32.mrf.mxu0
  %v5196 = vadd.f32 %v4964, %v5195
  %v5197 = vpop.f32.mrf.mxu0
  %5198 = vmatprep.mubr.bf16.mxu0 0
  %5199 = vmatmul.mubr.bf16.gmra.mxu0 %v4928
  %v5200 = vpop.f32.mrf.mxu0
  %v5201 = vadd.f32 %v4964, %v5200
  %v5202 = vpop.f32.mrf.mxu0
  %v5203 = vpop.f32.mrf.mxu0
  %v5204 = vadd.f32 %v4964, %v5203
  %v5205 = vpop.f32.mrf.mxu0
  %5206 = vmatprep.mubr.bf16.mxu0 0
  %5207 = vmatmul.mubr.bf16.gmra.mxu0 %v4929
  %v5208 = vpop.f32.mrf.mxu0
  %v5209 = vadd.f32 %v4964, %v5208
  %v5210 = vpop.f32.mrf.mxu0
  %v5211 = vpop.f32.mrf.mxu0
  %v5212 = vadd.f32 %v4964, %v5211
  %v5213 = vpop.f32.mrf.mxu0
  %5214 = vmatprep.mubr.bf16.mxu0 0
  %5215 = vmatmul.mubr.bf16.gmra.mxu0 %v4930
  %v5216 = vpop.f32.mrf.mxu0
  %v5217 = vadd.f32 %v4964, %v5216
  %v5218 = vpop.f32.mrf.mxu0
  %v5219 = vpop.f32.mrf.mxu0
  %v5220 = vadd.f32 %v4964, %v5219
  %v5221 = vpop.f32.mrf.mxu0
  %5222 = vmatprep.mubr.bf16.mxu0 0
  %5223 = vmatmul.mubr.bf16.gmra.mxu0 %v4931
  %v5224 = vpop.f32.mrf.mxu0
  %v5225 = vadd.f32 %v4964, %v5224
  %v5226 = vpop.f32.mrf.mxu0
  %v5227 = vpop.f32.mrf.mxu0
  %v5228 = vadd.f32 %v4964, %v5227
  %v5229 = vpop.f32.mrf.mxu0
  %5230 = vmatprep.mubr.bf16.mxu0 0
  %5231 = vmatmul.mubr.bf16.gmra.mxu0 %v4932
  %v5232 = vpop.f32.mrf.mxu0
  %v5233 = vadd.f32 %v4964, %v5232
  %v5234 = vpop.f32.mrf.mxu0
  %v5235 = vpop.f32.mrf.mxu0
  %v5236 = vadd.f32 %v4964, %v5235
  %v5237 = vpop.f32.mrf.mxu0
  %5238 = vmatprep.mubr.bf16.mxu0 0
  %5239 = vmatmul.mubr.bf16.gmra.mxu0 %v4933
  %v5240 = vpop.f32.mrf.mxu0
  %v5241 = vadd.f32 %v4964, %v5240
  %v5242 = vpop.f32.mrf.mxu0
  %v5243 = vpop.f32.mrf.mxu0
  %v5244 = vadd.f32 %v4964, %v5243
  %v5245 = vpop.f32.mrf.mxu0
  %5246 = vmatprep.mubr.bf16.mxu0 0
  %5247 = vmatmul.mubr.bf16.gmra.mxu0 %v4934
  %v5248 = vpop.f32.mrf.mxu0
  %v5249 = vadd.f32 %v4964, %v5248
  %v5250 = vpop.f32.mrf.mxu0
  %v5251 = vpop.f32.mrf.mxu0
  %v5252 = vadd.f32 %v4964, %v5251
  %v5253 = vpop.f32.mrf.mxu0
  %5254 = vmatprep.mubr.bf16.mxu0 0
  %5255 = vmatmul.mubr.bf16.gmra.mxu0 %v4935
  %v5256 = vpop.f32.mrf.mxu0
  %v5257 = vadd.f32 %v4964, %v5256
  %v5258 = vpop.f32.mrf.mxu0
  %v5259 = vpop.f32.mrf.mxu0
  %v5260 = vadd.f32 %v4964, %v5259
  %v5261 = vpop.f32.mrf.mxu0
  %5262 = vmatprep.mubr.bf16.mxu0 0
  %5263 = vmatmul.mubr.bf16.gmra.mxu0 %v4936
  %v5264 = vpop.f32.mrf.mxu0
  %v5265 = vadd.f32 %v4964, %v5264
  %v5266 = vpop.f32.mrf.mxu0
  %v5267 = vpop.f32.mrf.mxu0
  %v5268 = vadd.f32 %v4964, %v5267
  %v5269 = vpop.f32.mrf.mxu0
  %5270 = vmatprep.mubr.bf16.mxu0 0
  %5271 = vmatmul.mubr.bf16.gmra.mxu0 %v4937
  %v5272 = vpop.f32.mrf.mxu0
  %v5273 = vadd.f32 %v4964, %v5272
  %v5274 = vpop.f32.mrf.mxu0
  %v5275 = vpop.f32.mrf.mxu0
  %v5276 = vadd.f32 %v4964, %v5275
  %v5277 = vpop.f32.mrf.mxu0
  %5278 = vmatprep.mubr.bf16.mxu0 0
  %5279 = vmatmul.mubr.bf16.gmra.mxu0 %v4938
  %v5280 = vpop.f32.mrf.mxu0
  %v5281 = vadd.f32 %v4964, %v5280
  %v5282 = vpop.f32.mrf.mxu0
  %v5283 = vpop.f32.mrf.mxu0
  %v5284 = vadd.f32 %v4964, %v5283
  %v5285 = vpop.f32.mrf.mxu0
  %5286 = vmatprep.mubr.bf16.mxu0 0
  %5287 = vmatmul.mubr.bf16.gmra.mxu0 %v4939
  %v5288 = vpop.f32.mrf.mxu0
  %v5289 = vadd.f32 %v4964, %v5288
  %v5290 = vpop.f32.mrf.mxu0
  %v5291 = vpop.f32.mrf.mxu0
  %v5292 = vadd.f32 %v4964, %v5291
  %v5293 = vpop.f32.mrf.mxu0
  %5294 = vmatprep.mubr.bf16.mxu0 0
  %5295 = vmatmul.mubr.bf16.gmra.mxu0 %v4940
  %v5296 = vpop.f32.mrf.mxu0
  %v5297 = vadd.f32 %v4964, %v5296
  %v5298 = vpop.f32.mrf.mxu0
  %v5299 = vpop.f32.mrf.mxu0
  %v5300 = vadd.f32 %v4964, %v5299
  %v5301 = vpop.f32.mrf.mxu0
  %5302 = vdwg.mxu0
  %s5303 = scalar_lea.vmem %s9, 1
  %v5304 = vld [vmem:[%s5303] sm:$0x1]
  %s5305 = scalar_lea.vmem %s10, 1
  %v5306 = vld [vmem:[%s5305] sm:$0x1]
  %v5307 = vadd.f32 %v5049, %v5052
  %v5308 = vadd.f32 %v5307, %v5057
  %v5309 = vadd.f32 %v5308, %v5060
  %v5310 = vadd.f32 %v5309, %v5065
  %v5311 = vadd.f32 %v5310, %v5068
  %v5312 = vadd.f32 %v5311, %v5073
  %v5313 = vadd.f32 %v5312, %v5076
  %v5314 = vadd.f32 %v5313, %v5081
  %v5315 = vadd.f32 %v5314, %v5084
  %v5316 = vadd.f32 %v5315, %v5089
  %v5317 = vadd.f32 %v5316, %v5092
  %v5318 = vadd.f32 %v5317, %v5097
  %v5319 = vadd.f32 %v5318, %v5100
  %v5320 = vadd.f32 %v5319, %v5105
  %v5321 = vadd.f32 %v5320, %v5108
  %v5322 = vadd.f32 %v5321, %v5113
  %v5323 = vadd.f32 %v5322, %v5116
  %v5324 = vadd.f32 %v5323, %v5121
  %v5325 = vadd.f32 %v5324, %v5124
  %v5326 = vadd.f32 %v5325, %v5129
  %v5327 = vadd.f32 %v5326, %v5132
  %v5328 = vadd.f32 %v5327, %v5137
  %v5329 = vadd.f32 %v5328, %v5140
  %v5330 = vadd.f32 %v5329, %v5145
  %v5331 = vadd.f32 %v5330, %v5148
  %v5332 = vadd.f32 %v5331, %v5153
  %v5333 = vadd.f32 %v5332, %v5156
  %v5334 = vadd.f32 %v5333, %v5161
  %v5335 = vadd.f32 %v5334, %v5164
  %v5336 = vadd.f32 %v5335, %v5169
  %v5337 = vadd.f32 %v5336, %v5172
  %v5338 = vadd.f32 %v5337, %v5177
  %v5339 = vadd.f32 %v5338, %v5180
  %v5340 = vadd.f32 %v5339, %v5185
  %v5341 = vadd.f32 %v5340, %v5188
  %v5342 = vadd.f32 %v5341, %v5193
  %v5343 = vadd.f32 %v5342, %v5196
  %v5344 = vadd.f32 %v5343, %v5201
  %v5345 = vadd.f32 %v5344, %v5204
  %v5346 = vadd.f32 %v5345, %v5209
  %v5347 = vadd.f32 %v5346, %v5212
  %v5348 = vadd.f32 %v5347, %v5217
  %v5349 = vadd.f32 %v5348, %v5220
  %v5350 = vadd.f32 %v5349, %v5225
  %v5351 = vadd.f32 %v5350, %v5228
  %v5352 = vadd.f32 %v5351, %v5233
  %v5353 = vadd.f32 %v5352, %v5236
  %v5354 = vadd.f32 %v5353, %v5241
  %v5355 = vadd.f32 %v5354, %v5244
  %v5356 = vadd.f32 %v5355, %v5249
  %v5357 = vadd.f32 %v5356, %v5252
  %v5358 = vadd.f32 %v5357, %v5257
  %v5359 = vadd.f32 %v5358, %v5260
  %v5360 = vadd.f32 %v5359, %v5265
  %v5361 = vadd.f32 %v5360, %v5268
  %v5362 = vadd.f32 %v5361, %v5273
  %v5363 = vadd.f32 %v5362, %v5276
  %v5364 = vadd.f32 %v5363, %v5281
  %v5365 = vadd.f32 %v5364, %v5284
  %v5366 = vadd.f32 %v5365, %v5289
  %v5367 = vadd.f32 %v5366, %v5292
  %v5368 = vadd.f32 %v5367, %v5297
  %v5369 = vadd.f32 %v5368, %v5300
  %v5370 = vrot.slane %v5369, 4
  %v5371 = vadd.f32 %v5369, %v5370
  %v5372 = vrot.slane %v5371, 2
  %v5373 = vadd.f32 %v5371, %v5372
  %v5374 = vrot.slane %v5373, 1
  %v5375 = vadd.f32 %v5373, %v5374
  %v5376 = vmul.f32 %v5049, %v5049
  %v5377 = vmul.f32 %v5052, %v5052
  %v5378 = vmul.f32 %v5057, %v5057
  %v5379 = vmul.f32 %v5060, %v5060
  %v5380 = vmul.f32 %v5065, %v5065
  %v5381 = vmul.f32 %v5068, %v5068
  %v5382 = vmul.f32 %v5073, %v5073
  %v5383 = vmul.f32 %v5076, %v5076
  %v5384 = vmul.f32 %v5081, %v5081
  %v5385 = vmul.f32 %v5084, %v5084
  %v5386 = vmul.f32 %v5089, %v5089
  %v5387 = vmul.f32 %v5092, %v5092
  %v5388 = vmul.f32 %v5097, %v5097
  %v5389 = vmul.f32 %v5100, %v5100
  %v5390 = vmul.f32 %v5105, %v5105
  %v5391 = vmul.f32 %v5108, %v5108
  %v5392 = vmul.f32 %v5113, %v5113
  %v5393 = vmul.f32 %v5116, %v5116
  %v5394 = vmul.f32 %v5121, %v5121
  %v5395 = vmul.f32 %v5124, %v5124
  %v5396 = vmul.f32 %v5129, %v5129
  %v5397 = vmul.f32 %v5132, %v5132
  %v5398 = vmul.f32 %v5137, %v5137
  %v5399 = vmul.f32 %v5140, %v5140
  %v5400 = vmul.f32 %v5145, %v5145
  %v5401 = vmul.f32 %v5148, %v5148
  %v5402 = vmul.f32 %v5153, %v5153
  %v5403 = vmul.f32 %v5156, %v5156
  %v5404 = vmul.f32 %v5161, %v5161
  %v5405 = vmul.f32 %v5164, %v5164
  %v5406 = vmul.f32 %v5169, %v5169
  %v5407 = vmul.f32 %v5172, %v5172
  %v5408 = vmul.f32 %v5177, %v5177
  %v5409 = vmul.f32 %v5180, %v5180
  %v5410 = vmul.f32 %v5185, %v5185
  %v5411 = vmul.f32 %v5188, %v5188
  %v5412 = vmul.f32 %v5193, %v5193
  %v5413 = vmul.f32 %v5196, %v5196
  %v5414 = vmul.f32 %v5201, %v5201
  %v5415 = vmul.f32 %v5204, %v5204
  %v5416 = vmul.f32 %v5209, %v5209
  %v5417 = vmul.f32 %v5212, %v5212
  %v5418 = vmul.f32 %v5217, %v5217
  %v5419 = vmul.f32 %v5220, %v5220
  %v5420 = vmul.f32 %v5225, %v5225
  %v5421 = vmul.f32 %v5228, %v5228
  %v5422 = vmul.f32 %v5233, %v5233
  %v5423 = vmul.f32 %v5236, %v5236
  %v5424 = vmul.f32 %v5241, %v5241
  %v5425 = vmul.f32 %v5244, %v5244
  %v5426 = vmul.f32 %v5249, %v5249
  %v5427 = vmul.f32 %v5252, %v5252
  %v5428 = vmul.f32 %v5257, %v5257
  %v5429 = vmul.f32 %v5260, %v5260
  %v5430 = vmul.f32 %v5265, %v5265
  %v5431 = vmul.f32 %v5268, %v5268
  %v5432 = vmul.f32 %v5273, %v5273
  %v5433 = vmul.f32 %v5276, %v5276
  %v5434 = vmul.f32 %v5281, %v5281
  %v5435 = vmul.f32 %v5284, %v5284
  %v5436 = vmul.f32 %v5289, %v5289
  %v5437 = vmul.f32 %v5292, %v5292
  %v5438 = vmul.f32 %v5297, %v5297
  %v5439 = vmul.f32 %v5300, %v5300
  %v5440 = vadd.f32 %v5376, %v5377
  %v5441 = vadd.f32 %v5440, %v5378
  %v5442 = vadd.f32 %v5441, %v5379
  %v5443 = vadd.f32 %v5442, %v5380
  %v5444 = vadd.f32 %v5443, %v5381
  %v5445 = vadd.f32 %v5444, %v5382
  %v5446 = vadd.f32 %v5445, %v5383
  %v5447 = vadd.f32 %v5446, %v5384
  %v5448 = vadd.f32 %v5447, %v5385
  %v5449 = vadd.f32 %v5448, %v5386
  %v5450 = vadd.f32 %v5449, %v5387
  %v5451 = vadd.f32 %v5450, %v5388
  %v5452 = vadd.f32 %v5451, %v5389
  %v5453 = vadd.f32 %v5452, %v5390
  %v5454 = vadd.f32 %v5453, %v5391
  %v5455 = vadd.f32 %v5454, %v5392
  %v5456 = vadd.f32 %v5455, %v5393
  %v5457 = vadd.f32 %v5456, %v5394
  %v5458 = vadd.f32 %v5457, %v5395
  %v5459 = vadd.f32 %v5458, %v5396
  %v5460 = vadd.f32 %v5459, %v5397
  %v5461 = vadd.f32 %v5460, %v5398
  %v5462 = vadd.f32 %v5461, %v5399
  %v5463 = vadd.f32 %v5462, %v5400
  %v5464 = vadd.f32 %v5463, %v5401
  %v5465 = vadd.f32 %v5464, %v5402
  %v5466 = vadd.f32 %v5465, %v5403
  %v5467 = vadd.f32 %v5466, %v5404
  %v5468 = vadd.f32 %v5467, %v5405
  %v5469 = vadd.f32 %v5468, %v5406
  %v5470 = vadd.f32 %v5469, %v5407
  %v5471 = vadd.f32 %v5470, %v5408
  %v5472 = vadd.f32 %v5471, %v5409
  %v5473 = vadd.f32 %v5472, %v5410
  %v5474 = vadd.f32 %v5473, %v5411
  %v5475 = vadd.f32 %v5474, %v5412
  %v5476 = vadd.f32 %v5475, %v5413
  %v5477 = vadd.f32 %v5476, %v5414
  %v5478 = vadd.f32 %v5477, %v5415
  %v5479 = vadd.f32 %v5478, %v5416
  %v5480 = vadd.f32 %v5479, %v5417
  %v5481 = vadd.f32 %v5480, %v5418
  %v5482 = vadd.f32 %v5481, %v5419
  %v5483 = vadd.f32 %v5482, %v5420
  %v5484 = vadd.f32 %v5483, %v5421
  %v5485 = vadd.f32 %v5484, %v5422
  %v5486 = vadd.f32 %v5485, %v5423
  %v5487 = vadd.f32 %v5486, %v5424
  %v5488 = vadd.f32 %v5487, %v5425
  %v5489 = vadd.f32 %v5488, %v5426
  %v5490 = vadd.f32 %v5489, %v5427
  %v5491 = vadd.f32 %v5490, %v5428
  %v5492 = vadd.f32 %v5491, %v5429
  %v5493 = vadd.f32 %v5492, %v5430
  %v5494 = vadd.f32 %v5493, %v5431
  %v5495 = vadd.f32 %v5494, %v5432
  %v5496 = vadd.f32 %v5495, %v5433
  %v5497 = vadd.f32 %v5496, %v5434
  %v5498 = vadd.f32 %v5497, %v5435
  %v5499 = vadd.f32 %v5498, %v5436
  %v5500 = vadd.f32 %v5499, %v5437
  %v5501 = vadd.f32 %v5500, %v5438
  %v5502 = vadd.f32 %v5501, %v5439
  %v5503 = vrot.slane %v5502, 4
  %v5504 = vadd.f32 %v5502, %v5503
  %v5505 = vrot.slane %v5504, 2
  %v5506 = vadd.f32 %v5504, %v5505
  %v5507 = vrot.slane %v5506, 1
  %v5508 = vadd.f32 %v5506, %v5507
  %v5509 = vmul.f32 %v5375, 0.001953125
  %v5510 = vmul.f32 %v5508, 0.001953125
  %v5511 = vmul.f32 %v5509, %v5509
  %v5512 = vsub.f32 %v5510, %v5511
  %v5513 = vsub.f32 %v5049, %v5509
  %v5514 = vsub.f32 %v5052, %v5509
  %v5515 = vsub.f32 %v5057, %v5509
  %v5516 = vsub.f32 %v5060, %v5509
  %v5517 = vsub.f32 %v5065, %v5509
  %v5518 = vsub.f32 %v5068, %v5509
  %v5519 = vsub.f32 %v5073, %v5509
  %v5520 = vsub.f32 %v5076, %v5509
  %v5521 = vsub.f32 %v5081, %v5509
  %v5522 = vsub.f32 %v5084, %v5509
  %v5523 = vsub.f32 %v5089, %v5509
  %v5524 = vsub.f32 %v5092, %v5509
  %v5525 = vsub.f32 %v5097, %v5509
  %v5526 = vsub.f32 %v5100, %v5509
  %v5527 = vsub.f32 %v5105, %v5509
  %v5528 = vsub.f32 %v5108, %v5509
  %v5529 = vsub.f32 %v5113, %v5509
  %v5530 = vsub.f32 %v5116, %v5509
  %v5531 = vsub.f32 %v5121, %v5509
  %v5532 = vsub.f32 %v5124, %v5509
  %v5533 = vsub.f32 %v5129, %v5509
  %v5534 = vsub.f32 %v5132, %v5509
  %v5535 = vsub.f32 %v5137, %v5509
  %v5536 = vsub.f32 %v5140, %v5509
  %v5537 = vsub.f32 %v5145, %v5509
  %v5538 = vsub.f32 %v5148, %v5509
  %v5539 = vsub.f32 %v5153, %v5509
  %v5540 = vsub.f32 %v5156, %v5509
  %v5541 = vsub.f32 %v5161, %v5509
  %v5542 = vsub.f32 %v5164, %v5509
  %v5543 = vsub.f32 %v5169, %v5509
  %v5544 = vsub.f32 %v5172, %v5509
  %v5545 = vsub.f32 %v5177, %v5509
  %v5546 = vsub.f32 %v5180, %v5509
  %v5547 = vsub.f32 %v5185, %v5509
  %v5548 = vsub.f32 %v5188, %v5509
  %v5549 = vsub.f32 %v5193, %v5509
  %v5550 = vsub.f32 %v5196, %v5509
  %v5551 = vsub.f32 %v5201, %v5509
  %v5552 = vsub.f32 %v5204, %v5509
  %v5553 = vsub.f32 %v5209, %v5509
  %v5554 = vsub.f32 %v5212, %v5509
  %v5555 = vsub.f32 %v5217, %v5509
  %v5556 = vsub.f32 %v5220, %v5509
  %v5557 = vsub.f32 %v5225, %v5509
  %v5558 = vsub.f32 %v5228, %v5509
  %v5559 = vsub.f32 %v5233, %v5509
  %v5560 = vsub.f32 %v5236, %v5509
  %v5561 = vsub.f32 %v5241, %v5509
  %v5562 = vsub.f32 %v5244, %v5509
  %v5563 = vsub.f32 %v5249, %v5509
  %v5564 = vsub.f32 %v5252, %v5509
  %v5565 = vsub.f32 %v5257, %v5509
  %v5566 = vsub.f32 %v5260, %v5509
  %v5567 = vsub.f32 %v5265, %v5509
  %v5568 = vsub.f32 %v5268, %v5509
  %v5569 = vsub.f32 %v5273, %v5509
  %v5570 = vsub.f32 %v5276, %v5509
  %v5571 = vsub.f32 %v5281, %v5509
  %v5572 = vsub.f32 %v5284, %v5509
  %v5573 = vsub.f32 %v5289, %v5509
  %v5574 = vsub.f32 %v5292, %v5509
  %v5575 = vsub.f32 %v5297, %v5509
  %v5576 = vsub.f32 %v5300, %v5509
  %v5577 = vadd.f32 %v5512, 1e-05
  %v5578 = vrsqrt.pop %v5577
  %v5579 = vmul.f32 %v5513, %v5578
  %v5580 = vmul.f32 %v5514, %v5578
  %v5581 = vmul.f32 %v5515, %v5578
  %v5582 = vmul.f32 %v5516, %v5578
  %v5583 = vmul.f32 %v5517, %v5578
  %v5584 = vmul.f32 %v5518, %v5578
  %v5585 = vmul.f32 %v5519, %v5578
  %v5586 = vmul.f32 %v5520, %v5578
  %v5587 = vmul.f32 %v5521, %v5578
  %v5588 = vmul.f32 %v5522, %v5578
  %v5589 = vmul.f32 %v5523, %v5578
  %v5590 = vmul.f32 %v5524, %v5578
  %v5591 = vmul.f32 %v5525, %v5578
  %v5592 = vmul.f32 %v5526, %v5578
  %v5593 = vmul.f32 %v5527, %v5578
  %v5594 = vmul.f32 %v5528, %v5578
  %v5595 = vmul.f32 %v5529, %v5578
  %v5596 = vmul.f32 %v5530, %v5578
  %v5597 = vmul.f32 %v5531, %v5578
  %v5598 = vmul.f32 %v5532, %v5578
  %v5599 = vmul.f32 %v5533, %v5578
  %v5600 = vmul.f32 %v5534, %v5578
  %v5601 = vmul.f32 %v5535, %v5578
  %v5602 = vmul.f32 %v5536, %v5578
  %v5603 = vmul.f32 %v5537, %v5578
  %v5604 = vmul.f32 %v5538, %v5578
  %v5605 = vmul.f32 %v5539, %v5578
  %v5606 = vmul.f32 %v5540, %v5578
  %v5607 = vmul.f32 %v5541, %v5578
  %v5608 = vmul.f32 %v5542, %v5578
  %v5609 = vmul.f32 %v5543, %v5578
  %v5610 = vmul.f32 %v5544, %v5578
  %v5611 = vmul.f32 %v5545, %v5578
  %v5612 = vmul.f32 %v5546, %v5578
  %v5613 = vmul.f32 %v5547, %v5578
  %v5614 = vmul.f32 %v5548, %v5578
  %v5615 = vmul.f32 %v5549, %v5578
  %v5616 = vmul.f32 %v5550, %v5578
  %v5617 = vmul.f32 %v5551, %v5578
  %v5618 = vmul.f32 %v5552, %v5578
  %v5619 = vmul.f32 %v5553, %v5578
  %v5620 = vmul.f32 %v5554, %v5578
  %v5621 = vmul.f32 %v5555, %v5578
  %v5622 = vmul.f32 %v5556, %v5578
  %v5623 = vmul.f32 %v5557, %v5578
  %v5624 = vmul.f32 %v5558, %v5578
  %v5625 = vmul.f32 %v5559, %v5578
  %v5626 = vmul.f32 %v5560, %v5578
  %v5627 = vmul.f32 %v5561, %v5578
  %v5628 = vmul.f32 %v5562, %v5578
  %v5629 = vmul.f32 %v5563, %v5578
  %v5630 = vmul.f32 %v5564, %v5578
  %v5631 = vmul.f32 %v5565, %v5578
  %v5632 = vmul.f32 %v5566, %v5578
  %v5633 = vmul.f32 %v5567, %v5578
  %v5634 = vmul.f32 %v5568, %v5578
  %v5635 = vmul.f32 %v5569, %v5578
  %v5636 = vmul.f32 %v5570, %v5578
  %v5637 = vmul.f32 %v5571, %v5578
  %v5638 = vmul.f32 %v5572, %v5578
  %v5639 = vmul.f32 %v5573, %v5578
  %v5640 = vmul.f32 %v5574, %v5578
  %v5641 = vmul.f32 %v5575, %v5578
  %v5642 = vmul.f32 %v5576, %v5578
  %v5644 = vlaneseq
  %v5645 = vshrl.u32 %v5644, 7
  %v5646 = vsub.s32 0, %v5645
  %v5647 = vrot.slane %v5304, %v5646
  %v5649 = vmul.f32 %v5579, %v5647
  %v5650 = vmul.f32 %v5580, %v5647
  %v5651 = vmul.f32 %v5581, %v5647
  %v5652 = vmul.f32 %v5582, %v5647
  %v5653 = vmul.f32 %v5583, %v5647
  %v5654 = vmul.f32 %v5584, %v5647
  %v5655 = vmul.f32 %v5585, %v5647
  %v5656 = vmul.f32 %v5586, %v5647
  %v5657 = vmul.f32 %v5587, %v5647
  %v5658 = vmul.f32 %v5588, %v5647
  %v5659 = vmul.f32 %v5589, %v5647
  %v5660 = vmul.f32 %v5590, %v5647
  %v5661 = vmul.f32 %v5591, %v5647
  %v5662 = vmul.f32 %v5592, %v5647
  %v5663 = vmul.f32 %v5593, %v5647
  %v5664 = vmul.f32 %v5594, %v5647
  %v5665 = vmul.f32 %v5595, %v5647
  %v5666 = vmul.f32 %v5596, %v5647
  %v5667 = vmul.f32 %v5597, %v5647
  %v5668 = vmul.f32 %v5598, %v5647
  %v5669 = vmul.f32 %v5599, %v5647
  %v5670 = vmul.f32 %v5600, %v5647
  %v5671 = vmul.f32 %v5601, %v5647
  %v5672 = vmul.f32 %v5602, %v5647
  %v5673 = vmul.f32 %v5603, %v5647
  %v5674 = vmul.f32 %v5604, %v5647
  %v5675 = vmul.f32 %v5605, %v5647
  %v5676 = vmul.f32 %v5606, %v5647
  %v5677 = vmul.f32 %v5607, %v5647
  %v5678 = vmul.f32 %v5608, %v5647
  %v5679 = vmul.f32 %v5609, %v5647
  %v5680 = vmul.f32 %v5610, %v5647
  %v5681 = vmul.f32 %v5611, %v5647
  %v5682 = vmul.f32 %v5612, %v5647
  %v5683 = vmul.f32 %v5613, %v5647
  %v5684 = vmul.f32 %v5614, %v5647
  %v5685 = vmul.f32 %v5615, %v5647
  %v5686 = vmul.f32 %v5616, %v5647
  %v5687 = vmul.f32 %v5617, %v5647
  %v5688 = vmul.f32 %v5618, %v5647
  %v5689 = vmul.f32 %v5619, %v5647
  %v5690 = vmul.f32 %v5620, %v5647
  %v5691 = vmul.f32 %v5621, %v5647
  %v5692 = vmul.f32 %v5622, %v5647
  %v5693 = vmul.f32 %v5623, %v5647
  %v5694 = vmul.f32 %v5624, %v5647
  %v5695 = vmul.f32 %v5625, %v5647
  %v5696 = vmul.f32 %v5626, %v5647
  %v5697 = vmul.f32 %v5627, %v5647
  %v5698 = vmul.f32 %v5628, %v5647
  %v5699 = vmul.f32 %v5629, %v5647
  %v5700 = vmul.f32 %v5630, %v5647
  %v5701 = vmul.f32 %v5631, %v5647
  %v5702 = vmul.f32 %v5632, %v5647
  %v5703 = vmul.f32 %v5633, %v5647
  %v5704 = vmul.f32 %v5634, %v5647
  %v5705 = vmul.f32 %v5635, %v5647
  %v5706 = vmul.f32 %v5636, %v5647
  %v5707 = vmul.f32 %v5637, %v5647
  %v5708 = vmul.f32 %v5638, %v5647
  %v5709 = vmul.f32 %v5639, %v5647
  %v5710 = vmul.f32 %v5640, %v5647
  %v5711 = vmul.f32 %v5641, %v5647
  %v5712 = vmul.f32 %v5642, %v5647
  %v5714 = vlaneseq
  %v5715 = vshrl.u32 %v5714, 7
  %v5716 = vsub.s32 0, %v5715
  %v5717 = vrot.slane %v5306, %v5716
  %v5719 = vadd.f32 %v5649, %v5717
  %v5720 = vadd.f32 %v5650, %v5717
  %v5721 = vadd.f32 %v5651, %v5717
  %v5722 = vadd.f32 %v5652, %v5717
  %v5723 = vadd.f32 %v5653, %v5717
  %v5724 = vadd.f32 %v5654, %v5717
  %v5725 = vadd.f32 %v5655, %v5717
  %v5726 = vadd.f32 %v5656, %v5717
  %v5727 = vadd.f32 %v5657, %v5717
  %v5728 = vadd.f32 %v5658, %v5717
  %v5729 = vadd.f32 %v5659, %v5717
  %v5730 = vadd.f32 %v5660, %v5717
  %v5731 = vadd.f32 %v5661, %v5717
  %v5732 = vadd.f32 %v5662, %v5717
  %v5733 = vadd.f32 %v5663, %v5717
  %v5734 = vadd.f32 %v5664, %v5717
  %v5735 = vadd.f32 %v5665, %v5717
  %v5736 = vadd.f32 %v5666, %v5717
  %v5737 = vadd.f32 %v5667, %v5717
  %v5738 = vadd.f32 %v5668, %v5717
  %v5739 = vadd.f32 %v5669, %v5717
  %v5740 = vadd.f32 %v5670, %v5717
  %v5741 = vadd.f32 %v5671, %v5717
  %v5742 = vadd.f32 %v5672, %v5717
  %v5743 = vadd.f32 %v5673, %v5717
  %v5744 = vadd.f32 %v5674, %v5717
  %v5745 = vadd.f32 %v5675, %v5717
  %v5746 = vadd.f32 %v5676, %v5717
  %v5747 = vadd.f32 %v5677, %v5717
  %v5748 = vadd.f32 %v5678, %v5717
  %v5749 = vadd.f32 %v5679, %v5717
  %v5750 = vadd.f32 %v5680, %v5717
  %v5751 = vadd.f32 %v5681, %v5717
  %v5752 = vadd.f32 %v5682, %v5717
  %v5753 = vadd.f32 %v5683, %v5717
  %v5754 = vadd.f32 %v5684, %v5717
  %v5755 = vadd.f32 %v5685, %v5717
  %v5756 = vadd.f32 %v5686, %v5717
  %v5757 = vadd.f32 %v5687, %v5717
  %v5758 = vadd.f32 %v5688, %v5717
  %v5759 = vadd.f32 %v5689, %v5717
  %v5760 = vadd.f32 %v5690, %v5717
  %v5761 = vadd.f32 %v5691, %v5717
  %v5762 = vadd.f32 %v5692, %v5717
  %v5763 = vadd.f32 %v5693, %v5717
  %v5764 = vadd.f32 %v5694, %v5717
  %v5765 = vadd.f32 %v5695, %v5717
  %v5766 = vadd.f32 %v5696, %v5717
  %v5767 = vadd.f32 %v5697, %v5717
  %v5768 = vadd.f32 %v5698, %v5717
  %v5769 = vadd.f32 %v5699, %v5717
  %v5770 = vadd.f32 %v5700, %v5717
  %v5771 = vadd.f32 %v5701, %v5717
  %v5772 = vadd.f32 %v5702, %v5717
  %v5773 = vadd.f32 %v5703, %v5717
  %v5774 = vadd.f32 %v5704, %v5717
  %v5775 = vadd.f32 %v5705, %v5717
  %v5776 = vadd.f32 %v5706, %v5717
  %v5777 = vadd.f32 %v5707, %v5717
  %v5778 = vadd.f32 %v5708, %v5717
  %v5779 = vadd.f32 %v5709, %v5717
  %v5780 = vadd.f32 %v5710, %v5717
  %v5781 = vadd.f32 %v5711, %v5717
  %v5782 = vadd.f32 %v5712, %v5717
  %v5783 = vmax.f32 %v5719, 0.0
  %v5784 = vmax.f32 %v5720, 0.0
  %v5785 = vmax.f32 %v5721, 0.0
  %v5786 = vmax.f32 %v5722, 0.0
  %v5787 = vmax.f32 %v5723, 0.0
  %v5788 = vmax.f32 %v5724, 0.0
  %v5789 = vmax.f32 %v5725, 0.0
  %v5790 = vmax.f32 %v5726, 0.0
  %v5791 = vmax.f32 %v5727, 0.0
  %v5792 = vmax.f32 %v5728, 0.0
  %v5793 = vmax.f32 %v5729, 0.0
  %v5794 = vmax.f32 %v5730, 0.0
  %v5795 = vmax.f32 %v5731, 0.0
  %v5796 = vmax.f32 %v5732, 0.0
  %v5797 = vmax.f32 %v5733, 0.0
  %v5798 = vmax.f32 %v5734, 0.0
  %v5799 = vmax.f32 %v5735, 0.0
  %v5800 = vmax.f32 %v5736, 0.0
  %v5801 = vmax.f32 %v5737, 0.0
  %v5802 = vmax.f32 %v5738, 0.0
  %v5803 = vmax.f32 %v5739, 0.0
  %v5804 = vmax.f32 %v5740, 0.0
  %v5805 = vmax.f32 %v5741, 0.0
  %v5806 = vmax.f32 %v5742, 0.0
  %v5807 = vmax.f32 %v5743, 0.0
  %v5808 = vmax.f32 %v5744, 0.0
  %v5809 = vmax.f32 %v5745, 0.0
  %v5810 = vmax.f32 %v5746, 0.0
  %v5811 = vmax.f32 %v5747, 0.0
  %v5812 = vmax.f32 %v5748, 0.0
  %v5813 = vmax.f32 %v5749, 0.0
  %v5814 = vmax.f32 %v5750, 0.0
  %v5815 = vmax.f32 %v5751, 0.0
  %v5816 = vmax.f32 %v5752, 0.0
  %v5817 = vmax.f32 %v5753, 0.0
  %v5818 = vmax.f32 %v5754, 0.0
  %v5819 = vmax.f32 %v5755, 0.0
  %v5820 = vmax.f32 %v5756, 0.0
  %v5821 = vmax.f32 %v5757, 0.0
  %v5822 = vmax.f32 %v5758, 0.0
  %v5823 = vmax.f32 %v5759, 0.0
  %v5824 = vmax.f32 %v5760, 0.0
  %v5825 = vmax.f32 %v5761, 0.0
  %v5826 = vmax.f32 %v5762, 0.0
  %v5827 = vmax.f32 %v5763, 0.0
  %v5828 = vmax.f32 %v5764, 0.0
  %v5829 = vmax.f32 %v5765, 0.0
  %v5830 = vmax.f32 %v5766, 0.0
  %v5831 = vmax.f32 %v5767, 0.0
  %v5832 = vmax.f32 %v5768, 0.0
  %v5833 = vmax.f32 %v5769, 0.0
  %v5834 = vmax.f32 %v5770, 0.0
  %v5835 = vmax.f32 %v5771, 0.0
  %v5836 = vmax.f32 %v5772, 0.0
  %v5837 = vmax.f32 %v5773, 0.0
  %v5838 = vmax.f32 %v5774, 0.0
  %v5839 = vmax.f32 %v5775, 0.0
  %v5840 = vmax.f32 %v5776, 0.0
  %v5841 = vmax.f32 %v5777, 0.0
  %v5842 = vmax.f32 %v5778, 0.0
  %v5843 = vmax.f32 %v5779, 0.0
  %v5844 = vmax.f32 %v5780, 0.0
  %v5845 = vmax.f32 %v5781, 0.0
  %v5846 = vmax.f32 %v5782, 0.0
  %v5847 = vld [vmem:[%s1] sm:$0xff]
  %v5848 = vld [vmem:[%s1 + $0x8] sm:$0xff]
  %v5849 = vpack.c.bf16 %v5784, %v5783
  %v5850 = vpack.c.bf16 %v5786, %v5785
  %v5851 = vpack.c.bf16 %v5788, %v5787
  %v5852 = vpack.c.bf16 %v5790, %v5789
  %v5853 = vpack.c.bf16 %v5792, %v5791
  %v5854 = vpack.c.bf16 %v5794, %v5793
  %v5855 = vpack.c.bf16 %v5796, %v5795
  %v5856 = vpack.c.bf16 %v5798, %v5797
  %v5857 = vpack.c.bf16 %v5800, %v5799
  %v5858 = vpack.c.bf16 %v5802, %v5801
  %v5859 = vpack.c.bf16 %v5804, %v5803
  %v5860 = vpack.c.bf16 %v5806, %v5805
  %v5861 = vpack.c.bf16 %v5808, %v5807
  %v5862 = vpack.c.bf16 %v5810, %v5809
  %v5863 = vpack.c.bf16 %v5812, %v5811
  %v5864 = vpack.c.bf16 %v5814, %v5813
  %v5865 = vpack.c.bf16 %v5816, %v5815
  %v5866 = vpack.c.bf16 %v5818, %v5817
  %v5867 = vpack.c.bf16 %v5820, %v5819
  %v5868 = vpack.c.bf16 %v5822, %v5821
  %v5869 = vpack.c.bf16 %v5824, %v5823
  %v5870 = vpack.c.bf16 %v5826, %v5825
  %v5871 = vpack.c.bf16 %v5828, %v5827
  %v5872 = vpack.c.bf16 %v5830, %v5829
  %v5873 = vpack.c.bf16 %v5832, %v5831
  %v5874 = vpack.c.bf16 %v5834, %v5833
  %v5875 = vpack.c.bf16 %v5836, %v5835
  %v5876 = vpack.c.bf16 %v5838, %v5837
  %v5877 = vpack.c.bf16 %v5840, %v5839
  %v5878 = vpack.c.bf16 %v5842, %v5841
  %v5879 = vpack.c.bf16 %v5844, %v5843
  %v5880 = vpack.c.bf16 %v5846, %v5845
  %v5883 = vunpack.c.l.b16 %v5847
  %v5884 = vunpack.c.h.b16 %v5847
  %v5885 = vunpack.c.l.b16 %v5848
  %v5886 = vunpack.c.h.b16 %v5848
  %v5887 = vpack.c.b16 %v5883, %v5883
  %v5888 = vpack.c.b16 %v5884, %v5884
  %v5889 = vpack.c.b16 %v5885, %v5885
  %v5890 = vpack.c.b16 %v5886, %v5886
  %5895 = vmatprep.subr.bf16.mxu0 0
  %5896 = vmatpush1.bf16.msra.mxu0 %v5856
  %5897 = vmatprep.subr.bf16.mxu0 0
  %5898 = vmatpush1.bf16.msra.mxu0 %v5855
  %5899 = vmatprep.subr.bf16.mxu0 0
  %5900 = vmatpush1.bf16.msra.mxu0 %v5854
  %5901 = vmatprep.subr.bf16.mxu0 0
  %5902 = vmatpush1.bf16.msra.mxu0 %v5853
  %5903 = vmatprep.subr.bf16.mxu0 0
  %5904 = vmatpush1.bf16.msra.mxu0 %v5852
  %5905 = vmatprep.subr.bf16.mxu0 0
  %5906 = vmatpush1.bf16.msra.mxu0 %v5851
  %5907 = vmatprep.subr.bf16.mxu0 0
  %5908 = vmatpush1.bf16.msra.mxu0 %v5850
  %5909 = vmatprep.subr.bf16.mxu0 0
  %5910 = vmatpush1.bf16.msra.mxu0 %v5849
  %5911 = vmatprep.subr.bf16.mxu0 0
  %5912 = vmatpush2.bf16.msra.mxu0 %v5864
  %5913 = vmatprep.subr.bf16.mxu0 0
  %5914 = vmatpush2.bf16.msra.mxu0 %v5863
  %5915 = vmatprep.subr.bf16.mxu0 0
  %5916 = vmatpush2.bf16.msra.mxu0 %v5862
  %5917 = vmatprep.subr.bf16.mxu0 0
  %5918 = vmatpush2.bf16.msra.mxu0 %v5861
  %5919 = vmatprep.subr.bf16.mxu0 0
  %5920 = vmatpush2.bf16.msra.mxu0 %v5860
  %5921 = vmatprep.subr.bf16.mxu0 0
  %5922 = vmatpush2.bf16.msra.mxu0 %v5859
  %5923 = vmatprep.subr.bf16.mxu0 0
  %5924 = vmatpush2.bf16.msra.mxu0 %v5858
  %5925 = vmatprep.subr.bf16.mxu0 0
  %5926 = vmatpush2.bf16.msra.mxu0 %v5857
  %5927 = vmatprep.mubr.bf16.mxu0 %v5888
  %5928 = vmatmul.mubr.bf16.gmra.mxu0 %v5887
  %v5929 = vpop.f32.mrf.mxu0
  %v5930 = vadd.f32 0.0, %v5929
  %v5931 = vpop.f32.mrf.mxu0
  %v5932 = vpop.f32.mrf.mxu0
  %v5933 = vpop.f32.mrf.mxu0
  %5934 = vdwg.mxu0
  %5935 = vmatprep.subr.bf16.mxu0 0
  %5936 = vmatpush1.bf16.msra.mxu0 %v5872
  %5937 = vmatprep.subr.bf16.mxu0 0
  %5938 = vmatpush1.bf16.msra.mxu0 %v5871
  %5939 = vmatprep.subr.bf16.mxu0 0
  %5940 = vmatpush1.bf16.msra.mxu0 %v5870
  %5941 = vmatprep.subr.bf16.mxu0 0
  %5942 = vmatpush1.bf16.msra.mxu0 %v5869
  %5943 = vmatprep.subr.bf16.mxu0 0
  %5944 = vmatpush1.bf16.msra.mxu0 %v5868
  %5945 = vmatprep.subr.bf16.mxu0 0
  %5946 = vmatpush1.bf16.msra.mxu0 %v5867
  %5947 = vmatprep.subr.bf16.mxu0 0
  %5948 = vmatpush1.bf16.msra.mxu0 %v5866
  %5949 = vmatprep.subr.bf16.mxu0 0
  %5950 = vmatpush1.bf16.msra.mxu0 %v5865
  %5951 = vmatprep.subr.bf16.mxu0 0
  %5952 = vmatpush2.bf16.msra.mxu0 %v5880
  %5953 = vmatprep.subr.bf16.mxu0 0
  %5954 = vmatpush2.bf16.msra.mxu0 %v5879
  %5955 = vmatprep.subr.bf16.mxu0 0
  %5956 = vmatpush2.bf16.msra.mxu0 %v5878
  %5957 = vmatprep.subr.bf16.mxu0 0
  %5958 = vmatpush2.bf16.msra.mxu0 %v5877
  %5959 = vmatprep.subr.bf16.mxu0 0
  %5960 = vmatpush2.bf16.msra.mxu0 %v5876
  %5961 = vmatprep.subr.bf16.mxu0 0
  %5962 = vmatpush2.bf16.msra.mxu0 %v5875
  %5963 = vmatprep.subr.bf16.mxu0 0
  %5964 = vmatpush2.bf16.msra.mxu0 %v5874
  %5965 = vmatprep.subr.bf16.mxu0 0
  %5966 = vmatpush2.bf16.msra.mxu0 %v5873
  %5967 = vmatprep.mubr.bf16.mxu0 %v5890
  %5968 = vmatmul.mubr.bf16.gmra.mxu0 %v5889
  %v5969 = vpop.f32.mrf.mxu0
  %v5970 = vadd.f32 %v5930, %v5969
  %v5971 = vpop.f32.mrf.mxu0
  %v5972 = vpop.f32.mrf.mxu0
  %v5973 = vpop.f32.mrf.mxu0
  %5974 = vdwg.mxu0
  %v5975 = vpack.c.bf16 %v5970, %v5970
  %v5976 = vld [vmem:[%s11] sm:$0xf]
  %v5977 = vld [vmem:[%s11 + $0x4] sm:$0xf]
  %v5978 = vld [vmem:[%s11 + $0x8] sm:$0xf]
  %v5979 = vld [vmem:[%s11 + $0xc] sm:$0xf]
  %v5980 = vld [vmem:[%s11 + $0x10] sm:$0xf]
  %v5981 = vld [vmem:[%s11 + $0x14] sm:$0xf]
  %v5982 = vld [vmem:[%s11 + $0x18] sm:$0xf]
  %v5983 = vld [vmem:[%s11 + $0x1c] sm:$0xf]
  %v5984 = vld [vmem:[%s11 + $0x20] sm:$0xf]
  %v5985 = vld [vmem:[%s11 + $0x24] sm:$0xf]
  %v5986 = vld [vmem:[%s11 + $0x28] sm:$0xf]
  %v5987 = vld [vmem:[%s11 + $0x2c] sm:$0xf]
  %v5988 = vld [vmem:[%s11 + $0x30] sm:$0xf]
  %v5989 = vld [vmem:[%s11 + $0x34] sm:$0xf]
  %v5990 = vld [vmem:[%s11 + $0x38] sm:$0xf]
  %v5991 = vld [vmem:[%s11 + $0x3c] sm:$0xf]
  %v5992 = vld [vmem:[%s12] sm:$0x1]
  %v5994 = vlaneseq
  %v5995 = vshrl.u32 %v5994, 7
  %v5996 = vsub.s32 0, %v5995
  %v5997 = vrot.slane %v5992, %v5996
  %v6015 = vunpack.c.l.b16 %v5976
  %v6016 = vunpack.c.l.b16 %v5977
  %v6017 = vunpack.c.l.b16 %v5978
  %v6018 = vunpack.c.l.b16 %v5979
  %v6019 = vunpack.c.l.b16 %v5980
  %v6020 = vunpack.c.l.b16 %v5981
  %v6021 = vunpack.c.l.b16 %v5982
  %v6022 = vunpack.c.l.b16 %v5983
  %v6023 = vunpack.c.l.b16 %v5984
  %v6024 = vunpack.c.l.b16 %v5985
  %v6025 = vunpack.c.l.b16 %v5986
  %v6026 = vunpack.c.l.b16 %v5987
  %v6027 = vunpack.c.l.b16 %v5988
  %v6028 = vunpack.c.l.b16 %v5989
  %v6029 = vunpack.c.l.b16 %v5990
  %v6030 = vunpack.c.l.b16 %v5991
  %v6031 = vpack.c.b16 %v6016, %v6015
  %v6032 = vpack.c.b16 %v6018, %v6017
  %v6033 = vpack.c.b16 %v6020, %v6019
  %v6034 = vpack.c.b16 %v6022, %v6021
  %v6035 = vpack.c.b16 %v6024, %v6023
  %v6036 = vpack.c.b16 %v6026, %v6025
  %v6037 = vpack.c.b16 %v6028, %v6027
  %v6038 = vpack.c.b16 %v6030, %v6029
  %6047 = vmatprep.subr.bf16.mxu0 0
  %6048 = vmatpush1.bf16.msra.mxu0 %v6038
  %6049 = vmatprep.subr.bf16.mxu0 0
  %6050 = vmatpush1.bf16.msra.mxu0 %v6037
  %6051 = vmatprep.subr.bf16.mxu0 0
  %6052 = vmatpush1.bf16.msra.mxu0 %v6036
  %6053 = vmatprep.subr.bf16.mxu0 0
  %6054 = vmatpush1.bf16.msra.mxu0 %v6035
  %6055 = vmatprep.subr.bf16.mxu0 0
  %6056 = vmatpush1.bf16.msra.mxu0 %v6034
  %6057 = vmatprep.subr.bf16.mxu0 0
  %6058 = vmatpush1.bf16.msra.mxu0 %v6033
  %6059 = vmatprep.subr.bf16.mxu0 0
  %6060 = vmatpush1.bf16.msra.mxu0 %v6032
  %6061 = vmatprep.subr.bf16.mxu0 0
  %6062 = vmatpush1.bf16.msra.mxu0 %v6031
  %6063 = vmatprep.subr.bf16.mxu0 0
  %6064 = vmatpush2.bf16.msra.mxu0 0
  %6065 = vmatprep.subr.bf16.mxu0 0
  %6066 = vmatpush2.bf16.msra.mxu0 0
  %6067 = vmatprep.subr.bf16.mxu0 0
  %6068 = vmatpush2.bf16.msra.mxu0 0
  %6069 = vmatprep.subr.bf16.mxu0 0
  %6070 = vmatpush2.bf16.msra.mxu0 0
  %6071 = vmatprep.subr.bf16.mxu0 0
  %6072 = vmatpush2.bf16.msra.mxu0 0
  %6073 = vmatprep.subr.bf16.mxu0 0
  %6074 = vmatpush2.bf16.msra.mxu0 0
  %6075 = vmatprep.subr.bf16.mxu0 0
  %6076 = vmatpush2.bf16.msra.mxu0 0
  %6077 = vmatprep.subr.bf16.mxu0 0
  %6078 = vmatpush2.bf16.msra.mxu0 0
  %6079 = vmatprep.mubr.bf16.mxu0 0
  %6080 = vmatmul.mubr.bf16.gmra.mxu0 %v5975
  %v6081 = vpop.f32.mrf.mxu0
  %v6082 = vadd.f32 %v5997, %v6081
  %v6083 = vpop.f32.mrf.mxu0
  %v6084 = vpop.f32.mrf.mxu0
  %v6085 = vpop.f32.mrf.mxu0
  %6086 = vdwg.mxu0
  %v6087 = vmax.f32 %v6082, 0.0
  %v6088 = vpack.c.bf16 %v6087, %v6087
  %v6089 = vld [vmem:[%s13] sm:$0xf]
  %v6090 = vld [vmem:[%s13 + $0x4] sm:$0xf]
  %v6091 = vld [vmem:[%s13 + $0x8] sm:$0xf]
  %v6092 = vld [vmem:[%s13 + $0xc] sm:$0xf]
  %v6093 = vld [vmem:[%s13 + $0x10] sm:$0xf]
  %v6094 = vld [vmem:[%s13 + $0x14] sm:$0xf]
  %v6095 = vld [vmem:[%s13 + $0x18] sm:$0xf]
  %v6096 = vld [vmem:[%s13 + $0x1c] sm:$0xf]
  %v6097 = vld [vmem:[%s13 + $0x20] sm:$0xf]
  %v6098 = vld [vmem:[%s13 + $0x24] sm:$0xf]
  %v6099 = vld [vmem:[%s13 + $0x28] sm:$0xf]
  %v6100 = vld [vmem:[%s13 + $0x2c] sm:$0xf]
  %v6101 = vld [vmem:[%s13 + $0x30] sm:$0xf]
  %v6102 = vld [vmem:[%s13 + $0x34] sm:$0xf]
  %v6103 = vld [vmem:[%s13 + $0x38] sm:$0xf]
  %v6104 = vld [vmem:[%s13 + $0x3c] sm:$0xf]
  %v6105 = vld [vmem:[%s14] sm:$0x1]
  %v6107 = vlaneseq
  %v6108 = vshrl.u32 %v6107, 7
  %v6109 = vsub.s32 0, %v6108
  %v6110 = vrot.slane %v6105, %v6109
  %v6128 = vunpack.c.l.b16 %v6089
  %v6129 = vunpack.c.l.b16 %v6090
  %v6130 = vunpack.c.l.b16 %v6091
  %v6131 = vunpack.c.l.b16 %v6092
  %v6132 = vunpack.c.l.b16 %v6093
  %v6133 = vunpack.c.l.b16 %v6094
  %v6134 = vunpack.c.l.b16 %v6095
  %v6135 = vunpack.c.l.b16 %v6096
  %v6136 = vunpack.c.l.b16 %v6097
  %v6137 = vunpack.c.l.b16 %v6098
  %v6138 = vunpack.c.l.b16 %v6099
  %v6139 = vunpack.c.l.b16 %v6100
  %v6140 = vunpack.c.l.b16 %v6101
  %v6141 = vunpack.c.l.b16 %v6102
  %v6142 = vunpack.c.l.b16 %v6103
  %v6143 = vunpack.c.l.b16 %v6104
  %v6144 = vpack.c.b16 %v6129, %v6128
  %v6145 = vpack.c.b16 %v6131, %v6130
  %v6146 = vpack.c.b16 %v6133, %v6132
  %v6147 = vpack.c.b16 %v6135, %v6134
  %v6148 = vpack.c.b16 %v6137, %v6136
  %v6149 = vpack.c.b16 %v6139, %v6138
  %v6150 = vpack.c.b16 %v6141, %v6140
  %v6151 = vpack.c.b16 %v6143, %v6142
  %6160 = vmatprep.subr.bf16.mxu0 0
  %6161 = vmatpush1.bf16.msra.mxu0 %v6151
  %6162 = vmatprep.subr.bf16.mxu0 0
  %6163 = vmatpush1.bf16.msra.mxu0 %v6150
  %6164 = vmatprep.subr.bf16.mxu0 0
  %6165 = vmatpush1.bf16.msra.mxu0 %v6149
  %6166 = vmatprep.subr.bf16.mxu0 0
  %6167 = vmatpush1.bf16.msra.mxu0 %v6148
  %6168 = vmatprep.subr.bf16.mxu0 0
  %6169 = vmatpush1.bf16.msra.mxu0 %v6147
  %6170 = vmatprep.subr.bf16.mxu0 0
  %6171 = vmatpush1.bf16.msra.mxu0 %v6146
  %6172 = vmatprep.subr.bf16.mxu0 0
  %6173 = vmatpush1.bf16.msra.mxu0 %v6145
  %6174 = vmatprep.subr.bf16.mxu0 0
  %6175 = vmatpush1.bf16.msra.mxu0 %v6144
  %6176 = vmatprep.subr.bf16.mxu0 0
  %6177 = vmatpush2.bf16.msra.mxu0 0
  %6178 = vmatprep.subr.bf16.mxu0 0
  %6179 = vmatpush2.bf16.msra.mxu0 0
  %6180 = vmatprep.subr.bf16.mxu0 0
  %6181 = vmatpush2.bf16.msra.mxu0 0
  %6182 = vmatprep.subr.bf16.mxu0 0
  %6183 = vmatpush2.bf16.msra.mxu0 0
  %6184 = vmatprep.subr.bf16.mxu0 0
  %6185 = vmatpush2.bf16.msra.mxu0 0
  %6186 = vmatprep.subr.bf16.mxu0 0
  %6187 = vmatpush2.bf16.msra.mxu0 0
  %6188 = vmatprep.subr.bf16.mxu0 0
  %6189 = vmatpush2.bf16.msra.mxu0 0
  %6190 = vmatprep.subr.bf16.mxu0 0
  %6191 = vmatpush2.bf16.msra.mxu0 0
  %6192 = vmatprep.mubr.bf16.mxu0 0
  %6193 = vmatmul.mubr.bf16.gmra.mxu0 %v6088
  %v6194 = vpop.f32.mrf.mxu0
  %v6195 = vadd.f32 %v6110, %v6194
  %v6196 = vpop.f32.mrf.mxu0
  %v6197 = vpop.f32.mrf.mxu0
  %v6198 = vpop.f32.mrf.mxu0
  %6199 = vdwg.mxu0
  %6200 = vst [vmem:[%s15] sm:$0xff] %v6195
  // Predicated region
  $region62: #{gcn_forward.1} parent=0 // pred_check
    _
  $region63: #{gcn_forward.1} parent=0 // pred_check_branch
    %6202 = sbr.rel (0) target = $region65
  $region64: #{gcn_forward.1} parent=0 // pred_region
    _
  $region65: #{gcn_forward.1} parent=0 // pred_fallthru
    _
  // Predicated region
  $region66: #{gcn_forward.1} parent=0 // pred_check
    _
  $region67: #{gcn_forward.1} parent=0 // pred_check_branch
    %6204 = sbr.rel (0) target = $region69
  $region68: #{gcn_forward.1} parent=0 // pred_region
    _
  $region69: #{gcn_forward.1} parent=0 // pred_fallthru
    _

</llo_original>
